<compile_context>
chip_gen: v7x
topology: tpu7x:2x2x1
jax: 0.10.0
libtpu: 0.0.40
codegen_flags: <defaults>
</compile_context>

<pallas_src>
import functools
import math

import jax
import jax.numpy as jnp
import numpy as np
from jax.experimental import pallas as pl
from jax.experimental.pallas import tpu as pltpu

BN_EPS = 1e-5


# ----------------------------- in-kernel math -------------------------------

def _dot(x, w):
    """MLP matmul: operands cast to the weight dtype (f32 / bf16), f32 accum."""
    return jnp.dot(x.astype(w.dtype), w, preferred_element_type=jnp.float32)


def _dot_f32(a, b):
    """Graph contraction (one-hot gather / average) — always f32."""
    return jnp.dot(a, b, preferred_element_type=jnp.float32)


def _elu(x):
    # alpha = 1.0; clamp exp argument so the unselected branch stays finite
    return jnp.where(x > 0, x, jnp.exp(jnp.minimum(x, 0.0)) - 1.0)


def _bn(y):
    """Single-pass BatchNorm1d over rows (training stats, gamma=1, beta=0)."""
    inv_rows = 1.0 / y.shape[0]
    s = jnp.sum(y, axis=0, keepdims=True)
    sq = jnp.sum(y * y, axis=0, keepdims=True)
    m = s * inv_rows
    v = jnp.maximum(sq * inv_rows - m * m, 0.0)     # clamp before +eps
    return (y - m) * jax.lax.rsqrt(v + BN_EPS)


def _mlp(x, w1, b1, w2, b2):
    h = _elu(_dot(x, w1) + b1)
    # dropout(p=0.0) == identity
    y = _elu(_dot(h, w2) + b2)
    return _bn(y)


# ------------------------------ fused kernel --------------------------------

def _make_encoder_kernel(B, N, E):
    inv_n = 1.0 / float(N)

    def kernel(x_ref, rs_ref, rr_ref, rrt_ref,
               w11, b11, w12, b12,                    # mlp1
               w21s, w21r, b21, w22, b22,             # mlp2 (split W1)
               w31, b31, w32, b32,                    # mlp3
               w41s, w41r, w41k, b41, w42, b42,       # mlp4 (split W1)
               wo, bo,                                # fc_out (lane-padded)
               o_ref,
               nbuf0, nbuf1, nbuf2, skip_e, ebuf):    # VMEM scratch
        rel_send = rs_ref[...]       # [E, N]  f32
        rel_rec = rr_ref[...]        # [E, N]  f32
        rel_rec_t = rrt_ref[...]     # [N, E]  f32

        # --- mlp1 over node rows: [B*N, n_in] -> [B*N, H] ---
        nbuf0[...] = _mlp(x_ref[...], w11[...], b11[...], w12[...], b12[...])

        # --- mlp2 first layer reassociated to node granularity:
        #     cat([s, r]) @ W1 == rel_send @ (n @ W1s) + rel_rec @ (n @ W1r)
        nbuf1[...] = _dot(nbuf0[...], w21s[...])       # node @ W1_send
        nbuf2[...] = _dot(nbuf0[...], w21r[...])       # node @ W1_recv
        for b in range(B):                             # static loop; B small here
            ebuf[b * E:(b + 1) * E, :] = (
                _dot_f32(rel_send, nbuf1[b * N:(b + 1) * N, :])
                + _dot_f32(rel_rec, nbuf2[b * N:(b + 1) * N, :]))

        # --- rest of mlp2 over edge rows; result is the skip slab ---
        h2 = _elu(ebuf[...] + b21[...])
        y2 = _elu(_dot(h2, w22[...]) + b22[...])
        skip_e[...] = _bn(y2).astype(skip_e.dtype)

        # --- edge2node: (rel_rec.T @ edges) / N ---
        for b in range(B):
            eb = skip_e[b * E:(b + 1) * E, :].astype(jnp.float32)
            nbuf0[b * N:(b + 1) * N, :] = _dot_f32(rel_rec_t, eb) * inv_n

        # --- mlp3 over node rows ---
        nbuf0[...] = _mlp(nbuf0[...], w31[...], b31[...], w32[...], b32[...])

        # --- mlp4 first layer: reassociated node2edge #2 + skip contribution ---
        nbuf1[...] = _dot(nbuf0[...], w41s[...])
        nbuf2[...] = _dot(nbuf0[...], w41r[...])
        for b in range(B):
            ebuf[b * E:(b + 1) * E, :] = (
                _dot_f32(rel_send, nbuf1[b * N:(b + 1) * N, :])
                + _dot_f32(rel_rec, nbuf2[b * N:(b + 1) * N, :]))

        h4 = _elu(ebuf[...] + _dot(skip_e[...], w41k[...]) + b41[...])
        y4 = _elu(_dot(h4, w42[...]) + b42[...])
        z = _bn(y4)

        # --- fc_out: output columns pre-padded to 128 -> unmasked full store ---
        o_ref[...] = _dot(z, wo[...]) + bo[...]

    return kernel


# --------------------------- parameter preparation ---------------------------

_ARG_ORDER = ("rel_send", "rel_rec", "rel_rec_t",
              "w11", "b11", "w12", "b12",
              "w21s", "w21r", "b21", "w22", "b22",
              "w31", "b31", "w32", "b32",
              "w41s", "w41r", "w41k", "b41", "w42", "b42",
              "wo", "bo")


def prepare_encoder_params(params, rel_rec, rel_send,
                           compute_dtype=jnp.float32):
    """One-time preprocessing, hoisted out of the per-step jitted forward:
    split mlp2/mlp4 first-layer weights, transpose rel_rec, pad fc_out to a
    lane multiple, and cast matmul weights to the MXU compute dtype."""
    cd = compute_dtype
    f32 = jnp.float32
    w11, b11, w12, b12 = params["mlp1"]
    w21, b21, w22, b22 = params["mlp2"]
    w31, b31, w32, b32 = params["mlp3"]
    w41, b41, w42, b42 = params["mlp4"]
    wo, bo = params["fc_out_w"], params["fc_out_b"]
    H = wo.shape[0]
    n_out = wo.shape[1]
    n_out_pad = max(128, -(-n_out // 128) * 128)      # lane-dense output width

    wo_pad = jnp.zeros((H, n_out_pad), f32).at[:, :n_out].set(wo)
    bo_pad = jnp.zeros((1, n_out_pad), f32).at[:, :n_out].set(bo)

    rel_rec = rel_rec.astype(f32)
    rel_send = rel_send.astype(f32)

    weights = dict(
        rel_send=rel_send, rel_rec=rel_rec, rel_rec_t=rel_rec.T,
        w11=w11.astype(cd), b11=b11.astype(f32),
        w12=w12.astype(cd), b12=b12.astype(f32),
        w21s=w21[:H].astype(cd), w21r=w21[H:].astype(cd), b21=b21.astype(f32),
        w22=w22.astype(cd), b22=b22.astype(f32),
        w31=w31.astype(cd), b31=b31.astype(f32),
        w32=w32.astype(cd), b32=b32.astype(f32),
        w41s=w41[:H].astype(cd), w41r=w41[H:2 * H].astype(cd),
        w41k=w41[2 * H:].astype(cd), b41=b41.astype(f32),
        w42=w42.astype(cd), b42=b42.astype(f32),
        wo=wo_pad.astype(cd), bo=bo_pad,
    )
    meta = dict(H=H, n_out=n_out, n_out_pad=n_out_pad,
                N=rel_rec.shape[1], E=rel_rec.shape[0], compute_dtype=cd)
    return weights, meta


# --------------------------------- wrapper ------------------------------------

def mlp_encoder_forward(weights, inputs, *, meta):
    B, N = inputs.shape[0], inputs.shape[1]
    E, H = meta["E"], meta["H"]
    n_out, n_out_pad = meta["n_out"], meta["n_out_pad"]
    cd = meta["compute_dtype"]
    assert N == meta["N"]

    x2d = inputs.reshape(B * N, -1).astype(jnp.float32)      # [B*N, T*D]
    args = (x2d,) + tuple(weights[k] for k in _ARG_ORDER)

    scratch = [
        pltpu.VMEM((B * N, H), jnp.float32),   # node working slab (mlp1/mlp3)
        pltpu.VMEM((B * N, H), jnp.float32),   # node @ W1_send projection
        pltpu.VMEM((B * N, H), jnp.float32),   # node @ W1_recv projection
        pltpu.VMEM((B * E, H), cd),            # mlp2 output (skip connection)
        pltpu.VMEM((B * E, H), jnp.float32),   # edge pre-activation slab
    ]

    # Explicit VMEM budget: io + weights + scratch, with 2x headroom.
    io_bytes = sum(int(a.size) * a.dtype.itemsize for a in args)
    io_bytes += B * E * n_out_pad * 4
    scr_bytes = ((3 * B * N * H + B * E * H) * 4
                 + B * E * H * np.dtype(cd).itemsize)
    vmem_limit = int(min(max(2 * (io_bytes + scr_bytes), 8 << 20), 64 << 20))

    vspec = pl.BlockSpec(memory_space=pltpu.MemorySpace.VMEM)
    out = pl.pallas_call(
        _make_encoder_kernel(B, N, E),
        out_shape=jax.ShapeDtypeStruct((B * E, n_out_pad), jnp.float32),
        in_specs=[vspec] * len(args),
        out_specs=vspec,
        scratch_shapes=scratch,
        compiler_params=pltpu.CompilerParams(vmem_limit_bytes=vmem_limit),
    )(*args)
    return out[:, :n_out].reshape(B, E, n_out)


# ------------------------------ param init ----------------------------------

def xavier_normal(key, fan_in, fan_out):
    std = math.sqrt(2.0 / (fan_in + fan_out))
    return jax.random.normal(key, (fan_in, fan_out), jnp.float32) * std


def init_mlp_params(key, n_in, n_hid, n_out):
    k1, k2 = jax.random.split(key)
    return (xavier_normal(k1, n_in, n_hid),
            jnp.full((1, n_hid), 0.1, jnp.float32),
            xavier_normal(k2, n_hid, n_out),
            jnp.full((1, n_out), 0.1, jnp.float32))


def init_encoder_params(key, n_in, n_hid, n_out):
    ks = jax.random.split(key, 5)
    return {
        "mlp1": init_mlp_params(ks[0], n_in, n_hid, n_hid),
        "mlp2": init_mlp_params(ks[1], 2 * n_hid, n_hid, n_hid),
        "mlp3": init_mlp_params(ks[2], n_hid, n_hid, n_hid),
        "mlp4": init_mlp_params(ks[3], 3 * n_hid, n_hid, n_hid),  # factor=True
        "fc_out_w": xavier_normal(ks[4], n_hid, n_out),
        "fc_out_b": jnp.full((1, n_out), 0.1, jnp.float32),
    }


# --------------------------- pure-JAX reference -----------------------------

def _ref_forward(params, inputs, rel_rec, rel_send):
    B, N = inputs.shape[:2]
    x = inputs.reshape(B, N, -1)

    def mlp(x3, p):
        w1, b1, w2, b2 = p
        b_, k, _ = x3.shape
        x2 = x3.reshape(b_ * k, -1)
        h = jax.nn.elu(x2 @ w1 + b1)
        y = jax.nn.elu(h @ w2 + b2)
        m = y.mean(0, keepdims=True)
        v = ((y - m) ** 2).mean(0, keepdims=True)
        return ((y - m) / jnp.sqrt(v + BN_EPS)).reshape(b_, k, -1)

    def node2edge(x3):
        send = jnp.einsum("en,bnh->beh", rel_send, x3)
        recv = jnp.einsum("en,bnh->beh", rel_rec, x3)
        return jnp.concatenate([send, recv], axis=2)

    def edge2node(x3):
        return jnp.einsum("en,beh->bnh", rel_rec, x3) / N

    x = mlp(x, params["mlp1"])
    x = node2edge(x)
    x = mlp(x, params["mlp2"])
    skip = x
    x = edge2node(x)
    x = mlp(x, params["mlp3"])
    x = node2edge(x)
    x = jnp.concatenate([x, skip], axis=2)
    x = mlp(x, params["mlp4"])
    return x @ params["fc_out_w"] + params["fc_out_b"]


# --------------------------------- main --------------------------------------

if __name__ == "__main__":
    # small shapes: B sims, N atoms, T timesteps, D dims
    B, N, T, D = 2, 4, 8, 2
    n_in = T * D          # 16
    n_hid = 128           # lane-dense hidden width (multiple of 128)
    n_out = 8             # edge types
    E = N * (N - 1)

    key = jax.random.PRNGKey(0)
    k_in, k_par = jax.random.split(key)
    inputs = jax.random.normal(k_in, (B, N, T, D), jnp.float32)

    # fully-connected graph minus self-loops; one-hot receiver / sender
    pairs = [(i, j) for i in range(N) for j in range(N) if i != j]
    recv_idx = jnp.array([p[0] for p in pairs], jnp.int32)
    send_idx = jnp.array([p[1] for p in pairs], jnp.int32)
    rel_rec = jax.nn.one_hot(recv_idx, N, dtype=jnp.float32)    # [E, N]
    rel_send = jax.nn.one_hot(send_idx, N, dtype=jnp.float32)   # [E, N]

    params = init_encoder_params(k_par, n_in, n_hid, n_out)
    ref = _ref_forward(params, inputs, rel_rec, rel_send)

    # --- f32 MXU path: structural parity with the PyTorch reference ---
    weights_f32, meta_f32 = prepare_encoder_params(
        params, rel_rec, rel_send, compute_dtype=jnp.float32)
    fwd_f32 = jax.jit(functools.partial(mlp_encoder_forward, meta=meta_f32))
    out_f32 = fwd_f32(weights_f32, inputs)
    jax.block_until_ready(out_f32)
    assert out_f32.shape == (B, E, n_out), out_f32.shape
    assert bool(jnp.all(jnp.isfinite(out_f32)))
    err_f32 = float(jnp.max(jnp.abs(out_f32 - ref)))
    assert jnp.allclose(out_f32, ref, atol=1e-3, rtol=1e-3), err_f32

    # --- bf16 MXU path (production knob): bf16 operands, f32 accumulation ---
    weights_bf16, meta_bf16 = prepare_encoder_params(
        params, rel_rec, rel_send, compute_dtype=jnp.bfloat16)
    fwd_bf16 = jax.jit(functools.partial(mlp_encoder_forward, meta=meta_bf16))
    out_bf16 = fwd_bf16(weights_bf16, inputs)
    jax.block_until_ready(out_bf16)
    assert out_bf16.shape == (B, E, n_out), out_bf16.shape
    assert bool(jnp.all(jnp.isfinite(out_bf16)))
    err_bf16 = float(jnp.max(jnp.abs(out_bf16 - ref)))
    assert err_bf16 < 1.0, err_bf16       # loose sanity bound for bf16 rounding

    print("KERNEL_OK")
</pallas_src>

<mosaic_0001>
module attributes {stable_mosaic.version = 11 : i64} {
  func.func @kernel(%arg0: memref<8x16xf32, #tpu.memory_space<vmem>>, %arg1: memref<12x4xf32, #tpu.memory_space<vmem>>, %arg2: memref<12x4xf32, #tpu.memory_space<vmem>>, %arg3: memref<4x12xf32, #tpu.memory_space<vmem>>, %arg4: memref<16x128xf32, #tpu.memory_space<vmem>>, %arg5: memref<1x128xf32, #tpu.memory_space<vmem>>, %arg6: memref<128x128xf32, #tpu.memory_space<vmem>>, %arg7: memref<1x128xf32, #tpu.memory_space<vmem>>, %arg8: memref<128x128xf32, #tpu.memory_space<vmem>>, %arg9: memref<128x128xf32, #tpu.memory_space<vmem>>, %arg10: memref<1x128xf32, #tpu.memory_space<vmem>>, %arg11: memref<128x128xf32, #tpu.memory_space<vmem>>, %arg12: memref<1x128xf32, #tpu.memory_space<vmem>>, %arg13: memref<128x128xf32, #tpu.memory_space<vmem>>, %arg14: memref<1x128xf32, #tpu.memory_space<vmem>>, %arg15: memref<128x128xf32, #tpu.memory_space<vmem>>, %arg16: memref<1x128xf32, #tpu.memory_space<vmem>>, %arg17: memref<128x128xf32, #tpu.memory_space<vmem>>, %arg18: memref<128x128xf32, #tpu.memory_space<vmem>>, %arg19: memref<128x128xf32, #tpu.memory_space<vmem>>, %arg20: memref<1x128xf32, #tpu.memory_space<vmem>>, %arg21: memref<128x128xf32, #tpu.memory_space<vmem>>, %arg22: memref<1x128xf32, #tpu.memory_space<vmem>>, %arg23: memref<128x128xf32, #tpu.memory_space<vmem>>, %arg24: memref<1x128xf32, #tpu.memory_space<vmem>>, %arg25: memref<24x128xf32, #tpu.memory_space<vmem>>, %arg26: memref<8x128xf32, #tpu.memory_space<vmem>>, %arg27: memref<8x128xf32, #tpu.memory_space<vmem>>, %arg28: memref<8x128xf32, #tpu.memory_space<vmem>>, %arg29: memref<24x128xf32, #tpu.memory_space<vmem>>, %arg30: memref<24x128xf32, #tpu.memory_space<vmem>>) attributes {dimension_semantics = [], scalar_prefetch = 0 : i64, scratch_operands = 5 : i64, tpu.core_type = #tpu.core_type<tc>} {
    %c0 = arith.constant 0 : index
    %c0_0 = arith.constant 0 : index
    %0 = vector.load %arg1[%c0, %c0_0] : memref<12x4xf32, #tpu.memory_space<vmem>>, vector<12x4xf32>
    %c0_1 = arith.constant 0 : index
    %c0_2 = arith.constant 0 : index
    %1 = vector.load %arg2[%c0_1, %c0_2] : memref<12x4xf32, #tpu.memory_space<vmem>>, vector<12x4xf32>
    %c0_3 = arith.constant 0 : index
    %c0_4 = arith.constant 0 : index
    %2 = vector.load %arg3[%c0_3, %c0_4] : memref<4x12xf32, #tpu.memory_space<vmem>>, vector<4x12xf32>
    %c0_5 = arith.constant 0 : index
    %c0_6 = arith.constant 0 : index
    %3 = vector.load %arg0[%c0_5, %c0_6] : memref<8x16xf32, #tpu.memory_space<vmem>>, vector<8x16xf32>
    %c0_7 = arith.constant 0 : index
    %c0_8 = arith.constant 0 : index
    %4 = vector.load %arg4[%c0_7, %c0_8] : memref<16x128xf32, #tpu.memory_space<vmem>>, vector<16x128xf32>
    %c0_9 = arith.constant 0 : index
    %c0_10 = arith.constant 0 : index
    %5 = vector.load %arg5[%c0_9, %c0_10] : memref<1x128xf32, #tpu.memory_space<vmem>>, vector<1x128xf32>
    %c0_11 = arith.constant 0 : index
    %c0_12 = arith.constant 0 : index
    %6 = vector.load %arg6[%c0_11, %c0_12] : memref<128x128xf32, #tpu.memory_space<vmem>>, vector<128x128xf32>
    %c0_13 = arith.constant 0 : index
    %c0_14 = arith.constant 0 : index
    %7 = vector.load %arg7[%c0_13, %c0_14] : memref<1x128xf32, #tpu.memory_space<vmem>>, vector<1x128xf32>
    %cst = arith.constant dense<0.000000e+00> : vector<8x128xf32>
    %8 = tpu.matmul %3, %4, %cst {dimension_numbers = #tpu.dot_dimension_numbers<[1], [0], [0], [1], [0, 0, 1, 1], [], []>} : vector<8x16xf32>, vector<16x128xf32>, vector<8x128xf32> -> vector<8x128xf32>
    %9 = vector.broadcast %5 : vector<1x128xf32> to vector<8x128xf32>
    %10 = arith.addf %8, %9 : vector<8x128xf32>
    %cst_15 = arith.constant 0.000000e+00 : f32
    %11 = vector.broadcast %cst_15 : f32 to vector<8x128xf32>
    %12 = arith.cmpf ogt, %10, %11 : vector<8x128xf32>
    %cst_16 = arith.constant 0.000000e+00 : f32
    %13 = vector.broadcast %cst_16 : f32 to vector<8x128xf32>
    %14 = arith.minimumf %10, %13 : vector<8x128xf32>
    %15 = math.exp %14 : vector<8x128xf32>
    %cst_17 = arith.constant 1.000000e+00 : f32
    %16 = vector.broadcast %cst_17 : f32 to vector<8x128xf32>
    %17 = arith.subf %15, %16 : vector<8x128xf32>
    %18 = arith.select %12, %10, %17 : vector<8x128xi1>, vector<8x128xf32>
    %cst_18 = arith.constant dense<0.000000e+00> : vector<8x128xf32>
    %19 = tpu.matmul %18, %6, %cst_18 {dimension_numbers = #tpu.dot_dimension_numbers<[1], [0], [0], [1], [0, 0, 1, 1], [], []>} : vector<8x128xf32>, vector<128x128xf32>, vector<8x128xf32> -> vector<8x128xf32>
    %20 = vector.broadcast %7 : vector<1x128xf32> to vector<8x128xf32>
    %21 = arith.addf %19, %20 : vector<8x128xf32>
    %cst_19 = arith.constant 0.000000e+00 : f32
    %22 = vector.broadcast %cst_19 : f32 to vector<8x128xf32>
    %23 = arith.cmpf ogt, %21, %22 : vector<8x128xf32>
    %cst_20 = arith.constant 0.000000e+00 : f32
    %24 = vector.broadcast %cst_20 : f32 to vector<8x128xf32>
    %25 = arith.minimumf %21, %24 : vector<8x128xf32>
    %26 = math.exp %25 : vector<8x128xf32>
    %cst_21 = arith.constant 1.000000e+00 : f32
    %27 = vector.broadcast %cst_21 : f32 to vector<8x128xf32>
    %28 = arith.subf %26, %27 : vector<8x128xf32>
    %29 = arith.select %23, %21, %28 : vector<8x128xi1>, vector<8x128xf32>
    %cst_22 = arith.constant dense<0.000000e+00> : vector<128xf32>
    %30 = vector.multi_reduction <add>, %29, %cst_22 [0] : vector<8x128xf32> to vector<128xf32>
    %31 = vector.shape_cast %30 : vector<128xf32> to vector<1x128xf32>
    %32 = arith.mulf %29, %29 : vector<8x128xf32>
    %cst_23 = arith.constant dense<0.000000e+00> : vector<128xf32>
    %33 = vector.multi_reduction <add>, %32, %cst_23 [0] : vector<8x128xf32> to vector<128xf32>
    %34 = vector.shape_cast %33 : vector<128xf32> to vector<1x128xf32>
    %cst_24 = arith.constant 1.250000e-01 : f32
    %35 = vector.broadcast %cst_24 : f32 to vector<1x128xf32>
    %36 = arith.mulf %31, %35 : vector<1x128xf32>
    %cst_25 = arith.constant 1.250000e-01 : f32
    %37 = vector.broadcast %cst_25 : f32 to vector<1x128xf32>
    %38 = arith.mulf %34, %37 : vector<1x128xf32>
    %39 = arith.mulf %36, %36 : vector<1x128xf32>
    %40 = arith.subf %38, %39 : vector<1x128xf32>
    %cst_26 = arith.constant 0.000000e+00 : f32
    %41 = vector.broadcast %cst_26 : f32 to vector<1x128xf32>
    %42 = arith.maximumf %40, %41 : vector<1x128xf32>
    %43 = vector.broadcast %36 : vector<1x128xf32> to vector<8x128xf32>
    %44 = arith.subf %29, %43 : vector<8x128xf32>
    %cst_27 = arith.constant 9.99999974E-6 : f32
    %45 = vector.broadcast %cst_27 : f32 to vector<1x128xf32>
    %46 = arith.addf %42, %45 : vector<1x128xf32>
    %47 = math.rsqrt %46 : vector<1x128xf32>
    %48 = vector.broadcast %47 : vector<1x128xf32> to vector<8x128xf32>
    %49 = arith.mulf %44, %48 : vector<8x128xf32>
    %c0_28 = arith.constant 0 : index
    %c0_29 = arith.constant 0 : index
    %50 = vector.load %arg26[%c0_28, %c0_29] : memref<8x128xf32, #tpu.memory_space<vmem>>, vector<8x128xf32>
    tpu.vector_store %arg26[%c0_28, %c0_29], %49 {strides = array<i32>} : memref<8x128xf32, #tpu.memory_space<vmem>>, vector<8x128xf32>,
    %c0_30 = arith.constant 0 : index
    %c0_31 = arith.constant 0 : index
    %51 = vector.load %arg26[%c0_30, %c0_31] : memref<8x128xf32, #tpu.memory_space<vmem>>, vector<8x128xf32>
    %c0_32 = arith.constant 0 : index
    %c0_33 = arith.constant 0 : index
    %52 = vector.load %arg8[%c0_32, %c0_33] : memref<128x128xf32, #tpu.memory_space<vmem>>, vector<128x128xf32>
    %cst_34 = arith.constant dense<0.000000e+00> : vector<8x128xf32>
    %53 = tpu.matmul %51, %52, %cst_34 {dimension_numbers = #tpu.dot_dimension_numbers<[1], [0], [0], [1], [0, 0, 1, 1], [], []>} : vector<8x128xf32>, vector<128x128xf32>, vector<8x128xf32> -> vector<8x128xf32>
    %c0_35 = arith.constant 0 : index
    %c0_36 = arith.constant 0 : index
    %54 = vector.load %arg27[%c0_35, %c0_36] : memref<8x128xf32, #tpu.memory_space<vmem>>, vector<8x128xf32>
    tpu.vector_store %arg27[%c0_35, %c0_36], %53 {strides = array<i32>} : memref<8x128xf32, #tpu.memory_space<vmem>>, vector<8x128xf32>,
    %c0_37 = arith.constant 0 : index
    %c0_38 = arith.constant 0 : index
    %55 = vector.load %arg26[%c0_37, %c0_38] : memref<8x128xf32, #tpu.memory_space<vmem>>, vector<8x128xf32>
    %c0_39 = arith.constant 0 : index
    %c0_40 = arith.constant 0 : index
    %56 = vector.load %arg9[%c0_39, %c0_40] : memref<128x128xf32, #tpu.memory_space<vmem>>, vector<128x128xf32>
    %cst_41 = arith.constant dense<0.000000e+00> : vector<8x128xf32>
    %57 = tpu.matmul %55, %56, %cst_41 {dimension_numbers = #tpu.dot_dimension_numbers<[1], [0], [0], [1], [0, 0, 1, 1], [], []>} : vector<8x128xf32>, vector<128x128xf32>, vector<8x128xf32> -> vector<8x128xf32>
    %c0_42 = arith.constant 0 : index
    %c0_43 = arith.constant 0 : index
    %58 = vector.load %arg28[%c0_42, %c0_43] : memref<8x128xf32, #tpu.memory_space<vmem>>, vector<8x128xf32>
    tpu.vector_store %arg28[%c0_42, %c0_43], %57 {strides = array<i32>} : memref<8x128xf32, #tpu.memory_space<vmem>>, vector<8x128xf32>,
    %c0_44 = arith.constant 0 : index
    %c0_45 = arith.constant 0 : index
    %59 = vector.load %arg27[%c0_44, %c0_45] : memref<8x128xf32, #tpu.memory_space<vmem>>, vector<4x128xf32>
    %cst_46 = arith.constant dense<0.000000e+00> : vector<12x128xf32>
    %60 = tpu.matmul %0, %59, %cst_46 {dimension_numbers = #tpu.dot_dimension_numbers<[1], [0], [0], [1], [0, 0, 1, 1], [], []>} : vector<12x4xf32>, vector<4x128xf32>, vector<12x128xf32> -> vector<12x128xf32>
    %c0_47 = arith.constant 0 : index
    %c0_48 = arith.constant 0 : index
    %61 = vector.load %arg28[%c0_47, %c0_48] : memref<8x128xf32, #tpu.memory_space<vmem>>, vector<4x128xf32>
    %cst_49 = arith.constant dense<0.000000e+00> : vector<12x128xf32>
    %62 = tpu.matmul %1, %61, %cst_49 {dimension_numbers = #tpu.dot_dimension_numbers<[1], [0], [0], [1], [0, 0, 1, 1], [], []>} : vector<12x4xf32>, vector<4x128xf32>, vector<12x128xf32> -> vector<12x128xf32>
    %63 = arith.addf %60, %62 : vector<12x128xf32>
    %c0_50 = arith.constant 0 : index
    %c0_51 = arith.constant 0 : index
    %64 = vector.load %arg30[%c0_50, %c0_51] : memref<24x128xf32, #tpu.memory_space<vmem>>, vector<12x128xf32>
    tpu.vector_store %arg30[%c0_50, %c0_51], %63 {strides = array<i32>} : memref<24x128xf32, #tpu.memory_space<vmem>>, vector<12x128xf32>,
    %c4 = arith.constant 4 : index
    %c0_52 = arith.constant 0 : index
    %65 = vector.load %arg27[%c4, %c0_52] : memref<8x128xf32, #tpu.memory_space<vmem>>, vector<4x128xf32>
    %cst_53 = arith.constant dense<0.000000e+00> : vector<12x128xf32>
    %66 = tpu.matmul %0, %65, %cst_53 {dimension_numbers = #tpu.dot_dimension_numbers<[1], [0], [0], [1], [0, 0, 1, 1], [], []>} : vector<12x4xf32>, vector<4x128xf32>, vector<12x128xf32> -> vector<12x128xf32>
    %c4_54 = arith.constant 4 : index
    %c0_55 = arith.constant 0 : index
    %67 = vector.load %arg28[%c4_54, %c0_55] : memref<8x128xf32, #tpu.memory_space<vmem>>, vector<4x128xf32>
    %cst_56 = arith.constant dense<0.000000e+00> : vector<12x128xf32>
    %68 = tpu.matmul %1, %67, %cst_56 {dimension_numbers = #tpu.dot_dimension_numbers<[1], [0], [0], [1], [0, 0, 1, 1], [], []>} : vector<12x4xf32>, vector<4x128xf32>, vector<12x128xf32> -> vector<12x128xf32>
    %69 = arith.addf %66, %68 : vector<12x128xf32>
    %c12 = arith.constant 12 : index
    %c0_57 = arith.constant 0 : index
    %70 = vector.load %arg30[%c12, %c0_57] : memref<24x128xf32, #tpu.memory_space<vmem>>, vector<12x128xf32>
    tpu.vector_store %arg30[%c12, %c0_57], %69 {strides = array<i32>} : memref<24x128xf32, #tpu.memory_space<vmem>>, vector<12x128xf32>,
    %c0_58 = arith.constant 0 : index
    %c0_59 = arith.constant 0 : index
    %71 = vector.load %arg30[%c0_58, %c0_59] : memref<24x128xf32, #tpu.memory_space<vmem>>, vector<24x128xf32>
    %c0_60 = arith.constant 0 : index
    %c0_61 = arith.constant 0 : index
    %72 = vector.load %arg10[%c0_60, %c0_61] : memref<1x128xf32, #tpu.memory_space<vmem>>, vector<1x128xf32>
    %73 = vector.broadcast %72 : vector<1x128xf32> to vector<24x128xf32>
    %74 = arith.addf %71, %73 : vector<24x128xf32>
    %cst_62 = arith.constant 0.000000e+00 : f32
    %75 = vector.broadcast %cst_62 : f32 to vector<24x128xf32>
    %76 = arith.cmpf ogt, %74, %75 : vector<24x128xf32>
    %cst_63 = arith.constant 0.000000e+00 : f32
    %77 = vector.broadcast %cst_63 : f32 to vector<24x128xf32>
    %78 = arith.minimumf %74, %77 : vector<24x128xf32>
    %79 = math.exp %78 : vector<24x128xf32>
    %cst_64 = arith.constant 1.000000e+00 : f32
    %80 = vector.broadcast %cst_64 : f32 to vector<24x128xf32>
    %81 = arith.subf %79, %80 : vector<24x128xf32>
    %82 = arith.select %76, %74, %81 : vector<24x128xi1>, vector<24x128xf32>
    %c0_65 = arith.constant 0 : index
    %c0_66 = arith.constant 0 : index
    %83 = vector.load %arg11[%c0_65, %c0_66] : memref<128x128xf32, #tpu.memory_space<vmem>>, vector<128x128xf32>
    %cst_67 = arith.constant dense<0.000000e+00> : vector<24x128xf32>
    %84 = tpu.matmul %82, %83, %cst_67 {dimension_numbers = #tpu.dot_dimension_numbers<[1], [0], [0], [1], [0, 0, 1, 1], [], []>} : vector<24x128xf32>, vector<128x128xf32>, vector<24x128xf32> -> vector<24x128xf32>
    %c0_68 = arith.constant 0 : index
    %c0_69 = arith.constant 0 : index
    %85 = vector.load %arg12[%c0_68, %c0_69] : memref<1x128xf32, #tpu.memory_space<vmem>>, vector<1x128xf32>
    %86 = vector.broadcast %85 : vector<1x128xf32> to vector<24x128xf32>
    %87 = arith.addf %84, %86 : vector<24x128xf32>
    %cst_70 = arith.constant 0.000000e+00 : f32
    %88 = vector.broadcast %cst_70 : f32 to vector<24x128xf32>
    %89 = arith.cmpf ogt, %87, %88 : vector<24x128xf32>
    %cst_71 = arith.constant 0.000000e+00 : f32
    %90 = vector.broadcast %cst_71 : f32 to vector<24x128xf32>
    %91 = arith.minimumf %87, %90 : vector<24x128xf32>
    %92 = math.exp %91 : vector<24x128xf32>
    %cst_72 = arith.constant 1.000000e+00 : f32
    %93 = vector.broadcast %cst_72 : f32 to vector<24x128xf32>
    %94 = arith.subf %92, %93 : vector<24x128xf32>
    %95 = arith.select %89, %87, %94 : vector<24x128xi1>, vector<24x128xf32>
    %cst_73 = arith.constant dense<0.000000e+00> : vector<128xf32>
    %96 = vector.multi_reduction <add>, %95, %cst_73 [0] : vector<24x128xf32> to vector<128xf32>
    %97 = vector.shape_cast %96 : vector<128xf32> to vector<1x128xf32>
    %98 = arith.mulf %95, %95 : vector<24x128xf32>
    %cst_74 = arith.constant dense<0.000000e+00> : vector<128xf32>
    %99 = vector.multi_reduction <add>, %98, %cst_74 [0] : vector<24x128xf32> to vector<128xf32>
    %100 = vector.shape_cast %99 : vector<128xf32> to vector<1x128xf32>
    %cst_75 = arith.constant 0.0416666679 : f32
    %101 = vector.broadcast %cst_75 : f32 to vector<1x128xf32>
    %102 = arith.mulf %97, %101 : vector<1x128xf32>
    %cst_76 = arith.constant 0.0416666679 : f32
    %103 = vector.broadcast %cst_76 : f32 to vector<1x128xf32>
    %104 = arith.mulf %100, %103 : vector<1x128xf32>
    %105 = arith.mulf %102, %102 : vector<1x128xf32>
    %106 = arith.subf %104, %105 : vector<1x128xf32>
    %cst_77 = arith.constant 0.000000e+00 : f32
    %107 = vector.broadcast %cst_77 : f32 to vector<1x128xf32>
    %108 = arith.maximumf %106, %107 : vector<1x128xf32>
    %109 = vector.broadcast %102 : vector<1x128xf32> to vector<24x128xf32>
    %110 = arith.subf %95, %109 : vector<24x128xf32>
    %cst_78 = arith.constant 9.99999974E-6 : f32
    %111 = vector.broadcast %cst_78 : f32 to vector<1x128xf32>
    %112 = arith.addf %108, %111 : vector<1x128xf32>
    %113 = math.rsqrt %112 : vector<1x128xf32>
    %114 = vector.broadcast %113 : vector<1x128xf32> to vector<24x128xf32>
    %115 = arith.mulf %110, %114 : vector<24x128xf32>
    %c0_79 = arith.constant 0 : index
    %c0_80 = arith.constant 0 : index
    %116 = vector.load %arg29[%c0_79, %c0_80] : memref<24x128xf32, #tpu.memory_space<vmem>>, vector<24x128xf32>
    tpu.vector_store %arg29[%c0_79, %c0_80], %115 {strides = array<i32>} : memref<24x128xf32, #tpu.memory_space<vmem>>, vector<24x128xf32>,
    %c0_81 = arith.constant 0 : index
    %c0_82 = arith.constant 0 : index
    %117 = vector.load %arg29[%c0_81, %c0_82] : memref<24x128xf32, #tpu.memory_space<vmem>>, vector<12x128xf32>
    %cst_83 = arith.constant dense<0.000000e+00> : vector<4x128xf32>
    %118 = tpu.matmul %2, %117, %cst_83 {dimension_numbers = #tpu.dot_dimension_numbers<[1], [0], [0], [1], [0, 0, 1, 1], [], []>} : vector<4x12xf32>, vector<12x128xf32>, vector<4x128xf32> -> vector<4x128xf32>
    %cst_84 = arith.constant 2.500000e-01 : f32
    %119 = vector.broadcast %cst_84 : f32 to vector<4x128xf32>
    %120 = arith.mulf %118, %119 : vector<4x128xf32>
    %c0_85 = arith.constant 0 : index
    %c0_86 = arith.constant 0 : index
    %121 = vector.load %arg26[%c0_85, %c0_86] : memref<8x128xf32, #tpu.memory_space<vmem>>, vector<4x128xf32>
    tpu.vector_store %arg26[%c0_85, %c0_86], %120 {strides = array<i32>} : memref<8x128xf32, #tpu.memory_space<vmem>>, vector<4x128xf32>,
    %c12_87 = arith.constant 12 : index
    %c0_88 = arith.constant 0 : index
    %122 = vector.load %arg29[%c12_87, %c0_88] : memref<24x128xf32, #tpu.memory_space<vmem>>, vector<12x128xf32>
    %cst_89 = arith.constant dense<0.000000e+00> : vector<4x128xf32>
    %123 = tpu.matmul %2, %122, %cst_89 {dimension_numbers = #tpu.dot_dimension_numbers<[1], [0], [0], [1], [0, 0, 1, 1], [], []>} : vector<4x12xf32>, vector<12x128xf32>, vector<4x128xf32> -> vector<4x128xf32>
    %cst_90 = arith.constant 2.500000e-01 : f32
    %124 = vector.broadcast %cst_90 : f32 to vector<4x128xf32>
    %125 = arith.mulf %123, %124 : vector<4x128xf32>
    %c4_91 = arith.constant 4 : index
    %c0_92 = arith.constant 0 : index
    %126 = vector.load %arg26[%c4_91, %c0_92] : memref<8x128xf32, #tpu.memory_space<vmem>>, vector<4x128xf32>
    tpu.vector_store %arg26[%c4_91, %c0_92], %125 {strides = array<i32>} : memref<8x128xf32, #tpu.memory_space<vmem>>, vector<4x128xf32>,
    %c0_93 = arith.constant 0 : index
    %c0_94 = arith.constant 0 : index
    %127 = vector.load %arg26[%c0_93, %c0_94] : memref<8x128xf32, #tpu.memory_space<vmem>>, vector<8x128xf32>
    %c0_95 = arith.constant 0 : index
    %c0_96 = arith.constant 0 : index
    %128 = vector.load %arg13[%c0_95, %c0_96] : memref<128x128xf32, #tpu.memory_space<vmem>>, vector<128x128xf32>
    %c0_97 = arith.constant 0 : index
    %c0_98 = arith.constant 0 : index
    %129 = vector.load %arg14[%c0_97, %c0_98] : memref<1x128xf32, #tpu.memory_space<vmem>>, vector<1x128xf32>
    %c0_99 = arith.constant 0 : index
    %c0_100 = arith.constant 0 : index
    %130 = vector.load %arg15[%c0_99, %c0_100] : memref<128x128xf32, #tpu.memory_space<vmem>>, vector<128x128xf32>
    %c0_101 = arith.constant 0 : index
    %c0_102 = arith.constant 0 : index
    %131 = vector.load %arg16[%c0_101, %c0_102] : memref<1x128xf32, #tpu.memory_space<vmem>>, vector<1x128xf32>
    %cst_103 = arith.constant dense<0.000000e+00> : vector<8x128xf32>
    %132 = tpu.matmul %127, %128, %cst_103 {dimension_numbers = #tpu.dot_dimension_numbers<[1], [0], [0], [1], [0, 0, 1, 1], [], []>} : vector<8x128xf32>, vector<128x128xf32>, vector<8x128xf32> -> vector<8x128xf32>
    %133 = vector.broadcast %129 : vector<1x128xf32> to vector<8x128xf32>
    %134 = arith.addf %132, %133 : vector<8x128xf32>
    %cst_104 = arith.constant 0.000000e+00 : f32
    %135 = vector.broadcast %cst_104 : f32 to vector<8x128xf32>
    %136 = arith.cmpf ogt, %134, %135 : vector<8x128xf32>
    %cst_105 = arith.constant 0.000000e+00 : f32
    %137 = vector.broadcast %cst_105 : f32 to vector<8x128xf32>
    %138 = arith.minimumf %134, %137 : vector<8x128xf32>
    %139 = math.exp %138 : vector<8x128xf32>
    %cst_106 = arith.constant 1.000000e+00 : f32
    %140 = vector.broadcast %cst_106 : f32 to vector<8x128xf32>
    %141 = arith.subf %139, %140 : vector<8x128xf32>
    %142 = arith.select %136, %134, %141 : vector<8x128xi1>, vector<8x128xf32>
    %cst_107 = arith.constant dense<0.000000e+00> : vector<8x128xf32>
    %143 = tpu.matmul %142, %130, %cst_107 {dimension_numbers = #tpu.dot_dimension_numbers<[1], [0], [0], [1], [0, 0, 1, 1], [], []>} : vector<8x128xf32>, vector<128x128xf32>, vector<8x128xf32> -> vector<8x128xf32>
    %144 = vector.broadcast %131 : vector<1x128xf32> to vector<8x128xf32>
    %145 = arith.addf %143, %144 : vector<8x128xf32>
    %cst_108 = arith.constant 0.000000e+00 : f32
    %146 = vector.broadcast %cst_108 : f32 to vector<8x128xf32>
    %147 = arith.cmpf ogt, %145, %146 : vector<8x128xf32>
    %cst_109 = arith.constant 0.000000e+00 : f32
    %148 = vector.broadcast %cst_109 : f32 to vector<8x128xf32>
    %149 = arith.minimumf %145, %148 : vector<8x128xf32>
    %150 = math.exp %149 : vector<8x128xf32>
    %cst_110 = arith.constant 1.000000e+00 : f32
    %151 = vector.broadcast %cst_110 : f32 to vector<8x128xf32>
    %152 = arith.subf %150, %151 : vector<8x128xf32>
    %153 = arith.select %147, %145, %152 : vector<8x128xi1>, vector<8x128xf32>
    %cst_111 = arith.constant dense<0.000000e+00> : vector<128xf32>
    %154 = vector.multi_reduction <add>, %153, %cst_111 [0] : vector<8x128xf32> to vector<128xf32>
    %155 = vector.shape_cast %154 : vector<128xf32> to vector<1x128xf32>
    %156 = arith.mulf %153, %153 : vector<8x128xf32>
    %cst_112 = arith.constant dense<0.000000e+00> : vector<128xf32>
    %157 = vector.multi_reduction <add>, %156, %cst_112 [0] : vector<8x128xf32> to vector<128xf32>
    %158 = vector.shape_cast %157 : vector<128xf32> to vector<1x128xf32>
    %cst_113 = arith.constant 1.250000e-01 : f32
    %159 = vector.broadcast %cst_113 : f32 to vector<1x128xf32>
    %160 = arith.mulf %155, %159 : vector<1x128xf32>
    %cst_114 = arith.constant 1.250000e-01 : f32
    %161 = vector.broadcast %cst_114 : f32 to vector<1x128xf32>
    %162 = arith.mulf %158, %161 : vector<1x128xf32>
    %163 = arith.mulf %160, %160 : vector<1x128xf32>
    %164 = arith.subf %162, %163 : vector<1x128xf32>
    %cst_115 = arith.constant 0.000000e+00 : f32
    %165 = vector.broadcast %cst_115 : f32 to vector<1x128xf32>
    %166 = arith.maximumf %164, %165 : vector<1x128xf32>
    %167 = vector.broadcast %160 : vector<1x128xf32> to vector<8x128xf32>
    %168 = arith.subf %153, %167 : vector<8x128xf32>
    %cst_116 = arith.constant 9.99999974E-6 : f32
    %169 = vector.broadcast %cst_116 : f32 to vector<1x128xf32>
    %170 = arith.addf %166, %169 : vector<1x128xf32>
    %171 = math.rsqrt %170 : vector<1x128xf32>
    %172 = vector.broadcast %171 : vector<1x128xf32> to vector<8x128xf32>
    %173 = arith.mulf %168, %172 : vector<8x128xf32>
    %c0_117 = arith.constant 0 : index
    %c0_118 = arith.constant 0 : index
    %174 = vector.load %arg26[%c0_117, %c0_118] : memref<8x128xf32, #tpu.memory_space<vmem>>, vector<8x128xf32>
    tpu.vector_store %arg26[%c0_117, %c0_118], %173 {strides = array<i32>} : memref<8x128xf32, #tpu.memory_space<vmem>>, vector<8x128xf32>,
    %c0_119 = arith.constant 0 : index
    %c0_120 = arith.constant 0 : index
    %175 = vector.load %arg26[%c0_119, %c0_120] : memref<8x128xf32, #tpu.memory_space<vmem>>, vector<8x128xf32>
    %c0_121 = arith.constant 0 : index
    %c0_122 = arith.constant 0 : index
    %176 = vector.load %arg17[%c0_121, %c0_122] : memref<128x128xf32, #tpu.memory_space<vmem>>, vector<128x128xf32>
    %cst_123 = arith.constant dense<0.000000e+00> : vector<8x128xf32>
    %177 = tpu.matmul %175, %176, %cst_123 {dimension_numbers = #tpu.dot_dimension_numbers<[1], [0], [0], [1], [0, 0, 1, 1], [], []>} : vector<8x128xf32>, vector<128x128xf32>, vector<8x128xf32> -> vector<8x128xf32>
    %c0_124 = arith.constant 0 : index
    %c0_125 = arith.constant 0 : index
    %178 = vector.load %arg27[%c0_124, %c0_125] : memref<8x128xf32, #tpu.memory_space<vmem>>, vector<8x128xf32>
    tpu.vector_store %arg27[%c0_124, %c0_125], %177 {strides = array<i32>} : memref<8x128xf32, #tpu.memory_space<vmem>>, vector<8x128xf32>,
    %c0_126 = arith.constant 0 : index
    %c0_127 = arith.constant 0 : index
    %179 = vector.load %arg26[%c0_126, %c0_127] : memref<8x128xf32, #tpu.memory_space<vmem>>, vector<8x128xf32>
    %c0_128 = arith.constant 0 : index
    %c0_129 = arith.constant 0 : index
    %180 = vector.load %arg18[%c0_128, %c0_129] : memref<128x128xf32, #tpu.memory_space<vmem>>, vector<128x128xf32>
    %cst_130 = arith.constant dense<0.000000e+00> : vector<8x128xf32>
    %181 = tpu.matmul %179, %180, %cst_130 {dimension_numbers = #tpu.dot_dimension_numbers<[1], [0], [0], [1], [0, 0, 1, 1], [], []>} : vector<8x128xf32>, vector<128x128xf32>, vector<8x128xf32> -> vector<8x128xf32>
    %c0_131 = arith.constant 0 : index
    %c0_132 = arith.constant 0 : index
    %182 = vector.load %arg28[%c0_131, %c0_132] : memref<8x128xf32, #tpu.memory_space<vmem>>, vector<8x128xf32>
    tpu.vector_store %arg28[%c0_131, %c0_132], %181 {strides = array<i32>} : memref<8x128xf32, #tpu.memory_space<vmem>>, vector<8x128xf32>,
    %c0_133 = arith.constant 0 : index
    %c0_134 = arith.constant 0 : index
    %183 = vector.load %arg27[%c0_133, %c0_134] : memref<8x128xf32, #tpu.memory_space<vmem>>, vector<4x128xf32>
    %cst_135 = arith.constant dense<0.000000e+00> : vector<12x128xf32>
    %184 = tpu.matmul %0, %183, %cst_135 {dimension_numbers = #tpu.dot_dimension_numbers<[1], [0], [0], [1], [0, 0, 1, 1], [], []>} : vector<12x4xf32>, vector<4x128xf32>, vector<12x128xf32> -> vector<12x128xf32>
    %c0_136 = arith.constant 0 : index
    %c0_137 = arith.constant 0 : index
    %185 = vector.load %arg28[%c0_136, %c0_137] : memref<8x128xf32, #tpu.memory_space<vmem>>, vector<4x128xf32>
    %cst_138 = arith.constant dense<0.000000e+00> : vector<12x128xf32>
    %186 = tpu.matmul %1, %185, %cst_138 {dimension_numbers = #tpu.dot_dimension_numbers<[1], [0], [0], [1], [0, 0, 1, 1], [], []>} : vector<12x4xf32>, vector<4x128xf32>, vector<12x128xf32> -> vector<12x128xf32>
    %187 = arith.addf %184, %186 : vector<12x128xf32>
    %c0_139 = arith.constant 0 : index
    %c0_140 = arith.constant 0 : index
    %188 = vector.load %arg30[%c0_139, %c0_140] : memref<24x128xf32, #tpu.memory_space<vmem>>, vector<12x128xf32>
    tpu.vector_store %arg30[%c0_139, %c0_140], %187 {strides = array<i32>} : memref<24x128xf32, #tpu.memory_space<vmem>>, vector<12x128xf32>,
    %c4_141 = arith.constant 4 : index
    %c0_142 = arith.constant 0 : index
    %189 = vector.load %arg27[%c4_141, %c0_142] : memref<8x128xf32, #tpu.memory_space<vmem>>, vector<4x128xf32>
    %cst_143 = arith.constant dense<0.000000e+00> : vector<12x128xf32>
    %190 = tpu.matmul %0, %189, %cst_143 {dimension_numbers = #tpu.dot_dimension_numbers<[1], [0], [0], [1], [0, 0, 1, 1], [], []>} : vector<12x4xf32>, vector<4x128xf32>, vector<12x128xf32> -> vector<12x128xf32>
    %c4_144 = arith.constant 4 : index
    %c0_145 = arith.constant 0 : index
    %191 = vector.load %arg28[%c4_144, %c0_145] : memref<8x128xf32, #tpu.memory_space<vmem>>, vector<4x128xf32>
    %cst_146 = arith.constant dense<0.000000e+00> : vector<12x128xf32>
    %192 = tpu.matmul %1, %191, %cst_146 {dimension_numbers = #tpu.dot_dimension_numbers<[1], [0], [0], [1], [0, 0, 1, 1], [], []>} : vector<12x4xf32>, vector<4x128xf32>, vector<12x128xf32> -> vector<12x128xf32>
    %193 = arith.addf %190, %192 : vector<12x128xf32>
    %c12_147 = arith.constant 12 : index
    %c0_148 = arith.constant 0 : index
    %194 = vector.load %arg30[%c12_147, %c0_148] : memref<24x128xf32, #tpu.memory_space<vmem>>, vector<12x128xf32>
    tpu.vector_store %arg30[%c12_147, %c0_148], %193 {strides = array<i32>} : memref<24x128xf32, #tpu.memory_space<vmem>>, vector<12x128xf32>,
    %c0_149 = arith.constant 0 : index
    %c0_150 = arith.constant 0 : index
    %195 = vector.load %arg30[%c0_149, %c0_150] : memref<24x128xf32, #tpu.memory_space<vmem>>, vector<24x128xf32>
    %c0_151 = arith.constant 0 : index
    %c0_152 = arith.constant 0 : index
    %196 = vector.load %arg29[%c0_151, %c0_152] : memref<24x128xf32, #tpu.memory_space<vmem>>, vector<24x128xf32>
    %c0_153 = arith.constant 0 : index
    %c0_154 = arith.constant 0 : index
    %197 = vector.load %arg19[%c0_153, %c0_154] : memref<128x128xf32, #tpu.memory_space<vmem>>, vector<128x128xf32>
    %cst_155 = arith.constant dense<0.000000e+00> : vector<24x128xf32>
    %198 = tpu.matmul %196, %197, %cst_155 {dimension_numbers = #tpu.dot_dimension_numbers<[1], [0], [0], [1], [0, 0, 1, 1], [], []>} : vector<24x128xf32>, vector<128x128xf32>, vector<24x128xf32> -> vector<24x128xf32>
    %199 = arith.addf %195, %198 : vector<24x128xf32>
    %c0_156 = arith.constant 0 : index
    %c0_157 = arith.constant 0 : index
    %200 = vector.load %arg20[%c0_156, %c0_157] : memref<1x128xf32, #tpu.memory_space<vmem>>, vector<1x128xf32>
    %201 = vector.broadcast %200 : vector<1x128xf32> to vector<24x128xf32>
    %202 = arith.addf %199, %201 : vector<24x128xf32>
    %cst_158 = arith.constant 0.000000e+00 : f32
    %203 = vector.broadcast %cst_158 : f32 to vector<24x128xf32>
    %204 = arith.cmpf ogt, %202, %203 : vector<24x128xf32>
    %cst_159 = arith.constant 0.000000e+00 : f32
    %205 = vector.broadcast %cst_159 : f32 to vector<24x128xf32>
    %206 = arith.minimumf %202, %205 : vector<24x128xf32>
    %207 = math.exp %206 : vector<24x128xf32>
    %cst_160 = arith.constant 1.000000e+00 : f32
    %208 = vector.broadcast %cst_160 : f32 to vector<24x128xf32>
    %209 = arith.subf %207, %208 : vector<24x128xf32>
    %210 = arith.select %204, %202, %209 : vector<24x128xi1>, vector<24x128xf32>
    %c0_161 = arith.constant 0 : index
    %c0_162 = arith.constant 0 : index
    %211 = vector.load %arg21[%c0_161, %c0_162] : memref<128x128xf32, #tpu.memory_space<vmem>>, vector<128x128xf32>
    %cst_163 = arith.constant dense<0.000000e+00> : vector<24x128xf32>
    %212 = tpu.matmul %210, %211, %cst_163 {dimension_numbers = #tpu.dot_dimension_numbers<[1], [0], [0], [1], [0, 0, 1, 1], [], []>} : vector<24x128xf32>, vector<128x128xf32>, vector<24x128xf32> -> vector<24x128xf32>
    %c0_164 = arith.constant 0 : index
    %c0_165 = arith.constant 0 : index
    %213 = vector.load %arg22[%c0_164, %c0_165] : memref<1x128xf32, #tpu.memory_space<vmem>>, vector<1x128xf32>
    %214 = vector.broadcast %213 : vector<1x128xf32> to vector<24x128xf32>
    %215 = arith.addf %212, %214 : vector<24x128xf32>
    %cst_166 = arith.constant 0.000000e+00 : f32
    %216 = vector.broadcast %cst_166 : f32 to vector<24x128xf32>
    %217 = arith.cmpf ogt, %215, %216 : vector<24x128xf32>
    %cst_167 = arith.constant 0.000000e+00 : f32
    %218 = vector.broadcast %cst_167 : f32 to vector<24x128xf32>
    %219 = arith.minimumf %215, %218 : vector<24x128xf32>
    %220 = math.exp %219 : vector<24x128xf32>
    %cst_168 = arith.constant 1.000000e+00 : f32
    %221 = vector.broadcast %cst_168 : f32 to vector<24x128xf32>
    %222 = arith.subf %220, %221 : vector<24x128xf32>
    %223 = arith.select %217, %215, %222 : vector<24x128xi1>, vector<24x128xf32>
    %cst_169 = arith.constant dense<0.000000e+00> : vector<128xf32>
    %224 = vector.multi_reduction <add>, %223, %cst_169 [0] : vector<24x128xf32> to vector<128xf32>
    %225 = vector.shape_cast %224 : vector<128xf32> to vector<1x128xf32>
    %226 = arith.mulf %223, %223 : vector<24x128xf32>
    %cst_170 = arith.constant dense<0.000000e+00> : vector<128xf32>
    %227 = vector.multi_reduction <add>, %226, %cst_170 [0] : vector<24x128xf32> to vector<128xf32>
    %228 = vector.shape_cast %227 : vector<128xf32> to vector<1x128xf32>
    %cst_171 = arith.constant 0.0416666679 : f32
    %229 = vector.broadcast %cst_171 : f32 to vector<1x128xf32>
    %230 = arith.mulf %225, %229 : vector<1x128xf32>
    %cst_172 = arith.constant 0.0416666679 : f32
    %231 = vector.broadcast %cst_172 : f32 to vector<1x128xf32>
    %232 = arith.mulf %228, %231 : vector<1x128xf32>
    %233 = arith.mulf %230, %230 : vector<1x128xf32>
    %234 = arith.subf %232, %233 : vector<1x128xf32>
    %cst_173 = arith.constant 0.000000e+00 : f32
    %235 = vector.broadcast %cst_173 : f32 to vector<1x128xf32>
    %236 = arith.maximumf %234, %235 : vector<1x128xf32>
    %237 = vector.broadcast %230 : vector<1x128xf32> to vector<24x128xf32>
    %238 = arith.subf %223, %237 : vector<24x128xf32>
    %cst_174 = arith.constant 9.99999974E-6 : f32
    %239 = vector.broadcast %cst_174 : f32 to vector<1x128xf32>
    %240 = arith.addf %236, %239 : vector<1x128xf32>
    %241 = math.rsqrt %240 : vector<1x128xf32>
    %242 = vector.broadcast %241 : vector<1x128xf32> to vector<24x128xf32>
    %243 = arith.mulf %238, %242 : vector<24x128xf32>
    %c0_175 = arith.constant 0 : index
    %c0_176 = arith.constant 0 : index
    %244 = vector.load %arg23[%c0_175, %c0_176] : memref<128x128xf32, #tpu.memory_space<vmem>>, vector<128x128xf32>
    %cst_177 = arith.constant dense<0.000000e+00> : vector<24x128xf32>
    %245 = tpu.matmul %243, %244, %cst_177 {dimension_numbers = #tpu.dot_dimension_numbers<[1], [0], [0], [1], [0, 0, 1, 1], [], []>} : vector<24x128xf32>, vector<128x128xf32>, vector<24x128xf32> -> vector<24x128xf32>
    %c0_178 = arith.constant 0 : index
    %c0_179 = arith.constant 0 : index
    %246 = vector.load %arg24[%c0_178, %c0_179] : memref<1x128xf32, #tpu.memory_space<vmem>>, vector<1x128xf32>
    %247 = vector.broadcast %246 : vector<1x128xf32> to vector<24x128xf32>
    %248 = arith.addf %245, %247 : vector<24x128xf32>
    %c0_180 = arith.constant 0 : index
    %c0_181 = arith.constant 0 : index
    %249 = vector.load %arg25[%c0_180, %c0_181] : memref<24x128xf32, #tpu.memory_space<vmem>>, vector<24x128xf32>
    tpu.vector_store %arg25[%c0_180, %c0_181], %248 {strides = array<i32>} : memref<24x128xf32, #tpu.memory_space<vmem>>, vector<24x128xf32>,
    return
  }
}

</mosaic_0001>

<llo_original>
// kernel: mlp_encoder_forward.1
$region0: #{mlp_encoder_forward.1}
  #allocation0 [shape = 'u32[]', space=smem, size = 0x4, offset = 0x4, fixed_abs, tag = 'smem constant byte address 0x4 - core index']
  #allocation1 [shape = 'u32[144,128]{1,0:T(1,128)}', space=vmem, size = 0x12000, scoped, tag = 'internal scratch']
  #allocation2 [shape = 'f32[8,128]{1,0:T(8,128)}', space=vmem, size = 0x1000, scoped, tag = 'scratch operand']
  #allocation3 [shape = 'f32[8,128]{1,0:T(8,128)}', space=vmem, size = 0x1000, scoped, tag = 'scratch operand']
  #allocation4 [shape = 'f32[8,128]{1,0:T(8,128)}', space=vmem, size = 0x1000, scoped, tag = 'scratch operand']
  #allocation5 [shape = 'f32[24,128]{1,0:T(8,128)}', space=vmem, size = 0x3000, scoped, tag = 'scratch operand']
  #allocation6 [shape = 'f32[24,128]{1,0:T(8,128)}', space=vmem, size = 0x3000, scoped, tag = 'scratch operand']
  %s0 = inlined_call_operand.vmem [shape: f32[8,16], index: 0, kind: input, shape index: {}]
  %s1 = inlined_call_operand.vmem [shape: f32[12,4], index: 1, kind: input, shape index: {}]
  %s2 = inlined_call_operand.vmem [shape: f32[12,4], index: 2, kind: input, shape index: {}]
  %s3 = inlined_call_operand.vmem [shape: f32[4,12], index: 3, kind: input, shape index: {}]
  %s4 = inlined_call_operand.vmem [shape: f32[16,128], index: 4, kind: input, shape index: {}]
  %s5 = inlined_call_operand.vmem [shape: f32[1,128], index: 5, kind: input, shape index: {}]
  %s6 = inlined_call_operand.vmem [shape: f32[128,128], index: 6, kind: input, shape index: {}]
  %s7 = inlined_call_operand.vmem [shape: f32[1,128], index: 7, kind: input, shape index: {}]
  %s8 = inlined_call_operand.hbm [shape: f32[128,128], index: 8, kind: input, shape index: {}]
  %s9 = inlined_call_operand.hbm [shape: f32[128,128], index: 9, kind: input, shape index: {}]
  %s10 = inlined_call_operand.vmem [shape: f32[1,128], index: 10, kind: input, shape index: {}]
  %s11 = inlined_call_operand.hbm [shape: f32[128,128], index: 11, kind: input, shape index: {}]
  %s12 = inlined_call_operand.vmem [shape: f32[1,128], index: 12, kind: input, shape index: {}]
  %s13 = inlined_call_operand.hbm [shape: f32[128,128], index: 13, kind: input, shape index: {}]
  %s14 = inlined_call_operand.vmem [shape: f32[1,128], index: 14, kind: input, shape index: {}]
  %s15 = inlined_call_operand.hbm [shape: f32[128,128], index: 15, kind: input, shape index: {}]
  %s16 = inlined_call_operand.vmem [shape: f32[1,128], index: 16, kind: input, shape index: {}]
  %s17 = inlined_call_operand.hbm [shape: f32[128,128], index: 17, kind: input, shape index: {}]
  %s18 = inlined_call_operand.hbm [shape: f32[128,128], index: 18, kind: input, shape index: {}]
  %s19 = inlined_call_operand.hbm [shape: f32[128,128], index: 19, kind: input, shape index: {}]
  %s20 = inlined_call_operand.vmem [shape: f32[1,128], index: 20, kind: input, shape index: {}]
  %s21 = inlined_call_operand.hbm [shape: f32[128,128], index: 21, kind: input, shape index: {}]
  %s22 = inlined_call_operand.vmem [shape: f32[1,128], index: 22, kind: input, shape index: {}]
  %s23 = inlined_call_operand.hbm [shape: f32[128,128], index: 23, kind: input, shape index: {}]
  %s24 = inlined_call_operand.vmem [shape: f32[1,128], index: 24, kind: input, shape index: {}]
  %s25 = inlined_call_operand.vmem [shape: f32[24,128], index: 25, kind: output, shape index: {}]
  %s26 = sld [smem:[#allocation0]]
  $region150: #{mlp_encoder_forward.1} parent=0
    _
  %s28 = ssub.s32 1, %s26
  %s29 = scalar_select 0, %s28, %s26
  $region1: #{mlp_encoder_forward.1} parent=0
    #allocation7 [shape = 'u8[65536]{0}', space=vmem, size = 0x10000, scoped, tag = 'input window, operand 8, single buffered']
    #allocation8 [shape = 's32[1]{0}', space=sflag, size = 0x4, scoped, tag = 'scoped memory for mlp_encoder_forward.1']
    #allocation9 [shape = 'u8[65536]{0}', space=vmem, size = 0x10000, scoped, tag = 'input window, operand 9, single buffered']
    #allocation10 [shape = 's32[1]{0}', space=sflag, size = 0x4, scoped, tag = 'scoped memory for mlp_encoder_forward.1']
    #allocation11 [shape = 'u8[65536]{0}', space=vmem, size = 0x10000, scoped, tag = 'input window, operand 11, single buffered']
    #allocation12 [shape = 'u8[65536]{0}', space=vmem, size = 0x10000, scoped, tag = 'input window, operand 13, single buffered']
    #allocation13 [shape = 's32[1]{0}', space=sflag, size = 0x4, scoped, tag = 'scoped memory for mlp_encoder_forward.1']
    #allocation14 [shape = 'u8[65536]{0}', space=vmem, size = 0x10000, scoped, tag = 'input window, operand 15, single buffered']
    #allocation15 [shape = 'u8[65536]{0}', space=vmem, size = 0x10000, scoped, tag = 'input window, operand 17, single buffered']
    #allocation16 [shape = 's32[1]{0}', space=sflag, size = 0x4, scoped, tag = 'scoped memory for mlp_encoder_forward.1']
    #allocation17 [shape = 'u8[65536]{0}', space=vmem, size = 0x10000, scoped, tag = 'input window, operand 18, single buffered']
    #allocation18 [shape = 'u8[65536]{0}', space=vmem, size = 0x10000, scoped, tag = 'input window, operand 19, single buffered']
    #allocation19 [shape = 's32[1]{0}', space=sflag, size = 0x4, scoped, tag = 'scoped memory for mlp_encoder_forward.1']
    #allocation20 [shape = 'u8[65536]{0}', space=vmem, size = 0x10000, scoped, tag = 'input window, operand 21, single buffered']
    #allocation21 [shape = 'u8[65536]{0}', space=vmem, size = 0x10000, scoped, tag = 'input window, operand 23, single buffered']
    #allocation22 [shape = 's32[1]{0}', space=sflag, size = 0x4, scoped, tag = 'scoped memory for mlp_encoder_forward.1']
    %30 = vsyncpa [#allocation8], 0
    %31 = vsyncpa [#allocation10], 0
    %32 = vsyncpa [#allocation13], 0
    %33 = vsyncpa [#allocation16], 0
    %34 = vsyncpa [#allocation19], 0
    %35 = vsyncpa [#allocation22], 0
    // Predicated region
    $region2: #{mlp_encoder_forward.1} parent=1 // pred_check
      _
    $region3: #{mlp_encoder_forward.1} parent=1 // pred_check_branch
      %37 = sbr.rel (0) target = $region5
    $region4: #{mlp_encoder_forward.1} parent=1 // pred_region
      _
    $region5: #{mlp_encoder_forward.1} parent=1 // pred_fallthru
      _
    // Predicated region
    $region6: #{mlp_encoder_forward.1} parent=1 // pred_check
      _
    $region7: #{mlp_encoder_forward.1} parent=1 // pred_check_branch
      %39 = sbr.rel (0) target = $region9
    $region8: #{mlp_encoder_forward.1} parent=1 // pred_region
      _
    $region9: #{mlp_encoder_forward.1} parent=1 // pred_fallthru
      _
    // Predicated region
    $region10: #{mlp_encoder_forward.1} parent=1 // pred_check
      _
    $region11: #{mlp_encoder_forward.1} parent=1 // pred_check_branch
      %41 = sbr.rel (0) target = $region13
    $region12: #{mlp_encoder_forward.1} parent=1 // pred_region
      _
    $region13: #{mlp_encoder_forward.1} parent=1 // pred_fallthru
      _
    // Predicated region
    $region14: #{mlp_encoder_forward.1} parent=1 // pred_check
      _
    $region15: #{mlp_encoder_forward.1} parent=1 // pred_check_branch
      %43 = sbr.rel (0) target = $region17
    $region16: #{mlp_encoder_forward.1} parent=1 // pred_region
      _
    $region17: #{mlp_encoder_forward.1} parent=1 // pred_fallthru
      _
    // Predicated region
    $region18: #{mlp_encoder_forward.1} parent=1 // pred_check
      _
    $region19: #{mlp_encoder_forward.1} parent=1 // pred_check_branch
      %45 = sbr.rel (0) target = $region21
    $region20: #{mlp_encoder_forward.1} parent=1 // pred_region
      _
    $region21: #{mlp_encoder_forward.1} parent=1 // pred_fallthru
      _
    // Predicated region
    $region22: #{mlp_encoder_forward.1} parent=1 // pred_check
      _
    $region23: #{mlp_encoder_forward.1} parent=1 // pred_check_branch
      %47 = sbr.rel (0) target = $region25
    $region24: #{mlp_encoder_forward.1} parent=1 // pred_region
      _
    $region25: #{mlp_encoder_forward.1} parent=1 // pred_fallthru
      _
    // Predicated region
    $region26: #{mlp_encoder_forward.1} parent=1 // pred_check
      _
    $region27: #{mlp_encoder_forward.1} parent=1 // pred_check_branch
      %49 = sbr.rel (0) target = $region29
    $region28: #{mlp_encoder_forward.1} parent=1 // pred_region
      _
    $region29: #{mlp_encoder_forward.1} parent=1 // pred_fallthru
      _
    // Predicated region
    $region30: #{mlp_encoder_forward.1} parent=1 // pred_check
      _
    $region31: #{mlp_encoder_forward.1} parent=1 // pred_check_branch
      %51 = sbr.rel (0) target = $region33
    $region32: #{mlp_encoder_forward.1} parent=1 // pred_region
      _
    $region33: #{mlp_encoder_forward.1} parent=1 // pred_fallthru
      _
    // Predicated region
    $region34: #{mlp_encoder_forward.1} parent=1 // pred_check
      _
    $region35: #{mlp_encoder_forward.1} parent=1 // pred_check_branch
      %53 = sbr.rel (0) target = $region37
    $region36: #{mlp_encoder_forward.1} parent=1 // pred_region
      %s55 = ssub.s32 2048, 2048
      %56 = vsyncadd [#allocation8], %s55
      %s57 = sshll.u32 [#allocation7], 4
      %s58 = int_to_ptr.vmem [resolvable:$true] %s57
      %63 = dma.hbm_to_vmem [thread:$0]  %s8, 2048, %s58, [#allocation8], 128, 128, 8
    $region37: #{mlp_encoder_forward.1} parent=1 // pred_fallthru
      _
    // Predicated region
    $region38: #{mlp_encoder_forward.1} parent=1 // pred_check
      _
    $region39: #{mlp_encoder_forward.1} parent=1 // pred_check_branch
      %65 = sbr.rel (0) target = $region41
    $region40: #{mlp_encoder_forward.1} parent=1 // pred_region
      %s67 = ssub.s32 2048, 2048
      %68 = vsyncadd [#allocation10], %s67
      %s69 = sshll.u32 [#allocation9], 4
      %s70 = int_to_ptr.vmem [resolvable:$true] %s69
      %75 = dma.hbm_to_vmem [thread:$0]  %s9, 2048, %s70, [#allocation10], 128, 128, 8
    $region41: #{mlp_encoder_forward.1} parent=1 // pred_fallthru
      _
    // Predicated region
    $region42: #{mlp_encoder_forward.1} parent=1 // pred_check
      _
    $region43: #{mlp_encoder_forward.1} parent=1 // pred_check_branch
      %77 = sbr.rel (0) target = $region45
    $region44: #{mlp_encoder_forward.1} parent=1 // pred_region
      _
    $region45: #{mlp_encoder_forward.1} parent=1 // pred_fallthru
      _
    // Predicated region
    $region46: #{mlp_encoder_forward.1} parent=1 // pred_check
      _
    $region47: #{mlp_encoder_forward.1} parent=1 // pred_check_branch
      %79 = sbr.rel (0) target = $region49
    $region48: #{mlp_encoder_forward.1} parent=1 // pred_region
      %s81 = ssub.s32 2048, 2048
      %82 = vsyncadd [#allocation10], %s81
      %s83 = sshll.u32 [#allocation11], 4
      %s84 = int_to_ptr.vmem [resolvable:$true] %s83
      %89 = dma.hbm_to_vmem [thread:$0]  %s11, 2048, %s84, [#allocation10], 128, 128, 8
    $region49: #{mlp_encoder_forward.1} parent=1 // pred_fallthru
      _
    // Predicated region
    $region50: #{mlp_encoder_forward.1} parent=1 // pred_check
      _
    $region51: #{mlp_encoder_forward.1} parent=1 // pred_check_branch
      %91 = sbr.rel (0) target = $region53
    $region52: #{mlp_encoder_forward.1} parent=1 // pred_region
      _
    $region53: #{mlp_encoder_forward.1} parent=1 // pred_fallthru
      _
    // Predicated region
    $region54: #{mlp_encoder_forward.1} parent=1 // pred_check
      _
    $region55: #{mlp_encoder_forward.1} parent=1 // pred_check_branch
      %93 = sbr.rel (0) target = $region57
    $region56: #{mlp_encoder_forward.1} parent=1 // pred_region
      %s95 = ssub.s32 2048, 2048
      %96 = vsyncadd [#allocation13], %s95
      %s97 = sshll.u32 [#allocation12], 4
      %s98 = int_to_ptr.vmem [resolvable:$true] %s97
      %103 = dma.hbm_to_vmem [thread:$0]  %s13, 2048, %s98, [#allocation13], 128, 128, 8
    $region57: #{mlp_encoder_forward.1} parent=1 // pred_fallthru
      _
    // Predicated region
    $region58: #{mlp_encoder_forward.1} parent=1 // pred_check
      _
    $region59: #{mlp_encoder_forward.1} parent=1 // pred_check_branch
      %105 = sbr.rel (0) target = $region61
    $region60: #{mlp_encoder_forward.1} parent=1 // pred_region
      _
    $region61: #{mlp_encoder_forward.1} parent=1 // pred_fallthru
      _
    // Predicated region
    $region62: #{mlp_encoder_forward.1} parent=1 // pred_check
      _
    $region63: #{mlp_encoder_forward.1} parent=1 // pred_check_branch
      %107 = sbr.rel (0) target = $region65
    $region64: #{mlp_encoder_forward.1} parent=1 // pred_region
      %s109 = ssub.s32 2048, 2048
      %110 = vsyncadd [#allocation13], %s109
      %s111 = sshll.u32 [#allocation14], 4
      %s112 = int_to_ptr.vmem [resolvable:$true] %s111
      %117 = dma.hbm_to_vmem [thread:$0]  %s15, 2048, %s112, [#allocation13], 128, 128, 8
    $region65: #{mlp_encoder_forward.1} parent=1 // pred_fallthru
      _
    // Predicated region
    $region66: #{mlp_encoder_forward.1} parent=1 // pred_check
      _
    $region67: #{mlp_encoder_forward.1} parent=1 // pred_check_branch
      %119 = sbr.rel (0) target = $region69
    $region68: #{mlp_encoder_forward.1} parent=1 // pred_region
      _
    $region69: #{mlp_encoder_forward.1} parent=1 // pred_fallthru
      _
    // Predicated region
    $region70: #{mlp_encoder_forward.1} parent=1 // pred_check
      _
    $region71: #{mlp_encoder_forward.1} parent=1 // pred_check_branch
      %121 = sbr.rel (0) target = $region73
    $region72: #{mlp_encoder_forward.1} parent=1 // pred_region
      %s123 = ssub.s32 2048, 2048
      %124 = vsyncadd [#allocation16], %s123
      %s125 = sshll.u32 [#allocation15], 4
      %s126 = int_to_ptr.vmem [resolvable:$true] %s125
      %131 = dma.hbm_to_vmem [thread:$0]  %s17, 2048, %s126, [#allocation16], 128, 128, 8
    $region73: #{mlp_encoder_forward.1} parent=1 // pred_fallthru
      _
    // Predicated region
    $region74: #{mlp_encoder_forward.1} parent=1 // pred_check
      _
    $region75: #{mlp_encoder_forward.1} parent=1 // pred_check_branch
      %133 = sbr.rel (0) target = $region77
    $region76: #{mlp_encoder_forward.1} parent=1 // pred_region
      %s135 = ssub.s32 2048, 2048
      %136 = vsyncadd [#allocation16], %s135
      %s137 = sshll.u32 [#allocation17], 4
      %s138 = int_to_ptr.vmem [resolvable:$true] %s137
      %143 = dma.hbm_to_vmem [thread:$0]  %s18, 2048, %s138, [#allocation16], 128, 128, 8
    $region77: #{mlp_encoder_forward.1} parent=1 // pred_fallthru
      _
    // Predicated region
    $region78: #{mlp_encoder_forward.1} parent=1 // pred_check
      _
    $region79: #{mlp_encoder_forward.1} parent=1 // pred_check_branch
      %145 = sbr.rel (0) target = $region81
    $region80: #{mlp_encoder_forward.1} parent=1 // pred_region
      %s147 = ssub.s32 2048, 2048
      %148 = vsyncadd [#allocation19], %s147
      %s149 = sshll.u32 [#allocation18], 4
      %s150 = int_to_ptr.vmem [resolvable:$true] %s149
      %155 = dma.hbm_to_vmem [thread:$0]  %s19, 2048, %s150, [#allocation19], 128, 128, 8
    $region81: #{mlp_encoder_forward.1} parent=1 // pred_fallthru
      _
    // Predicated region
    $region82: #{mlp_encoder_forward.1} parent=1 // pred_check
      _
    $region83: #{mlp_encoder_forward.1} parent=1 // pred_check_branch
      %157 = sbr.rel (0) target = $region85
    $region84: #{mlp_encoder_forward.1} parent=1 // pred_region
      _
    $region85: #{mlp_encoder_forward.1} parent=1 // pred_fallthru
      _
    // Predicated region
    $region86: #{mlp_encoder_forward.1} parent=1 // pred_check
      _
    $region87: #{mlp_encoder_forward.1} parent=1 // pred_check_branch
      %159 = sbr.rel (0) target = $region89
    $region88: #{mlp_encoder_forward.1} parent=1 // pred_region
      %s161 = ssub.s32 2048, 2048
      %162 = vsyncadd [#allocation19], %s161
      %s163 = sshll.u32 [#allocation20], 4
      %s164 = int_to_ptr.vmem [resolvable:$true] %s163
      %169 = dma.hbm_to_vmem [thread:$0]  %s21, 2048, %s164, [#allocation19], 128, 128, 8
    $region89: #{mlp_encoder_forward.1} parent=1 // pred_fallthru
      _
    // Predicated region
    $region90: #{mlp_encoder_forward.1} parent=1 // pred_check
      _
    $region91: #{mlp_encoder_forward.1} parent=1 // pred_check_branch
      %171 = sbr.rel (0) target = $region93
    $region92: #{mlp_encoder_forward.1} parent=1 // pred_region
      _
    $region93: #{mlp_encoder_forward.1} parent=1 // pred_fallthru
      _
    // Predicated region
    $region94: #{mlp_encoder_forward.1} parent=1 // pred_check
      _
    $region95: #{mlp_encoder_forward.1} parent=1 // pred_check_branch
      %173 = sbr.rel (0) target = $region97
    $region96: #{mlp_encoder_forward.1} parent=1 // pred_region
      %s175 = ssub.s32 2048, 2048
      %176 = vsyncadd [#allocation22], %s175
      %s177 = sshll.u32 [#allocation21], 4
      %s178 = int_to_ptr.vmem [resolvable:$true] %s177
      %183 = dma.hbm_to_vmem [thread:$0]  %s23, 2048, %s178, [#allocation22], 128, 128, 8
    $region97: #{mlp_encoder_forward.1} parent=1 // pred_fallthru
      _
    // Predicated region
    $region98: #{mlp_encoder_forward.1} parent=1 // pred_check
      _
    $region99: #{mlp_encoder_forward.1} parent=1 // pred_check_branch
      %185 = sbr.rel (0) target = $region101
    $region100: #{mlp_encoder_forward.1} parent=1 // pred_region
      _
    $region101: #{mlp_encoder_forward.1} parent=1 // pred_fallthru
      _
    // Predicated region
    $region102: #{mlp_encoder_forward.1} parent=1 // pred_check
      _
    $region103: #{mlp_encoder_forward.1} parent=1 // pred_check_branch
      %187 = sbr.rel (0) target = $region105
    $region104: #{mlp_encoder_forward.1} parent=1 // pred_region
      %188 = dma.done [#allocation8], 2048
    $region105: #{mlp_encoder_forward.1} parent=1 // pred_fallthru
      _
    // Predicated region
    $region106: #{mlp_encoder_forward.1} parent=1 // pred_check
      _
    $region107: #{mlp_encoder_forward.1} parent=1 // pred_check_branch
      %190 = sbr.rel (0) target = $region109
    $region108: #{mlp_encoder_forward.1} parent=1 // pred_region
      %191 = dma.done [#allocation10], 2048
    $region109: #{mlp_encoder_forward.1} parent=1 // pred_fallthru
      _
    // Predicated region
    $region110: #{mlp_encoder_forward.1} parent=1 // pred_check
      _
    $region111: #{mlp_encoder_forward.1} parent=1 // pred_check_branch
      %193 = sbr.rel (0) target = $region113
    $region112: #{mlp_encoder_forward.1} parent=1 // pred_region
      %194 = dma.done [#allocation10], 2048
    $region113: #{mlp_encoder_forward.1} parent=1 // pred_fallthru
      _
    // Predicated region
    $region114: #{mlp_encoder_forward.1} parent=1 // pred_check
      _
    $region115: #{mlp_encoder_forward.1} parent=1 // pred_check_branch
      %196 = sbr.rel (0) target = $region117
    $region116: #{mlp_encoder_forward.1} parent=1 // pred_region
      %197 = dma.done [#allocation13], 2048
    $region117: #{mlp_encoder_forward.1} parent=1 // pred_fallthru
      _
    // Predicated region
    $region118: #{mlp_encoder_forward.1} parent=1 // pred_check
      _
    $region119: #{mlp_encoder_forward.1} parent=1 // pred_check_branch
      %199 = sbr.rel (0) target = $region121
    $region120: #{mlp_encoder_forward.1} parent=1 // pred_region
      %200 = dma.done [#allocation13], 2048
    $region121: #{mlp_encoder_forward.1} parent=1 // pred_fallthru
      _
    // Predicated region
    $region122: #{mlp_encoder_forward.1} parent=1 // pred_check
      _
    $region123: #{mlp_encoder_forward.1} parent=1 // pred_check_branch
      %202 = sbr.rel (0) target = $region125
    $region124: #{mlp_encoder_forward.1} parent=1 // pred_region
      %203 = dma.done [#allocation16], 2048
    $region125: #{mlp_encoder_forward.1} parent=1 // pred_fallthru
      _
    // Predicated region
    $region126: #{mlp_encoder_forward.1} parent=1 // pred_check
      _
    $region127: #{mlp_encoder_forward.1} parent=1 // pred_check_branch
      %205 = sbr.rel (0) target = $region129
    $region128: #{mlp_encoder_forward.1} parent=1 // pred_region
      %206 = dma.done [#allocation16], 2048
    $region129: #{mlp_encoder_forward.1} parent=1 // pred_fallthru
      _
    // Predicated region
    $region130: #{mlp_encoder_forward.1} parent=1 // pred_check
      _
    $region131: #{mlp_encoder_forward.1} parent=1 // pred_check_branch
      %208 = sbr.rel (0) target = $region133
    $region132: #{mlp_encoder_forward.1} parent=1 // pred_region
      %209 = dma.done [#allocation19], 2048
    $region133: #{mlp_encoder_forward.1} parent=1 // pred_fallthru
      _
    // Predicated region
    $region134: #{mlp_encoder_forward.1} parent=1 // pred_check
      _
    $region135: #{mlp_encoder_forward.1} parent=1 // pred_check_branch
      %211 = sbr.rel (0) target = $region137
    $region136: #{mlp_encoder_forward.1} parent=1 // pred_region
      %212 = dma.done [#allocation19], 2048
    $region137: #{mlp_encoder_forward.1} parent=1 // pred_fallthru
      _
    // Predicated region
    $region138: #{mlp_encoder_forward.1} parent=1 // pred_check
      _
    $region139: #{mlp_encoder_forward.1} parent=1 // pred_check_branch
      %214 = sbr.rel (0) target = $region141
    $region140: #{mlp_encoder_forward.1} parent=1 // pred_region
      %215 = dma.done [#allocation22], 2048
    $region141: #{mlp_encoder_forward.1} parent=1 // pred_fallthru
      _
    %v216 = vld [vmem:[%s1] sm:$0xff]
    %v217 = vld [vmem:[%s1 + $0x8] sm:$0xf]
    %v218 = vld [vmem:[%s2] sm:$0xff]
    %v219 = vld [vmem:[%s2 + $0x8] sm:$0xf]
    %v220 = vld [vmem:[%s3] sm:$0xf]
    %v221 = vld [vmem:[%s0] sm:$0xff]
    %v222 = vld [vmem:[%s4] sm:$0xff]
    %v223 = vld [vmem:[%s4 + $0x8] sm:$0xff]
    %v224 = vld [vmem:[%s5] sm:$0x1]
    %v225 = vld [vmem:[%s6] sm:$0xff]
    %v226 = vld [vmem:[%s6 + $0x8] sm:$0xff]
    %v227 = vld [vmem:[%s6 + $0x10] sm:$0xff]
    %v228 = vld [vmem:[%s6 + $0x18] sm:$0xff]
    %v229 = vld [vmem:[%s6 + $0x20] sm:$0xff]
    %v230 = vld [vmem:[%s6 + $0x28] sm:$0xff]
    %v231 = vld [vmem:[%s6 + $0x30] sm:$0xff]
    %v232 = vld [vmem:[%s6 + $0x38] sm:$0xff]
    %v233 = vld [vmem:[%s6 + $0x40] sm:$0xff]
    %v234 = vld [vmem:[%s6 + $0x48] sm:$0xff]
    %v235 = vld [vmem:[%s6 + $0x50] sm:$0xff]
    %v236 = vld [vmem:[%s6 + $0x58] sm:$0xff]
    %v237 = vld [vmem:[%s6 + $0x60] sm:$0xff]
    %v238 = vld [vmem:[%s6 + $0x68] sm:$0xff]
    %v239 = vld [vmem:[%s6 + $0x70] sm:$0xff]
    %v240 = vld [vmem:[%s6 + $0x78] sm:$0xff]
    %v241 = vld [vmem:[%s7] sm:$0x1]
    %v243 = vlaneseq
    %v244 = vshrl.u32 %v243, 7
    %v245 = vsub.s32 0, %v244
    %v246 = vrot.slane %v224, %v245
    %vm248 = vcmask 130048
    %v250 = vsel %vm248, %v221, 0
    %252 = vmatprep.subr.mxu0 0.0
    %253 = vmatpush1.msra.mxu0 %v222
    %254 = vmatprep.subr.mxu0 0.0
    %255 = vmatpush1.msra.mxu0 %v223
    %256 = vmatprep.subr.mxu0 0.0
    %257 = vmatpush1.msra.mxu0 0.0
    %258 = vmatprep.subr.mxu0 0.0
    %259 = vmatpush1.msra.mxu0 0.0
    %260 = vmatprep.subr.mxu0 0.0
    %261 = vmatpush1.msra.mxu0 0.0
    %262 = vmatprep.subr.mxu0 0.0
    %263 = vmatpush1.msra.mxu0 0.0
    %264 = vmatprep.subr.mxu0 0.0
    %265 = vmatpush1.msra.mxu0 0.0
    %266 = vmatprep.subr.mxu0 0.0
    %267 = vmatpush1.msra.mxu0 0.0
    %268 = vmatprep.subr.mxu0 0.0
    %269 = vmatpush1.msra.mxu0 0.0
    %270 = vmatprep.subr.mxu0 0.0
    %271 = vmatpush1.msra.mxu0 0.0
    %272 = vmatprep.subr.mxu0 0.0
    %273 = vmatpush1.msra.mxu0 0.0
    %274 = vmatprep.subr.mxu0 0.0
    %275 = vmatpush1.msra.mxu0 0.0
    %276 = vmatprep.subr.mxu0 0.0
    %277 = vmatpush1.msra.mxu0 0.0
    %278 = vmatprep.subr.mxu0 0.0
    %279 = vmatpush1.msra.mxu0 0.0
    %280 = vmatprep.subr.mxu0 0.0
    %281 = vmatpush1.msra.mxu0 0.0
    %282 = vmatprep.subr.mxu0 0.0
    %283 = vmatpush1.msra.mxu0 0.0
    %284 = vmatprep.subr.mxu0 0.0
    %285 = vmatpush1.msra.mxu0 0.0
    %286 = vmatprep.subr.mxu0 0.0
    %287 = vmatpush1.msra.mxu0 0.0
    %288 = vmatprep.subr.mxu0 0.0
    %289 = vmatpush1.msra.mxu0 0.0
    %290 = vmatprep.subr.mxu0 0.0
    %291 = vmatpush1.msra.mxu0 0.0
    %292 = vmatprep.subr.mxu0 0.0
    %293 = vmatpush1.msra.mxu0 0.0
    %294 = vmatprep.subr.mxu0 0.0
    %295 = vmatpush1.msra.mxu0 0.0
    %296 = vmatprep.subr.mxu0 0.0
    %297 = vmatpush1.msra.mxu0 0.0
    %298 = vmatprep.subr.mxu0 0.0
    %299 = vmatpush1.msra.mxu0 0.0
    %300 = vmatprep.subr.mxu0 0.0
    %301 = vmatpush1.msra.mxu0 0.0
    %302 = vmatprep.subr.mxu0 0.0
    %303 = vmatpush1.msra.mxu0 0.0
    %304 = vmatprep.subr.mxu0 0.0
    %305 = vmatpush1.msra.mxu0 0.0
    %306 = vmatprep.subr.mxu0 0.0
    %307 = vmatpush1.msra.mxu0 0.0
    %308 = vmatprep.subr.mxu0 0.0
    %309 = vmatpush1.msra.mxu0 0.0
    %310 = vmatprep.subr.mxu0 0.0
    %311 = vmatpush1.msra.mxu0 0.0
    %312 = vmatprep.subr.mxu0 0.0
    %313 = vmatpush1.msra.mxu0 0.0
    %314 = vmatprep.subr.mxu0 0.0
    %315 = vmatpush1.msra.mxu0 0.0
    %316 = vmatprep.mubr.f32.mxu0 0.0
    %317 = vmatmul.mubr.f32.gmra.mrb[0].mxu0 %v250
    %v318 = vpop.f32.mrb[0].mxu0
    %v319 = vadd.f32 %v246, %v318
    %v320 = vpop.f32.mrb[0].mxu0
    %321 = vdwg.mxu0
    %vm322 = vcmp.gt.f32.partialorder %v319, 0.0
    %v323 = vmin.f32 %v319, 0.0
    %v324 = vmul.f32 %v323, 1.442695
    %v325 = vpow.pop %v324
    %v326 = vsub.f32 %v325, 1.0
    %v327 = vsel %vm322, %v319, %v326
    %v329 = vlaneseq
    %v330 = vshrl.u32 %v329, 7
    %v331 = vsub.s32 0, %v330
    %v332 = vrot.slane %v241, %v331
    %334 = vmatprep.subr.mxu0 0.0
    %335 = vmatpush1.msra.mxu0 %v225
    %336 = vmatprep.subr.mxu0 0.0
    %337 = vmatpush1.msra.mxu0 %v226
    %338 = vmatprep.subr.mxu0 0.0
    %339 = vmatpush1.msra.mxu0 %v227
    %340 = vmatprep.subr.mxu0 0.0
    %341 = vmatpush1.msra.mxu0 %v228
    %342 = vmatprep.subr.mxu0 0.0
    %343 = vmatpush1.msra.mxu0 %v229
    %344 = vmatprep.subr.mxu0 0.0
    %345 = vmatpush1.msra.mxu0 %v230
    %346 = vmatprep.subr.mxu0 0.0
    %347 = vmatpush1.msra.mxu0 %v231
    %348 = vmatprep.subr.mxu0 0.0
    %349 = vmatpush1.msra.mxu0 %v232
    %350 = vmatprep.subr.mxu0 0.0
    %351 = vmatpush1.msra.mxu0 %v233
    %352 = vmatprep.subr.mxu0 0.0
    %353 = vmatpush1.msra.mxu0 %v234
    %354 = vmatprep.subr.mxu0 0.0
    %355 = vmatpush1.msra.mxu0 %v235
    %356 = vmatprep.subr.mxu0 0.0
    %357 = vmatpush1.msra.mxu0 %v236
    %358 = vmatprep.subr.mxu0 0.0
    %359 = vmatpush1.msra.mxu0 %v237
    %360 = vmatprep.subr.mxu0 0.0
    %361 = vmatpush1.msra.mxu0 %v238
    %362 = vmatprep.subr.mxu0 0.0
    %363 = vmatpush1.msra.mxu0 %v239
    %364 = vmatprep.subr.mxu0 0.0
    %365 = vmatpush1.msra.mxu0 %v240
    %366 = vmatprep.subr.mxu0 0.0
    %367 = vmatpush1.msra.mxu0 0.0
    %368 = vmatprep.subr.mxu0 0.0
    %369 = vmatpush1.msra.mxu0 0.0
    %370 = vmatprep.subr.mxu0 0.0
    %371 = vmatpush1.msra.mxu0 0.0
    %372 = vmatprep.subr.mxu0 0.0
    %373 = vmatpush1.msra.mxu0 0.0
    %374 = vmatprep.subr.mxu0 0.0
    %375 = vmatpush1.msra.mxu0 0.0
    %376 = vmatprep.subr.mxu0 0.0
    %377 = vmatpush1.msra.mxu0 0.0
    %378 = vmatprep.subr.mxu0 0.0
    %379 = vmatpush1.msra.mxu0 0.0
    %380 = vmatprep.subr.mxu0 0.0
    %381 = vmatpush1.msra.mxu0 0.0
    %382 = vmatprep.subr.mxu0 0.0
    %383 = vmatpush1.msra.mxu0 0.0
    %384 = vmatprep.subr.mxu0 0.0
    %385 = vmatpush1.msra.mxu0 0.0
    %386 = vmatprep.subr.mxu0 0.0
    %387 = vmatpush1.msra.mxu0 0.0
    %388 = vmatprep.subr.mxu0 0.0
    %389 = vmatpush1.msra.mxu0 0.0
    %390 = vmatprep.subr.mxu0 0.0
    %391 = vmatpush1.msra.mxu0 0.0
    %392 = vmatprep.subr.mxu0 0.0
    %393 = vmatpush1.msra.mxu0 0.0
    %394 = vmatprep.subr.mxu0 0.0
    %395 = vmatpush1.msra.mxu0 0.0
    %396 = vmatprep.subr.mxu0 0.0
    %397 = vmatpush1.msra.mxu0 0.0
    %398 = vmatprep.mubr.f32.mxu0 0.0
    %399 = vmatmul.mubr.f32.gmra.mrb[0].mxu0 %v327
    %v400 = vpop.f32.mrb[0].mxu0
    %v401 = vadd.f32 %v332, %v400
    %v402 = vpop.f32.mrb[0].mxu0
    %403 = vdwg.mxu0
    %vm404 = vcmp.gt.f32.partialorder %v401, 0.0
    %v405 = vmin.f32 %v401, 0.0
    %v406 = vmul.f32 %v405, 1.442695
    %v407 = vpow.pop %v406
    %v408 = vsub.f32 %v407, 1.0
    %v409 = vsel %vm404, %v401, %v408
    %v410 = vrot.slane %v409, 4
    %v411 = vadd.f32 %v409, %v410
    %v412 = vrot.slane %v411, 2
    %v413 = vadd.f32 %v411, %v412
    %v414 = vrot.slane %v413, 1
    %v415 = vadd.f32 %v413, %v414
    %v416 = vmul.f32 %v409, %v409
    %v417 = vrot.slane %v416, 4
    %v418 = vadd.f32 %v416, %v417
    %v419 = vrot.slane %v418, 2
    %v420 = vadd.f32 %v418, %v419
    %v421 = vrot.slane %v420, 1
    %v422 = vadd.f32 %v420, %v421
    %v423 = vmul.f32 %v415, 0.125
    %v424 = vmul.f32 %v422, 0.125
    %v425 = vmul.f32 %v423, %v423
    %v426 = vsub.f32 %v424, %v425
    %v427 = vmax.f32 %v426, 0.0
    %v428 = vsub.f32 %v409, %v423
    %v429 = vadd.f32 %v427, 1e-05
    %v430 = vrsqrt.pop %v429
    %v431 = vmul.f32 %v428, %v430
    %432 = vst [vmem:[#allocation2] sm:$0xff] %v431
    %v433 = vld [vmem:[#allocation2] sm:$0xff]
    %v434 = vld [vmem:[#allocation7] sm:$0xff]
    %v435 = vld [vmem:[#allocation7 + $0x8] sm:$0xff]
    %v436 = vld [vmem:[#allocation7 + $0x10] sm:$0xff]
    %v437 = vld [vmem:[#allocation7 + $0x18] sm:$0xff]
    %v438 = vld [vmem:[#allocation7 + $0x20] sm:$0xff]
    %v439 = vld [vmem:[#allocation7 + $0x28] sm:$0xff]
    %v440 = vld [vmem:[#allocation7 + $0x30] sm:$0xff]
    %v441 = vld [vmem:[#allocation7 + $0x38] sm:$0xff]
    %v442 = vld [vmem:[#allocation7 + $0x40] sm:$0xff]
    %v443 = vld [vmem:[#allocation7 + $0x48] sm:$0xff]
    %v444 = vld [vmem:[#allocation7 + $0x50] sm:$0xff]
    %v445 = vld [vmem:[#allocation7 + $0x58] sm:$0xff]
    %v446 = vld [vmem:[#allocation7 + $0x60] sm:$0xff]
    %v447 = vld [vmem:[#allocation7 + $0x68] sm:$0xff]
    %v448 = vld [vmem:[#allocation7 + $0x70] sm:$0xff]
    %v449 = vld [vmem:[#allocation7 + $0x78] sm:$0xff]
    %450 = vmatprep.subr.mxu0 0.0
    %451 = vmatpush1.msra.mxu0 %v434
    %452 = vmatprep.subr.mxu0 0.0
    %453 = vmatpush1.msra.mxu0 %v435
    %454 = vmatprep.subr.mxu0 0.0
    %455 = vmatpush1.msra.mxu0 %v436
    %456 = vmatprep.subr.mxu0 0.0
    %457 = vmatpush1.msra.mxu0 %v437
    %458 = vmatprep.subr.mxu0 0.0
    %459 = vmatpush1.msra.mxu0 %v438
    %460 = vmatprep.subr.mxu0 0.0
    %461 = vmatpush1.msra.mxu0 %v439
    %462 = vmatprep.subr.mxu0 0.0
    %463 = vmatpush1.msra.mxu0 %v440
    %464 = vmatprep.subr.mxu0 0.0
    %465 = vmatpush1.msra.mxu0 %v441
    %466 = vmatprep.subr.mxu0 0.0
    %467 = vmatpush1.msra.mxu0 %v442
    %468 = vmatprep.subr.mxu0 0.0
    %469 = vmatpush1.msra.mxu0 %v443
    %470 = vmatprep.subr.mxu0 0.0
    %471 = vmatpush1.msra.mxu0 %v444
    %472 = vmatprep.subr.mxu0 0.0
    %473 = vmatpush1.msra.mxu0 %v445
    %474 = vmatprep.subr.mxu0 0.0
    %475 = vmatpush1.msra.mxu0 %v446
    %476 = vmatprep.subr.mxu0 0.0
    %477 = vmatpush1.msra.mxu0 %v447
    %478 = vmatprep.subr.mxu0 0.0
    %479 = vmatpush1.msra.mxu0 %v448
    %480 = vmatprep.subr.mxu0 0.0
    %481 = vmatpush1.msra.mxu0 %v449
    %482 = vmatprep.subr.mxu0 0.0
    %483 = vmatpush1.msra.mxu0 0.0
    %484 = vmatprep.subr.mxu0 0.0
    %485 = vmatpush1.msra.mxu0 0.0
    %486 = vmatprep.subr.mxu0 0.0
    %487 = vmatpush1.msra.mxu0 0.0
    %488 = vmatprep.subr.mxu0 0.0
    %489 = vmatpush1.msra.mxu0 0.0
    %490 = vmatprep.subr.mxu0 0.0
    %491 = vmatpush1.msra.mxu0 0.0
    %492 = vmatprep.subr.mxu0 0.0
    %493 = vmatpush1.msra.mxu0 0.0
    %494 = vmatprep.subr.mxu0 0.0
    %495 = vmatpush1.msra.mxu0 0.0
    %496 = vmatprep.subr.mxu0 0.0
    %497 = vmatpush1.msra.mxu0 0.0
    %498 = vmatprep.subr.mxu0 0.0
    %499 = vmatpush1.msra.mxu0 0.0
    %500 = vmatprep.subr.mxu0 0.0
    %501 = vmatpush1.msra.mxu0 0.0
    %502 = vmatprep.subr.mxu0 0.0
    %503 = vmatpush1.msra.mxu0 0.0
    %504 = vmatprep.subr.mxu0 0.0
    %505 = vmatpush1.msra.mxu0 0.0
    %506 = vmatprep.subr.mxu0 0.0
    %507 = vmatpush1.msra.mxu0 0.0
    %508 = vmatprep.subr.mxu0 0.0
    %509 = vmatpush1.msra.mxu0 0.0
    %510 = vmatprep.subr.mxu0 0.0
    %511 = vmatpush1.msra.mxu0 0.0
    %512 = vmatprep.subr.mxu0 0.0
    %513 = vmatpush1.msra.mxu0 0.0
    %514 = vmatprep.mubr.f32.mxu0 0.0
    %515 = vmatmul.mubr.f32.gmra.mrb[0].mxu0 %v433
    %v516 = vpop.f32.mrb[0].mxu0
    %v517 = vadd.f32 0.0, %v516
    %v518 = vpop.f32.mrb[0].mxu0
    %519 = vdwg.mxu0
    %520 = vst [vmem:[#allocation3] sm:$0xff] %v517
    %v521 = vld [vmem:[#allocation2] sm:$0xff]
    %v522 = vld [vmem:[#allocation9] sm:$0xff]
    %v523 = vld [vmem:[#allocation9 + $0x8] sm:$0xff]
    %v524 = vld [vmem:[#allocation9 + $0x10] sm:$0xff]
    %v525 = vld [vmem:[#allocation9 + $0x18] sm:$0xff]
    %v526 = vld [vmem:[#allocation9 + $0x20] sm:$0xff]
    %v527 = vld [vmem:[#allocation9 + $0x28] sm:$0xff]
    %v528 = vld [vmem:[#allocation9 + $0x30] sm:$0xff]
    %v529 = vld [vmem:[#allocation9 + $0x38] sm:$0xff]
    %v530 = vld [vmem:[#allocation9 + $0x40] sm:$0xff]
    %v531 = vld [vmem:[#allocation9 + $0x48] sm:$0xff]
    %v532 = vld [vmem:[#allocation9 + $0x50] sm:$0xff]
    %v533 = vld [vmem:[#allocation9 + $0x58] sm:$0xff]
    %v534 = vld [vmem:[#allocation9 + $0x60] sm:$0xff]
    %v535 = vld [vmem:[#allocation9 + $0x68] sm:$0xff]
    %v536 = vld [vmem:[#allocation9 + $0x70] sm:$0xff]
    %v537 = vld [vmem:[#allocation9 + $0x78] sm:$0xff]
    %538 = vmatprep.subr.mxu0 0.0
    %539 = vmatpush1.msra.mxu0 %v522
    %540 = vmatprep.subr.mxu0 0.0
    %541 = vmatpush1.msra.mxu0 %v523
    %542 = vmatprep.subr.mxu0 0.0
    %543 = vmatpush1.msra.mxu0 %v524
    %544 = vmatprep.subr.mxu0 0.0
    %545 = vmatpush1.msra.mxu0 %v525
    %546 = vmatprep.subr.mxu0 0.0
    %547 = vmatpush1.msra.mxu0 %v526
    %548 = vmatprep.subr.mxu0 0.0
    %549 = vmatpush1.msra.mxu0 %v527
    %550 = vmatprep.subr.mxu0 0.0
    %551 = vmatpush1.msra.mxu0 %v528
    %552 = vmatprep.subr.mxu0 0.0
    %553 = vmatpush1.msra.mxu0 %v529
    %554 = vmatprep.subr.mxu0 0.0
    %555 = vmatpush1.msra.mxu0 %v530
    %556 = vmatprep.subr.mxu0 0.0
    %557 = vmatpush1.msra.mxu0 %v531
    %558 = vmatprep.subr.mxu0 0.0
    %559 = vmatpush1.msra.mxu0 %v532
    %560 = vmatprep.subr.mxu0 0.0
    %561 = vmatpush1.msra.mxu0 %v533
    %562 = vmatprep.subr.mxu0 0.0
    %563 = vmatpush1.msra.mxu0 %v534
    %564 = vmatprep.subr.mxu0 0.0
    %565 = vmatpush1.msra.mxu0 %v535
    %566 = vmatprep.subr.mxu0 0.0
    %567 = vmatpush1.msra.mxu0 %v536
    %568 = vmatprep.subr.mxu0 0.0
    %569 = vmatpush1.msra.mxu0 %v537
    %570 = vmatprep.subr.mxu0 0.0
    %571 = vmatpush1.msra.mxu0 0.0
    %572 = vmatprep.subr.mxu0 0.0
    %573 = vmatpush1.msra.mxu0 0.0
    %574 = vmatprep.subr.mxu0 0.0
    %575 = vmatpush1.msra.mxu0 0.0
    %576 = vmatprep.subr.mxu0 0.0
    %577 = vmatpush1.msra.mxu0 0.0
    %578 = vmatprep.subr.mxu0 0.0
    %579 = vmatpush1.msra.mxu0 0.0
    %580 = vmatprep.subr.mxu0 0.0
    %581 = vmatpush1.msra.mxu0 0.0
    %582 = vmatprep.subr.mxu0 0.0
    %583 = vmatpush1.msra.mxu0 0.0
    %584 = vmatprep.subr.mxu0 0.0
    %585 = vmatpush1.msra.mxu0 0.0
    %586 = vmatprep.subr.mxu0 0.0
    %587 = vmatpush1.msra.mxu0 0.0
    %588 = vmatprep.subr.mxu0 0.0
    %589 = vmatpush1.msra.mxu0 0.0
    %590 = vmatprep.subr.mxu0 0.0
    %591 = vmatpush1.msra.mxu0 0.0
    %592 = vmatprep.subr.mxu0 0.0
    %593 = vmatpush1.msra.mxu0 0.0
    %594 = vmatprep.subr.mxu0 0.0
    %595 = vmatpush1.msra.mxu0 0.0
    %596 = vmatprep.subr.mxu0 0.0
    %597 = vmatpush1.msra.mxu0 0.0
    %598 = vmatprep.subr.mxu0 0.0
    %599 = vmatpush1.msra.mxu0 0.0
    %600 = vmatprep.subr.mxu0 0.0
    %601 = vmatpush1.msra.mxu0 0.0
    %602 = vmatprep.mubr.f32.mxu0 0.0
    %603 = vmatmul.mubr.f32.gmra.mrb[0].mxu0 %v521
    %v604 = vpop.f32.mrb[0].mxu0
    %v605 = vadd.f32 0.0, %v604
    %v606 = vpop.f32.mrb[0].mxu0
    %607 = vdwg.mxu0
    %608 = vst [vmem:[#allocation4] sm:$0xff] %v605
    %v609 = vld [vmem:[#allocation3] sm:$0xf]
    %v610 = vld [vmem:[#allocation4] sm:$0xf]
    %vm611 = vcmask 31744
    %v613 = vsel %vm611, %v218, 0
    %v616 = vsel %vm611, %v219, 0
    %vm618 = vcmask 1043456
    %v620 = vsel %vm618, %v610, 0
    %622 = vmatprep.subr.mxu0 0.0
    %623 = vmatpush1.msra.mxu0 %v620
    %624 = vmatprep.subr.mxu0 0.0
    %625 = vmatpush1.msra.mxu0 0.0
    %626 = vmatprep.subr.mxu0 0.0
    %627 = vmatpush1.msra.mxu0 0.0
    %628 = vmatprep.subr.mxu0 0.0
    %629 = vmatpush1.msra.mxu0 0.0
    %630 = vmatprep.subr.mxu0 0.0
    %631 = vmatpush1.msra.mxu0 0.0
    %632 = vmatprep.subr.mxu0 0.0
    %633 = vmatpush1.msra.mxu0 0.0
    %634 = vmatprep.subr.mxu0 0.0
    %635 = vmatpush1.msra.mxu0 0.0
    %636 = vmatprep.subr.mxu0 0.0
    %637 = vmatpush1.msra.mxu0 0.0
    %638 = vmatprep.subr.mxu0 0.0
    %639 = vmatpush1.msra.mxu0 0.0
    %640 = vmatprep.subr.mxu0 0.0
    %641 = vmatpush1.msra.mxu0 0.0
    %642 = vmatprep.subr.mxu0 0.0
    %643 = vmatpush1.msra.mxu0 0.0
    %644 = vmatprep.subr.mxu0 0.0
    %645 = vmatpush1.msra.mxu0 0.0
    %646 = vmatprep.subr.mxu0 0.0
    %647 = vmatpush1.msra.mxu0 0.0
    %648 = vmatprep.subr.mxu0 0.0
    %649 = vmatpush1.msra.mxu0 0.0
    %650 = vmatprep.subr.mxu0 0.0
    %651 = vmatpush1.msra.mxu0 0.0
    %652 = vmatprep.subr.mxu0 0.0
    %653 = vmatpush1.msra.mxu0 0.0
    %654 = vmatprep.subr.mxu0 0.0
    %655 = vmatpush1.msra.mxu0 0.0
    %656 = vmatprep.subr.mxu0 0.0
    %657 = vmatpush1.msra.mxu0 0.0
    %658 = vmatprep.subr.mxu0 0.0
    %659 = vmatpush1.msra.mxu0 0.0
    %660 = vmatprep.subr.mxu0 0.0
    %661 = vmatpush1.msra.mxu0 0.0
    %662 = vmatprep.subr.mxu0 0.0
    %663 = vmatpush1.msra.mxu0 0.0
    %664 = vmatprep.subr.mxu0 0.0
    %665 = vmatpush1.msra.mxu0 0.0
    %666 = vmatprep.subr.mxu0 0.0
    %667 = vmatpush1.msra.mxu0 0.0
    %668 = vmatprep.subr.mxu0 0.0
    %669 = vmatpush1.msra.mxu0 0.0
    %670 = vmatprep.subr.mxu0 0.0
    %671 = vmatpush1.msra.mxu0 0.0
    %672 = vmatprep.subr.mxu0 0.0
    %673 = vmatpush1.msra.mxu0 0.0
    %674 = vmatprep.subr.mxu0 0.0
    %675 = vmatpush1.msra.mxu0 0.0
    %676 = vmatprep.subr.mxu0 0.0
    %677 = vmatpush1.msra.mxu0 0.0
    %678 = vmatprep.subr.mxu0 0.0
    %679 = vmatpush1.msra.mxu0 0.0
    %680 = vmatprep.subr.mxu0 0.0
    %681 = vmatpush1.msra.mxu0 0.0
    %682 = vmatprep.subr.mxu0 0.0
    %683 = vmatpush1.msra.mxu0 0.0
    %684 = vmatprep.subr.mxu0 0.0
    %685 = vmatpush1.msra.mxu0 0.0
    %686 = vmatprep.mubr.f32.mxu0 0.0
    %687 = vmatmul.mubr.f32.gmra.mrb[0].mxu0 %v613
    %v688 = vpop.f32.mrb[0].mxu0
    %v689 = vadd.f32 0.0, %v688
    %v690 = vpop.f32.mrb[0].mxu0
    %691 = vmatprep.mubr.f32.mxu0 0.0
    %692 = vmatmul.mubr.f32.gmra.mrb[0].mxu0 %v616
    %v693 = vpop.f32.mrb[0].mxu0
    %v694 = vadd.f32 0.0, %v693
    %v695 = vpop.f32.mrb[0].mxu0
    %696 = vdwg.mxu0
    %v698 = vsel %vm611, %v216, 0
    %v701 = vsel %vm611, %v217, 0
    %v704 = vsel %vm618, %v609, 0
    %706 = vmatprep.subr.mxu0 0.0
    %707 = vmatpush1.msra.mxu0 %v704
    %708 = vmatprep.subr.mxu0 0.0
    %709 = vmatpush1.msra.mxu0 0.0
    %710 = vmatprep.subr.mxu0 0.0
    %711 = vmatpush1.msra.mxu0 0.0
    %712 = vmatprep.subr.mxu0 0.0
    %713 = vmatpush1.msra.mxu0 0.0
    %714 = vmatprep.subr.mxu0 0.0
    %715 = vmatpush1.msra.mxu0 0.0
    %716 = vmatprep.subr.mxu0 0.0
    %717 = vmatpush1.msra.mxu0 0.0
    %718 = vmatprep.subr.mxu0 0.0
    %719 = vmatpush1.msra.mxu0 0.0
    %720 = vmatprep.subr.mxu0 0.0
    %721 = vmatpush1.msra.mxu0 0.0
    %722 = vmatprep.subr.mxu0 0.0
    %723 = vmatpush1.msra.mxu0 0.0
    %724 = vmatprep.subr.mxu0 0.0
    %725 = vmatpush1.msra.mxu0 0.0
    %726 = vmatprep.subr.mxu0 0.0
    %727 = vmatpush1.msra.mxu0 0.0
    %728 = vmatprep.subr.mxu0 0.0
    %729 = vmatpush1.msra.mxu0 0.0
    %730 = vmatprep.subr.mxu0 0.0
    %731 = vmatpush1.msra.mxu0 0.0
    %732 = vmatprep.subr.mxu0 0.0
    %733 = vmatpush1.msra.mxu0 0.0
    %734 = vmatprep.subr.mxu0 0.0
    %735 = vmatpush1.msra.mxu0 0.0
    %736 = vmatprep.subr.mxu0 0.0
    %737 = vmatpush1.msra.mxu0 0.0
    %738 = vmatprep.subr.mxu0 0.0
    %739 = vmatpush1.msra.mxu0 0.0
    %740 = vmatprep.subr.mxu0 0.0
    %741 = vmatpush1.msra.mxu0 0.0
    %742 = vmatprep.subr.mxu0 0.0
    %743 = vmatpush1.msra.mxu0 0.0
    %744 = vmatprep.subr.mxu0 0.0
    %745 = vmatpush1.msra.mxu0 0.0
    %746 = vmatprep.subr.mxu0 0.0
    %747 = vmatpush1.msra.mxu0 0.0
    %748 = vmatprep.subr.mxu0 0.0
    %749 = vmatpush1.msra.mxu0 0.0
    %750 = vmatprep.subr.mxu0 0.0
    %751 = vmatpush1.msra.mxu0 0.0
    %752 = vmatprep.subr.mxu0 0.0
    %753 = vmatpush1.msra.mxu0 0.0
    %754 = vmatprep.subr.mxu0 0.0
    %755 = vmatpush1.msra.mxu0 0.0
    %756 = vmatprep.subr.mxu0 0.0
    %757 = vmatpush1.msra.mxu0 0.0
    %758 = vmatprep.subr.mxu0 0.0
    %759 = vmatpush1.msra.mxu0 0.0
    %760 = vmatprep.subr.mxu0 0.0
    %761 = vmatpush1.msra.mxu0 0.0
    %762 = vmatprep.subr.mxu0 0.0
    %763 = vmatpush1.msra.mxu0 0.0
    %764 = vmatprep.subr.mxu0 0.0
    %765 = vmatpush1.msra.mxu0 0.0
    %766 = vmatprep.subr.mxu0 0.0
    %767 = vmatpush1.msra.mxu0 0.0
    %768 = vmatprep.subr.mxu0 0.0
    %769 = vmatpush1.msra.mxu0 0.0
    %770 = vmatprep.mubr.f32.mxu0 0.0
    %771 = vmatmul.mubr.f32.gmra.mrb[0].mxu0 %v698
    %v772 = vpop.f32.mrb[0].mxu0
    %v773 = vadd.f32 %v689, %v772
    %v774 = vpop.f32.mrb[0].mxu0
    %775 = vmatprep.mubr.f32.mxu0 0.0
    %776 = vmatmul.mubr.f32.gmra.mrb[0].mxu0 %v701
    %v777 = vpop.f32.mrb[0].mxu0
    %v778 = vadd.f32 %v694, %v777
    %v779 = vpop.f32.mrb[0].mxu0
    %780 = vdwg.mxu0
    %781 = vst [vmem:[#allocation6] sm:$0xff] %v773
    %782 = vst [vmem:[#allocation6 + $0x8] sm:$0xf] %v778
    %v783 = vld [vmem:[#allocation3 + $0x4] sm:$0xf]
    %v784 = vld [vmem:[#allocation4 + $0x4] sm:$0xf]
    %v786 = vsel %vm618, %v784, 0
    %788 = vmatprep.subr.mxu0 0.0
    %789 = vmatpush1.msra.mxu0 %v786
    %790 = vmatprep.subr.mxu0 0.0
    %791 = vmatpush1.msra.mxu0 0.0
    %792 = vmatprep.subr.mxu0 0.0
    %793 = vmatpush1.msra.mxu0 0.0
    %794 = vmatprep.subr.mxu0 0.0
    %795 = vmatpush1.msra.mxu0 0.0
    %796 = vmatprep.subr.mxu0 0.0
    %797 = vmatpush1.msra.mxu0 0.0
    %798 = vmatprep.subr.mxu0 0.0
    %799 = vmatpush1.msra.mxu0 0.0
    %800 = vmatprep.subr.mxu0 0.0
    %801 = vmatpush1.msra.mxu0 0.0
    %802 = vmatprep.subr.mxu0 0.0
    %803 = vmatpush1.msra.mxu0 0.0
    %804 = vmatprep.subr.mxu0 0.0
    %805 = vmatpush1.msra.mxu0 0.0
    %806 = vmatprep.subr.mxu0 0.0
    %807 = vmatpush1.msra.mxu0 0.0
    %808 = vmatprep.subr.mxu0 0.0
    %809 = vmatpush1.msra.mxu0 0.0
    %810 = vmatprep.subr.mxu0 0.0
    %811 = vmatpush1.msra.mxu0 0.0
    %812 = vmatprep.subr.mxu0 0.0
    %813 = vmatpush1.msra.mxu0 0.0
    %814 = vmatprep.subr.mxu0 0.0
    %815 = vmatpush1.msra.mxu0 0.0
    %816 = vmatprep.subr.mxu0 0.0
    %817 = vmatpush1.msra.mxu0 0.0
    %818 = vmatprep.subr.mxu0 0.0
    %819 = vmatpush1.msra.mxu0 0.0
    %820 = vmatprep.subr.mxu0 0.0
    %821 = vmatpush1.msra.mxu0 0.0
    %822 = vmatprep.subr.mxu0 0.0
    %823 = vmatpush1.msra.mxu0 0.0
    %824 = vmatprep.subr.mxu0 0.0
    %825 = vmatpush1.msra.mxu0 0.0
    %826 = vmatprep.subr.mxu0 0.0
    %827 = vmatpush1.msra.mxu0 0.0
    %828 = vmatprep.subr.mxu0 0.0
    %829 = vmatpush1.msra.mxu0 0.0
    %830 = vmatprep.subr.mxu0 0.0
    %831 = vmatpush1.msra.mxu0 0.0
    %832 = vmatprep.subr.mxu0 0.0
    %833 = vmatpush1.msra.mxu0 0.0
    %834 = vmatprep.subr.mxu0 0.0
    %835 = vmatpush1.msra.mxu0 0.0
    %836 = vmatprep.subr.mxu0 0.0
    %837 = vmatpush1.msra.mxu0 0.0
    %838 = vmatprep.subr.mxu0 0.0
    %839 = vmatpush1.msra.mxu0 0.0
    %840 = vmatprep.subr.mxu0 0.0
    %841 = vmatpush1.msra.mxu0 0.0
    %842 = vmatprep.subr.mxu0 0.0
    %843 = vmatpush1.msra.mxu0 0.0
    %844 = vmatprep.subr.mxu0 0.0
    %845 = vmatpush1.msra.mxu0 0.0
    %846 = vmatprep.subr.mxu0 0.0
    %847 = vmatpush1.msra.mxu0 0.0
    %848 = vmatprep.subr.mxu0 0.0
    %849 = vmatpush1.msra.mxu0 0.0
    %850 = vmatprep.subr.mxu0 0.0
    %851 = vmatpush1.msra.mxu0 0.0
    %852 = vmatprep.mubr.f32.mxu0 0.0
    %853 = vmatmul.mubr.f32.gmra.mrb[0].mxu0 %v613
    %v854 = vpop.f32.mrb[0].mxu0
    %v855 = vadd.f32 0.0, %v854
    %v856 = vpop.f32.mrb[0].mxu0
    %857 = vmatprep.mubr.f32.mxu0 0.0
    %858 = vmatmul.mubr.f32.gmra.mrb[0].mxu0 %v616
    %v859 = vpop.f32.mrb[0].mxu0
    %v860 = vadd.f32 0.0, %v859
    %v861 = vpop.f32.mrb[0].mxu0
    %862 = vdwg.mxu0
    %v864 = vsel %vm618, %v783, 0
    %866 = vmatprep.subr.mxu0 0.0
    %867 = vmatpush1.msra.mxu0 %v864
    %868 = vmatprep.subr.mxu0 0.0
    %869 = vmatpush1.msra.mxu0 0.0
    %870 = vmatprep.subr.mxu0 0.0
    %871 = vmatpush1.msra.mxu0 0.0
    %872 = vmatprep.subr.mxu0 0.0
    %873 = vmatpush1.msra.mxu0 0.0
    %874 = vmatprep.subr.mxu0 0.0
    %875 = vmatpush1.msra.mxu0 0.0
    %876 = vmatprep.subr.mxu0 0.0
    %877 = vmatpush1.msra.mxu0 0.0
    %878 = vmatprep.subr.mxu0 0.0
    %879 = vmatpush1.msra.mxu0 0.0
    %880 = vmatprep.subr.mxu0 0.0
    %881 = vmatpush1.msra.mxu0 0.0
    %882 = vmatprep.subr.mxu0 0.0
    %883 = vmatpush1.msra.mxu0 0.0
    %884 = vmatprep.subr.mxu0 0.0
    %885 = vmatpush1.msra.mxu0 0.0
    %886 = vmatprep.subr.mxu0 0.0
    %887 = vmatpush1.msra.mxu0 0.0
    %888 = vmatprep.subr.mxu0 0.0
    %889 = vmatpush1.msra.mxu0 0.0
    %890 = vmatprep.subr.mxu0 0.0
    %891 = vmatpush1.msra.mxu0 0.0
    %892 = vmatprep.subr.mxu0 0.0
    %893 = vmatpush1.msra.mxu0 0.0
    %894 = vmatprep.subr.mxu0 0.0
    %895 = vmatpush1.msra.mxu0 0.0
    %896 = vmatprep.subr.mxu0 0.0
    %897 = vmatpush1.msra.mxu0 0.0
    %898 = vmatprep.subr.mxu0 0.0
    %899 = vmatpush1.msra.mxu0 0.0
    %900 = vmatprep.subr.mxu0 0.0
    %901 = vmatpush1.msra.mxu0 0.0
    %902 = vmatprep.subr.mxu0 0.0
    %903 = vmatpush1.msra.mxu0 0.0
    %904 = vmatprep.subr.mxu0 0.0
    %905 = vmatpush1.msra.mxu0 0.0
    %906 = vmatprep.subr.mxu0 0.0
    %907 = vmatpush1.msra.mxu0 0.0
    %908 = vmatprep.subr.mxu0 0.0
    %909 = vmatpush1.msra.mxu0 0.0
    %910 = vmatprep.subr.mxu0 0.0
    %911 = vmatpush1.msra.mxu0 0.0
    %912 = vmatprep.subr.mxu0 0.0
    %913 = vmatpush1.msra.mxu0 0.0
    %914 = vmatprep.subr.mxu0 0.0
    %915 = vmatpush1.msra.mxu0 0.0
    %916 = vmatprep.subr.mxu0 0.0
    %917 = vmatpush1.msra.mxu0 0.0
    %918 = vmatprep.subr.mxu0 0.0
    %919 = vmatpush1.msra.mxu0 0.0
    %920 = vmatprep.subr.mxu0 0.0
    %921 = vmatpush1.msra.mxu0 0.0
    %922 = vmatprep.subr.mxu0 0.0
    %923 = vmatpush1.msra.mxu0 0.0
    %924 = vmatprep.subr.mxu0 0.0
    %925 = vmatpush1.msra.mxu0 0.0
    %926 = vmatprep.subr.mxu0 0.0
    %927 = vmatpush1.msra.mxu0 0.0
    %928 = vmatprep.subr.mxu0 0.0
    %929 = vmatpush1.msra.mxu0 0.0
    %930 = vmatprep.mubr.f32.mxu0 0.0
    %931 = vmatmul.mubr.f32.gmra.mrb[0].mxu0 %v698
    %v932 = vpop.f32.mrb[0].mxu0
    %v933 = vadd.f32 %v855, %v932
    %v934 = vpop.f32.mrb[0].mxu0
    %935 = vmatprep.mubr.f32.mxu0 0.0
    %936 = vmatmul.mubr.f32.gmra.mrb[0].mxu0 %v701
    %v937 = vpop.f32.mrb[0].mxu0
    %v938 = vadd.f32 %v860, %v937
    %v939 = vpop.f32.mrb[0].mxu0
    %940 = vdwg.mxu0
    %941 = vst [vmem:[#allocation6 + $0xc] sm:$0xff] %v933
    %942 = vst [vmem:[#allocation6 + $0x14] sm:$0xf] %v938
    %v943 = vld [vmem:[#allocation6] sm:$0xff]
    %v944 = vld [vmem:[#allocation6 + $0x8] sm:$0xff]
    %v945 = vld [vmem:[#allocation6 + $0x10] sm:$0xff]
    %v946 = vld [vmem:[%s10] sm:$0x1]
    %v948 = vlaneseq
    %v949 = vshrl.u32 %v948, 7
    %v950 = vsub.s32 0, %v949
    %v951 = vrot.slane %v946, %v950
    %v953 = vadd.f32 %v943, %v951
    %v954 = vadd.f32 %v944, %v951
    %v955 = vadd.f32 %v945, %v951
    %vm956 = vcmp.gt.f32.partialorder %v953, 0.0
    %vm957 = vcmp.gt.f32.partialorder %v954, 0.0
    %vm958 = vcmp.gt.f32.partialorder %v955, 0.0
    %v959 = vmin.f32 %v953, 0.0
    %v960 = vmin.f32 %v954, 0.0
    %v961 = vmin.f32 %v955, 0.0
    %v962 = vmul.f32 %v959, 1.442695
    %v963 = vpow.pop %v962
    %v964 = vmul.f32 %v960, 1.442695
    %v965 = vpow.pop %v964
    %v966 = vmul.f32 %v961, 1.442695
    %v967 = vpow.pop %v966
    %v968 = vsub.f32 %v963, 1.0
    %v969 = vsub.f32 %v965, 1.0
    %v970 = vsub.f32 %v967, 1.0
    %v971 = vsel %vm956, %v953, %v968
    %v972 = vsel %vm957, %v954, %v969
    %v973 = vsel %vm958, %v955, %v970
    %v974 = vld [vmem:[#allocation11] sm:$0xff]
    %v975 = vld [vmem:[#allocation11 + $0x8] sm:$0xff]
    %v976 = vld [vmem:[#allocation11 + $0x10] sm:$0xff]
    %v977 = vld [vmem:[#allocation11 + $0x18] sm:$0xff]
    %v978 = vld [vmem:[#allocation11 + $0x20] sm:$0xff]
    %v979 = vld [vmem:[#allocation11 + $0x28] sm:$0xff]
    %v980 = vld [vmem:[#allocation11 + $0x30] sm:$0xff]
    %v981 = vld [vmem:[#allocation11 + $0x38] sm:$0xff]
    %v982 = vld [vmem:[#allocation11 + $0x40] sm:$0xff]
    %v983 = vld [vmem:[#allocation11 + $0x48] sm:$0xff]
    %v984 = vld [vmem:[#allocation11 + $0x50] sm:$0xff]
    %v985 = vld [vmem:[#allocation11 + $0x58] sm:$0xff]
    %v986 = vld [vmem:[#allocation11 + $0x60] sm:$0xff]
    %v987 = vld [vmem:[#allocation11 + $0x68] sm:$0xff]
    %v988 = vld [vmem:[#allocation11 + $0x70] sm:$0xff]
    %v989 = vld [vmem:[#allocation11 + $0x78] sm:$0xff]
    %v990 = vld [vmem:[%s12] sm:$0x1]
    %v992 = vlaneseq
    %v993 = vshrl.u32 %v992, 7
    %v994 = vsub.s32 0, %v993
    %v995 = vrot.slane %v990, %v994
    %997 = vmatprep.subr.mxu0 0.0
    %998 = vmatpush1.msra.mxu0 %v974
    %999 = vmatprep.subr.mxu0 0.0
    %1000 = vmatpush1.msra.mxu0 %v975
    %1001 = vmatprep.subr.mxu0 0.0
    %1002 = vmatpush1.msra.mxu0 %v976
    %1003 = vmatprep.subr.mxu0 0.0
    %1004 = vmatpush1.msra.mxu0 %v977
    %1005 = vmatprep.subr.mxu0 0.0
    %1006 = vmatpush1.msra.mxu0 %v978
    %1007 = vmatprep.subr.mxu0 0.0
    %1008 = vmatpush1.msra.mxu0 %v979
    %1009 = vmatprep.subr.mxu0 0.0
    %1010 = vmatpush1.msra.mxu0 %v980
    %1011 = vmatprep.subr.mxu0 0.0
    %1012 = vmatpush1.msra.mxu0 %v981
    %1013 = vmatprep.subr.mxu0 0.0
    %1014 = vmatpush1.msra.mxu0 %v982
    %1015 = vmatprep.subr.mxu0 0.0
    %1016 = vmatpush1.msra.mxu0 %v983
    %1017 = vmatprep.subr.mxu0 0.0
    %1018 = vmatpush1.msra.mxu0 %v984
    %1019 = vmatprep.subr.mxu0 0.0
    %1020 = vmatpush1.msra.mxu0 %v985
    %1021 = vmatprep.subr.mxu0 0.0
    %1022 = vmatpush1.msra.mxu0 %v986
    %1023 = vmatprep.subr.mxu0 0.0
    %1024 = vmatpush1.msra.mxu0 %v987
    %1025 = vmatprep.subr.mxu0 0.0
    %1026 = vmatpush1.msra.mxu0 %v988
    %1027 = vmatprep.subr.mxu0 0.0
    %1028 = vmatpush1.msra.mxu0 %v989
    %1029 = vmatprep.subr.mxu0 0.0
    %1030 = vmatpush1.msra.mxu0 0.0
    %1031 = vmatprep.subr.mxu0 0.0
    %1032 = vmatpush1.msra.mxu0 0.0
    %1033 = vmatprep.subr.mxu0 0.0
    %1034 = vmatpush1.msra.mxu0 0.0
    %1035 = vmatprep.subr.mxu0 0.0
    %1036 = vmatpush1.msra.mxu0 0.0
    %1037 = vmatprep.subr.mxu0 0.0
    %1038 = vmatpush1.msra.mxu0 0.0
    %1039 = vmatprep.subr.mxu0 0.0
    %1040 = vmatpush1.msra.mxu0 0.0
    %1041 = vmatprep.subr.mxu0 0.0
    %1042 = vmatpush1.msra.mxu0 0.0
    %1043 = vmatprep.subr.mxu0 0.0
    %1044 = vmatpush1.msra.mxu0 0.0
    %1045 = vmatprep.subr.mxu0 0.0
    %1046 = vmatpush1.msra.mxu0 0.0
    %1047 = vmatprep.subr.mxu0 0.0
    %1048 = vmatpush1.msra.mxu0 0.0
    %1049 = vmatprep.subr.mxu0 0.0
    %1050 = vmatpush1.msra.mxu0 0.0
    %1051 = vmatprep.subr.mxu0 0.0
    %1052 = vmatpush1.msra.mxu0 0.0
    %1053 = vmatprep.subr.mxu0 0.0
    %1054 = vmatpush1.msra.mxu0 0.0
    %1055 = vmatprep.subr.mxu0 0.0
    %1056 = vmatpush1.msra.mxu0 0.0
    %1057 = vmatprep.subr.mxu0 0.0
    %1058 = vmatpush1.msra.mxu0 0.0
    %1059 = vmatprep.subr.mxu0 0.0
    %1060 = vmatpush1.msra.mxu0 0.0
    %1061 = vmatprep.mubr.f32.mxu0 0.0
    %1062 = vmatmul.mubr.f32.gmra.mrb[0].mxu0 %v971
    %v1063 = vpop.f32.mrb[0].mxu0
    %v1064 = vadd.f32 %v995, %v1063
    %v1065 = vpop.f32.mrb[0].mxu0
    %1066 = vmatprep.mubr.f32.mxu0 0.0
    %1067 = vmatmul.mubr.f32.gmra.mrb[0].mxu0 %v972
    %v1068 = vpop.f32.mrb[0].mxu0
    %v1069 = vadd.f32 %v995, %v1068
    %v1070 = vpop.f32.mrb[0].mxu0
    %1071 = vmatprep.mubr.f32.mxu0 0.0
    %1072 = vmatmul.mubr.f32.gmra.mrb[0].mxu0 %v973
    %v1073 = vpop.f32.mrb[0].mxu0
    %v1074 = vadd.f32 %v995, %v1073
    %v1075 = vpop.f32.mrb[0].mxu0
    %1076 = vdwg.mxu0
    %vm1077 = vcmp.gt.f32.partialorder %v1064, 0.0
    %vm1078 = vcmp.gt.f32.partialorder %v1069, 0.0
    %vm1079 = vcmp.gt.f32.partialorder %v1074, 0.0
    %v1080 = vmin.f32 %v1064, 0.0
    %v1081 = vmin.f32 %v1069, 0.0
    %v1082 = vmin.f32 %v1074, 0.0
    %v1083 = vmul.f32 %v1080, 1.442695
    %v1084 = vpow.pop %v1083
    %v1085 = vmul.f32 %v1081, 1.442695
    %v1086 = vpow.pop %v1085
    %v1087 = vmul.f32 %v1082, 1.442695
    %v1088 = vpow.pop %v1087
    %v1089 = vsub.f32 %v1084, 1.0
    %v1090 = vsub.f32 %v1086, 1.0
    %v1091 = vsub.f32 %v1088, 1.0
    %v1092 = vsel %vm1077, %v1064, %v1089
    %v1093 = vsel %vm1078, %v1069, %v1090
    %v1094 = vsel %vm1079, %v1074, %v1091
    %v1095 = vadd.f32 %v1092, %v1093
    %v1096 = vadd.f32 %v1095, %v1094
    %v1097 = vrot.slane %v1096, 4
    %v1098 = vadd.f32 %v1096, %v1097
    %v1099 = vrot.slane %v1098, 2
    %v1100 = vadd.f32 %v1098, %v1099
    %v1101 = vrot.slane %v1100, 1
    %v1102 = vadd.f32 %v1100, %v1101
    %v1103 = vmul.f32 %v1092, %v1092
    %v1104 = vmul.f32 %v1093, %v1093
    %v1105 = vmul.f32 %v1094, %v1094
    %v1106 = vadd.f32 %v1103, %v1104
    %v1107 = vadd.f32 %v1106, %v1105
    %v1108 = vrot.slane %v1107, 4
    %v1109 = vadd.f32 %v1107, %v1108
    %v1110 = vrot.slane %v1109, 2
    %v1111 = vadd.f32 %v1109, %v1110
    %v1112 = vrot.slane %v1111, 1
    %v1113 = vadd.f32 %v1111, %v1112
    %v1114 = vmul.f32 %v1102, 0.041666668
    %v1115 = vmul.f32 %v1113, 0.041666668
    %v1116 = vmul.f32 %v1114, %v1114
    %v1117 = vsub.f32 %v1115, %v1116
    %v1118 = vmax.f32 %v1117, 0.0
    %v1119 = vsub.f32 %v1092, %v1114
    %v1120 = vsub.f32 %v1093, %v1114
    %v1121 = vsub.f32 %v1094, %v1114
    %v1122 = vadd.f32 %v1118, 1e-05
    %v1123 = vrsqrt.pop %v1122
    %v1124 = vmul.f32 %v1119, %v1123
    %v1125 = vmul.f32 %v1120, %v1123
    %v1126 = vmul.f32 %v1121, %v1123
    %1127 = vst [vmem:[#allocation5] sm:$0xff] %v1124
    %1128 = vst [vmem:[#allocation5 + $0x8] sm:$0xff] %v1125
    %1129 = vst [vmem:[#allocation5 + $0x10] sm:$0xff] %v1126
    %v1130 = vld [vmem:[#allocation5] sm:$0xff]
    %v1131 = vld [vmem:[#allocation5 + $0x8] sm:$0xf]
    %vm1132 = vcmask 97280
    %v1134 = vsel %vm1132, %v220, 0
    %v1137 = vsel %vm618, %v1131, 0
    %1139 = vmatprep.subr.mxu0 0.0
    %1140 = vmatpush1.msra.mxu0 %v1130
    %1141 = vmatprep.subr.mxu0 0.0
    %1142 = vmatpush1.msra.mxu0 %v1137
    %1143 = vmatprep.subr.mxu0 0.0
    %1144 = vmatpush1.msra.mxu0 0.0
    %1145 = vmatprep.subr.mxu0 0.0
    %1146 = vmatpush1.msra.mxu0 0.0
    %1147 = vmatprep.subr.mxu0 0.0
    %1148 = vmatpush1.msra.mxu0 0.0
    %1149 = vmatprep.subr.mxu0 0.0
    %1150 = vmatpush1.msra.mxu0 0.0
    %1151 = vmatprep.subr.mxu0 0.0
    %1152 = vmatpush1.msra.mxu0 0.0
    %1153 = vmatprep.subr.mxu0 0.0
    %1154 = vmatpush1.msra.mxu0 0.0
    %1155 = vmatprep.subr.mxu0 0.0
    %1156 = vmatpush1.msra.mxu0 0.0
    %1157 = vmatprep.subr.mxu0 0.0
    %1158 = vmatpush1.msra.mxu0 0.0
    %1159 = vmatprep.subr.mxu0 0.0
    %1160 = vmatpush1.msra.mxu0 0.0
    %1161 = vmatprep.subr.mxu0 0.0
    %1162 = vmatpush1.msra.mxu0 0.0
    %1163 = vmatprep.subr.mxu0 0.0
    %1164 = vmatpush1.msra.mxu0 0.0
    %1165 = vmatprep.subr.mxu0 0.0
    %1166 = vmatpush1.msra.mxu0 0.0
    %1167 = vmatprep.subr.mxu0 0.0
    %1168 = vmatpush1.msra.mxu0 0.0
    %1169 = vmatprep.subr.mxu0 0.0
    %1170 = vmatpush1.msra.mxu0 0.0
    %1171 = vmatprep.subr.mxu0 0.0
    %1172 = vmatpush1.msra.mxu0 0.0
    %1173 = vmatprep.subr.mxu0 0.0
    %1174 = vmatpush1.msra.mxu0 0.0
    %1175 = vmatprep.subr.mxu0 0.0
    %1176 = vmatpush1.msra.mxu0 0.0
    %1177 = vmatprep.subr.mxu0 0.0
    %1178 = vmatpush1.msra.mxu0 0.0
    %1179 = vmatprep.subr.mxu0 0.0
    %1180 = vmatpush1.msra.mxu0 0.0
    %1181 = vmatprep.subr.mxu0 0.0
    %1182 = vmatpush1.msra.mxu0 0.0
    %1183 = vmatprep.subr.mxu0 0.0
    %1184 = vmatpush1.msra.mxu0 0.0
    %1185 = vmatprep.subr.mxu0 0.0
    %1186 = vmatpush1.msra.mxu0 0.0
    %1187 = vmatprep.subr.mxu0 0.0
    %1188 = vmatpush1.msra.mxu0 0.0
    %1189 = vmatprep.subr.mxu0 0.0
    %1190 = vmatpush1.msra.mxu0 0.0
    %1191 = vmatprep.subr.mxu0 0.0
    %1192 = vmatpush1.msra.mxu0 0.0
    %1193 = vmatprep.subr.mxu0 0.0
    %1194 = vmatpush1.msra.mxu0 0.0
    %1195 = vmatprep.subr.mxu0 0.0
    %1196 = vmatpush1.msra.mxu0 0.0
    %1197 = vmatprep.subr.mxu0 0.0
    %1198 = vmatpush1.msra.mxu0 0.0
    %1199 = vmatprep.subr.mxu0 0.0
    %1200 = vmatpush1.msra.mxu0 0.0
    %1201 = vmatprep.subr.mxu0 0.0
    %1202 = vmatpush1.msra.mxu0 0.0
    %1203 = vmatprep.mubr.f32.mxu0 0.0
    %1204 = vmatmul.mubr.f32.gmra.mrb[0].mxu0 %v1134
    %v1205 = vpop.f32.mrb[0].mxu0
    %v1206 = vadd.f32 0.0, %v1205
    %v1207 = vpop.f32.mrb[0].mxu0
    %1208 = vdwg.mxu0
    %v1209 = vmul.f32 %v1206, 0.25
    %1210 = vst [vmem:[#allocation2] sm:$0xf] %v1209
    %v1211 = vld [vmem:[#allocation5 + $0xc] sm:$0xff]
    %v1212 = vld [vmem:[#allocation5 + $0x14] sm:$0xf]
    %v1214 = vsel %vm618, %v1212, 0
    %1216 = vmatprep.subr.mxu0 0.0
    %1217 = vmatpush1.msra.mxu0 %v1211
    %1218 = vmatprep.subr.mxu0 0.0
    %1219 = vmatpush1.msra.mxu0 %v1214
    %1220 = vmatprep.subr.mxu0 0.0
    %1221 = vmatpush1.msra.mxu0 0.0
    %1222 = vmatprep.subr.mxu0 0.0
    %1223 = vmatpush1.msra.mxu0 0.0
    %1224 = vmatprep.subr.mxu0 0.0
    %1225 = vmatpush1.msra.mxu0 0.0
    %1226 = vmatprep.subr.mxu0 0.0
    %1227 = vmatpush1.msra.mxu0 0.0
    %1228 = vmatprep.subr.mxu0 0.0
    %1229 = vmatpush1.msra.mxu0 0.0
    %1230 = vmatprep.subr.mxu0 0.0
    %1231 = vmatpush1.msra.mxu0 0.0
    %1232 = vmatprep.subr.mxu0 0.0
    %1233 = vmatpush1.msra.mxu0 0.0
    %1234 = vmatprep.subr.mxu0 0.0
    %1235 = vmatpush1.msra.mxu0 0.0
    %1236 = vmatprep.subr.mxu0 0.0
    %1237 = vmatpush1.msra.mxu0 0.0
    %1238 = vmatprep.subr.mxu0 0.0
    %1239 = vmatpush1.msra.mxu0 0.0
    %1240 = vmatprep.subr.mxu0 0.0
    %1241 = vmatpush1.msra.mxu0 0.0
    %1242 = vmatprep.subr.mxu0 0.0
    %1243 = vmatpush1.msra.mxu0 0.0
    %1244 = vmatprep.subr.mxu0 0.0
    %1245 = vmatpush1.msra.mxu0 0.0
    %1246 = vmatprep.subr.mxu0 0.0
    %1247 = vmatpush1.msra.mxu0 0.0
    %1248 = vmatprep.subr.mxu0 0.0
    %1249 = vmatpush1.msra.mxu0 0.0
    %1250 = vmatprep.subr.mxu0 0.0
    %1251 = vmatpush1.msra.mxu0 0.0
    %1252 = vmatprep.subr.mxu0 0.0
    %1253 = vmatpush1.msra.mxu0 0.0
    %1254 = vmatprep.subr.mxu0 0.0
    %1255 = vmatpush1.msra.mxu0 0.0
    %1256 = vmatprep.subr.mxu0 0.0
    %1257 = vmatpush1.msra.mxu0 0.0
    %1258 = vmatprep.subr.mxu0 0.0
    %1259 = vmatpush1.msra.mxu0 0.0
    %1260 = vmatprep.subr.mxu0 0.0
    %1261 = vmatpush1.msra.mxu0 0.0
    %1262 = vmatprep.subr.mxu0 0.0
    %1263 = vmatpush1.msra.mxu0 0.0
    %1264 = vmatprep.subr.mxu0 0.0
    %1265 = vmatpush1.msra.mxu0 0.0
    %1266 = vmatprep.subr.mxu0 0.0
    %1267 = vmatpush1.msra.mxu0 0.0
    %1268 = vmatprep.subr.mxu0 0.0
    %1269 = vmatpush1.msra.mxu0 0.0
    %1270 = vmatprep.subr.mxu0 0.0
    %1271 = vmatpush1.msra.mxu0 0.0
    %1272 = vmatprep.subr.mxu0 0.0
    %1273 = vmatpush1.msra.mxu0 0.0
    %1274 = vmatprep.subr.mxu0 0.0
    %1275 = vmatpush1.msra.mxu0 0.0
    %1276 = vmatprep.subr.mxu0 0.0
    %1277 = vmatpush1.msra.mxu0 0.0
    %1278 = vmatprep.subr.mxu0 0.0
    %1279 = vmatpush1.msra.mxu0 0.0
    %1280 = vmatprep.mubr.f32.mxu0 0.0
    %1281 = vmatmul.mubr.f32.gmra.mrb[0].mxu0 %v1134
    %v1282 = vpop.f32.mrb[0].mxu0
    %v1283 = vadd.f32 0.0, %v1282
    %v1284 = vpop.f32.mrb[0].mxu0
    %1285 = vdwg.mxu0
    %v1286 = vmul.f32 %v1283, 0.25
    %1287 = vst [vmem:[#allocation2 + $0x4] sm:$0xf] %v1286
    %v1288 = vld [vmem:[#allocation2] sm:$0xff]
    %v1289 = vld [vmem:[#allocation12] sm:$0xff]
    %v1290 = vld [vmem:[#allocation12 + $0x8] sm:$0xff]
    %v1291 = vld [vmem:[#allocation12 + $0x10] sm:$0xff]
    %v1292 = vld [vmem:[#allocation12 + $0x18] sm:$0xff]
    %v1293 = vld [vmem:[#allocation12 + $0x20] sm:$0xff]
    %v1294 = vld [vmem:[#allocation12 + $0x28] sm:$0xff]
    %v1295 = vld [vmem:[#allocation12 + $0x30] sm:$0xff]
    %v1296 = vld [vmem:[#allocation12 + $0x38] sm:$0xff]
    %v1297 = vld [vmem:[#allocation12 + $0x40] sm:$0xff]
    %v1298 = vld [vmem:[#allocation12 + $0x48] sm:$0xff]
    %v1299 = vld [vmem:[#allocation12 + $0x50] sm:$0xff]
    %v1300 = vld [vmem:[#allocation12 + $0x58] sm:$0xff]
    %v1301 = vld [vmem:[#allocation12 + $0x60] sm:$0xff]
    %v1302 = vld [vmem:[#allocation12 + $0x68] sm:$0xff]
    %v1303 = vld [vmem:[#allocation12 + $0x70] sm:$0xff]
    %v1304 = vld [vmem:[#allocation12 + $0x78] sm:$0xff]
    %v1305 = vld [vmem:[%s14] sm:$0x1]
    %v1306 = vld [vmem:[#allocation14] sm:$0xff]
    %v1307 = vld [vmem:[#allocation14 + $0x8] sm:$0xff]
    %v1308 = vld [vmem:[#allocation14 + $0x10] sm:$0xff]
    %v1309 = vld [vmem:[#allocation14 + $0x18] sm:$0xff]
    %v1310 = vld [vmem:[#allocation14 + $0x20] sm:$0xff]
    %v1311 = vld [vmem:[#allocation14 + $0x28] sm:$0xff]
    %v1312 = vld [vmem:[#allocation14 + $0x30] sm:$0xff]
    %v1313 = vld [vmem:[#allocation14 + $0x38] sm:$0xff]
    %v1314 = vld [vmem:[#allocation14 + $0x40] sm:$0xff]
    %v1315 = vld [vmem:[#allocation14 + $0x48] sm:$0xff]
    %v1316 = vld [vmem:[#allocation14 + $0x50] sm:$0xff]
    %v1317 = vld [vmem:[#allocation14 + $0x58] sm:$0xff]
    %v1318 = vld [vmem:[#allocation14 + $0x60] sm:$0xff]
    %v1319 = vld [vmem:[#allocation14 + $0x68] sm:$0xff]
    %v1320 = vld [vmem:[#allocation14 + $0x70] sm:$0xff]
    %v1321 = vld [vmem:[#allocation14 + $0x78] sm:$0xff]
    %v1322 = vld [vmem:[%s16] sm:$0x1]
    %v1324 = vlaneseq
    %v1325 = vshrl.u32 %v1324, 7
    %v1326 = vsub.s32 0, %v1325
    %v1327 = vrot.slane %v1305, %v1326
    %1329 = vmatprep.subr.mxu0 0.0
    %1330 = vmatpush1.msra.mxu0 %v1289
    %1331 = vmatprep.subr.mxu0 0.0
    %1332 = vmatpush1.msra.mxu0 %v1290
    %1333 = vmatprep.subr.mxu0 0.0
    %1334 = vmatpush1.msra.mxu0 %v1291
    %1335 = vmatprep.subr.mxu0 0.0
    %1336 = vmatpush1.msra.mxu0 %v1292
    %1337 = vmatprep.subr.mxu0 0.0
    %1338 = vmatpush1.msra.mxu0 %v1293
    %1339 = vmatprep.subr.mxu0 0.0
    %1340 = vmatpush1.msra.mxu0 %v1294
    %1341 = vmatprep.subr.mxu0 0.0
    %1342 = vmatpush1.msra.mxu0 %v1295
    %1343 = vmatprep.subr.mxu0 0.0
    %1344 = vmatpush1.msra.mxu0 %v1296
    %1345 = vmatprep.subr.mxu0 0.0
    %1346 = vmatpush1.msra.mxu0 %v1297
    %1347 = vmatprep.subr.mxu0 0.0
    %1348 = vmatpush1.msra.mxu0 %v1298
    %1349 = vmatprep.subr.mxu0 0.0
    %1350 = vmatpush1.msra.mxu0 %v1299
    %1351 = vmatprep.subr.mxu0 0.0
    %1352 = vmatpush1.msra.mxu0 %v1300
    %1353 = vmatprep.subr.mxu0 0.0
    %1354 = vmatpush1.msra.mxu0 %v1301
    %1355 = vmatprep.subr.mxu0 0.0
    %1356 = vmatpush1.msra.mxu0 %v1302
    %1357 = vmatprep.subr.mxu0 0.0
    %1358 = vmatpush1.msra.mxu0 %v1303
    %1359 = vmatprep.subr.mxu0 0.0
    %1360 = vmatpush1.msra.mxu0 %v1304
    %1361 = vmatprep.subr.mxu0 0.0
    %1362 = vmatpush1.msra.mxu0 0.0
    %1363 = vmatprep.subr.mxu0 0.0
    %1364 = vmatpush1.msra.mxu0 0.0
    %1365 = vmatprep.subr.mxu0 0.0
    %1366 = vmatpush1.msra.mxu0 0.0
    %1367 = vmatprep.subr.mxu0 0.0
    %1368 = vmatpush1.msra.mxu0 0.0
    %1369 = vmatprep.subr.mxu0 0.0
    %1370 = vmatpush1.msra.mxu0 0.0
    %1371 = vmatprep.subr.mxu0 0.0
    %1372 = vmatpush1.msra.mxu0 0.0
    %1373 = vmatprep.subr.mxu0 0.0
    %1374 = vmatpush1.msra.mxu0 0.0
    %1375 = vmatprep.subr.mxu0 0.0
    %1376 = vmatpush1.msra.mxu0 0.0
    %1377 = vmatprep.subr.mxu0 0.0
    %1378 = vmatpush1.msra.mxu0 0.0
    %1379 = vmatprep.subr.mxu0 0.0
    %1380 = vmatpush1.msra.mxu0 0.0
    %1381 = vmatprep.subr.mxu0 0.0
    %1382 = vmatpush1.msra.mxu0 0.0
    %1383 = vmatprep.subr.mxu0 0.0
    %1384 = vmatpush1.msra.mxu0 0.0
    %1385 = vmatprep.subr.mxu0 0.0
    %1386 = vmatpush1.msra.mxu0 0.0
    %1387 = vmatprep.subr.mxu0 0.0
    %1388 = vmatpush1.msra.mxu0 0.0
    %1389 = vmatprep.subr.mxu0 0.0
    %1390 = vmatpush1.msra.mxu0 0.0
    %1391 = vmatprep.subr.mxu0 0.0
    %1392 = vmatpush1.msra.mxu0 0.0
    %1393 = vmatprep.mubr.f32.mxu0 0.0
    %1394 = vmatmul.mubr.f32.gmra.mrb[0].mxu0 %v1288
    %v1395 = vpop.f32.mrb[0].mxu0
    %v1396 = vadd.f32 %v1327, %v1395
    %v1397 = vpop.f32.mrb[0].mxu0
    %1398 = vdwg.mxu0
    %vm1399 = vcmp.gt.f32.partialorder %v1396, 0.0
    %v1400 = vmin.f32 %v1396, 0.0
    %v1401 = vmul.f32 %v1400, 1.442695
    %v1402 = vpow.pop %v1401
    %v1403 = vsub.f32 %v1402, 1.0
    %v1404 = vsel %vm1399, %v1396, %v1403
    %v1406 = vlaneseq
    %v1407 = vshrl.u32 %v1406, 7
    %v1408 = vsub.s32 0, %v1407
    %v1409 = vrot.slane %v1322, %v1408
    %1411 = vmatprep.subr.mxu0 0.0
    %1412 = vmatpush1.msra.mxu0 %v1306
    %1413 = vmatprep.subr.mxu0 0.0
    %1414 = vmatpush1.msra.mxu0 %v1307
    %1415 = vmatprep.subr.mxu0 0.0
    %1416 = vmatpush1.msra.mxu0 %v1308
    %1417 = vmatprep.subr.mxu0 0.0
    %1418 = vmatpush1.msra.mxu0 %v1309
    %1419 = vmatprep.subr.mxu0 0.0
    %1420 = vmatpush1.msra.mxu0 %v1310
    %1421 = vmatprep.subr.mxu0 0.0
    %1422 = vmatpush1.msra.mxu0 %v1311
    %1423 = vmatprep.subr.mxu0 0.0
    %1424 = vmatpush1.msra.mxu0 %v1312
    %1425 = vmatprep.subr.mxu0 0.0
    %1426 = vmatpush1.msra.mxu0 %v1313
    %1427 = vmatprep.subr.mxu0 0.0
    %1428 = vmatpush1.msra.mxu0 %v1314
    %1429 = vmatprep.subr.mxu0 0.0
    %1430 = vmatpush1.msra.mxu0 %v1315
    %1431 = vmatprep.subr.mxu0 0.0
    %1432 = vmatpush1.msra.mxu0 %v1316
    %1433 = vmatprep.subr.mxu0 0.0
    %1434 = vmatpush1.msra.mxu0 %v1317
    %1435 = vmatprep.subr.mxu0 0.0
    %1436 = vmatpush1.msra.mxu0 %v1318
    %1437 = vmatprep.subr.mxu0 0.0
    %1438 = vmatpush1.msra.mxu0 %v1319
    %1439 = vmatprep.subr.mxu0 0.0
    %1440 = vmatpush1.msra.mxu0 %v1320
    %1441 = vmatprep.subr.mxu0 0.0
    %1442 = vmatpush1.msra.mxu0 %v1321
    %1443 = vmatprep.subr.mxu0 0.0
    %1444 = vmatpush1.msra.mxu0 0.0
    %1445 = vmatprep.subr.mxu0 0.0
    %1446 = vmatpush1.msra.mxu0 0.0
    %1447 = vmatprep.subr.mxu0 0.0
    %1448 = vmatpush1.msra.mxu0 0.0
    %1449 = vmatprep.subr.mxu0 0.0
    %1450 = vmatpush1.msra.mxu0 0.0
    %1451 = vmatprep.subr.mxu0 0.0
    %1452 = vmatpush1.msra.mxu0 0.0
    %1453 = vmatprep.subr.mxu0 0.0
    %1454 = vmatpush1.msra.mxu0 0.0
    %1455 = vmatprep.subr.mxu0 0.0
    %1456 = vmatpush1.msra.mxu0 0.0
    %1457 = vmatprep.subr.mxu0 0.0
    %1458 = vmatpush1.msra.mxu0 0.0
    %1459 = vmatprep.subr.mxu0 0.0
    %1460 = vmatpush1.msra.mxu0 0.0
    %1461 = vmatprep.subr.mxu0 0.0
    %1462 = vmatpush1.msra.mxu0 0.0
    %1463 = vmatprep.subr.mxu0 0.0
    %1464 = vmatpush1.msra.mxu0 0.0
    %1465 = vmatprep.subr.mxu0 0.0
    %1466 = vmatpush1.msra.mxu0 0.0
    %1467 = vmatprep.subr.mxu0 0.0
    %1468 = vmatpush1.msra.mxu0 0.0
    %1469 = vmatprep.subr.mxu0 0.0
    %1470 = vmatpush1.msra.mxu0 0.0
    %1471 = vmatprep.subr.mxu0 0.0
    %1472 = vmatpush1.msra.mxu0 0.0
    %1473 = vmatprep.subr.mxu0 0.0
    %1474 = vmatpush1.msra.mxu0 0.0
    %1475 = vmatprep.mubr.f32.mxu0 0.0
    %1476 = vmatmul.mubr.f32.gmra.mrb[0].mxu0 %v1404
    %v1477 = vpop.f32.mrb[0].mxu0
    %v1478 = vadd.f32 %v1409, %v1477
    %v1479 = vpop.f32.mrb[0].mxu0
    %1480 = vdwg.mxu0
    %vm1481 = vcmp.gt.f32.partialorder %v1478, 0.0
    %v1482 = vmin.f32 %v1478, 0.0
    %v1483 = vmul.f32 %v1482, 1.442695
    %v1484 = vpow.pop %v1483
    %v1485 = vsub.f32 %v1484, 1.0
    %v1486 = vsel %vm1481, %v1478, %v1485
    %v1487 = vrot.slane %v1486, 4
    %v1488 = vadd.f32 %v1486, %v1487
    %v1489 = vrot.slane %v1488, 2
    %v1490 = vadd.f32 %v1488, %v1489
    %v1491 = vrot.slane %v1490, 1
    %v1492 = vadd.f32 %v1490, %v1491
    %v1493 = vmul.f32 %v1486, %v1486
    %v1494 = vrot.slane %v1493, 4
    %v1495 = vadd.f32 %v1493, %v1494
    %v1496 = vrot.slane %v1495, 2
    %v1497 = vadd.f32 %v1495, %v1496
    %v1498 = vrot.slane %v1497, 1
    %v1499 = vadd.f32 %v1497, %v1498
    %v1500 = vmul.f32 %v1492, 0.125
    %v1501 = vmul.f32 %v1499, 0.125
    %v1502 = vmul.f32 %v1500, %v1500
    %v1503 = vsub.f32 %v1501, %v1502
    %v1504 = vmax.f32 %v1503, 0.0
    %v1505 = vsub.f32 %v1486, %v1500
    %v1506 = vadd.f32 %v1504, 1e-05
    %v1507 = vrsqrt.pop %v1506
    %v1508 = vmul.f32 %v1505, %v1507
    %1509 = vst [vmem:[#allocation2] sm:$0xff] %v1508
    %v1510 = vld [vmem:[#allocation2] sm:$0xff]
    %v1511 = vld [vmem:[#allocation15] sm:$0xff]
    %v1512 = vld [vmem:[#allocation15 + $0x8] sm:$0xff]
    %v1513 = vld [vmem:[#allocation15 + $0x10] sm:$0xff]
    %v1514 = vld [vmem:[#allocation15 + $0x18] sm:$0xff]
    %v1515 = vld [vmem:[#allocation15 + $0x20] sm:$0xff]
    %v1516 = vld [vmem:[#allocation15 + $0x28] sm:$0xff]
    %v1517 = vld [vmem:[#allocation15 + $0x30] sm:$0xff]
    %v1518 = vld [vmem:[#allocation15 + $0x38] sm:$0xff]
    %v1519 = vld [vmem:[#allocation15 + $0x40] sm:$0xff]
    %v1520 = vld [vmem:[#allocation15 + $0x48] sm:$0xff]
    %v1521 = vld [vmem:[#allocation15 + $0x50] sm:$0xff]
    %v1522 = vld [vmem:[#allocation15 + $0x58] sm:$0xff]
    %v1523 = vld [vmem:[#allocation15 + $0x60] sm:$0xff]
    %v1524 = vld [vmem:[#allocation15 + $0x68] sm:$0xff]
    %v1525 = vld [vmem:[#allocation15 + $0x70] sm:$0xff]
    %v1526 = vld [vmem:[#allocation15 + $0x78] sm:$0xff]
    %1527 = vmatprep.subr.mxu0 0.0
    %1528 = vmatpush1.msra.mxu0 %v1511
    %1529 = vmatprep.subr.mxu0 0.0
    %1530 = vmatpush1.msra.mxu0 %v1512
    %1531 = vmatprep.subr.mxu0 0.0
    %1532 = vmatpush1.msra.mxu0 %v1513
    %1533 = vmatprep.subr.mxu0 0.0
    %1534 = vmatpush1.msra.mxu0 %v1514
    %1535 = vmatprep.subr.mxu0 0.0
    %1536 = vmatpush1.msra.mxu0 %v1515
    %1537 = vmatprep.subr.mxu0 0.0
    %1538 = vmatpush1.msra.mxu0 %v1516
    %1539 = vmatprep.subr.mxu0 0.0
    %1540 = vmatpush1.msra.mxu0 %v1517
    %1541 = vmatprep.subr.mxu0 0.0
    %1542 = vmatpush1.msra.mxu0 %v1518
    %1543 = vmatprep.subr.mxu0 0.0
    %1544 = vmatpush1.msra.mxu0 %v1519
    %1545 = vmatprep.subr.mxu0 0.0
    %1546 = vmatpush1.msra.mxu0 %v1520
    %1547 = vmatprep.subr.mxu0 0.0
    %1548 = vmatpush1.msra.mxu0 %v1521
    %1549 = vmatprep.subr.mxu0 0.0
    %1550 = vmatpush1.msra.mxu0 %v1522
    %1551 = vmatprep.subr.mxu0 0.0
    %1552 = vmatpush1.msra.mxu0 %v1523
    %1553 = vmatprep.subr.mxu0 0.0
    %1554 = vmatpush1.msra.mxu0 %v1524
    %1555 = vmatprep.subr.mxu0 0.0
    %1556 = vmatpush1.msra.mxu0 %v1525
    %1557 = vmatprep.subr.mxu0 0.0
    %1558 = vmatpush1.msra.mxu0 %v1526
    %1559 = vmatprep.subr.mxu0 0.0
    %1560 = vmatpush1.msra.mxu0 0.0
    %1561 = vmatprep.subr.mxu0 0.0
    %1562 = vmatpush1.msra.mxu0 0.0
    %1563 = vmatprep.subr.mxu0 0.0
    %1564 = vmatpush1.msra.mxu0 0.0
    %1565 = vmatprep.subr.mxu0 0.0
    %1566 = vmatpush1.msra.mxu0 0.0
    %1567 = vmatprep.subr.mxu0 0.0
    %1568 = vmatpush1.msra.mxu0 0.0
    %1569 = vmatprep.subr.mxu0 0.0
    %1570 = vmatpush1.msra.mxu0 0.0
    %1571 = vmatprep.subr.mxu0 0.0
    %1572 = vmatpush1.msra.mxu0 0.0
    %1573 = vmatprep.subr.mxu0 0.0
    %1574 = vmatpush1.msra.mxu0 0.0
    %1575 = vmatprep.subr.mxu0 0.0
    %1576 = vmatpush1.msra.mxu0 0.0
    %1577 = vmatprep.subr.mxu0 0.0
    %1578 = vmatpush1.msra.mxu0 0.0
    %1579 = vmatprep.subr.mxu0 0.0
    %1580 = vmatpush1.msra.mxu0 0.0
    %1581 = vmatprep.subr.mxu0 0.0
    %1582 = vmatpush1.msra.mxu0 0.0
    %1583 = vmatprep.subr.mxu0 0.0
    %1584 = vmatpush1.msra.mxu0 0.0
    %1585 = vmatprep.subr.mxu0 0.0
    %1586 = vmatpush1.msra.mxu0 0.0
    %1587 = vmatprep.subr.mxu0 0.0
    %1588 = vmatpush1.msra.mxu0 0.0
    %1589 = vmatprep.subr.mxu0 0.0
    %1590 = vmatpush1.msra.mxu0 0.0
    %1591 = vmatprep.mubr.f32.mxu0 0.0
    %1592 = vmatmul.mubr.f32.gmra.mrb[0].mxu0 %v1510
    %v1593 = vpop.f32.mrb[0].mxu0
    %v1594 = vadd.f32 0.0, %v1593
    %v1595 = vpop.f32.mrb[0].mxu0
    %1596 = vdwg.mxu0
    %1597 = vst [vmem:[#allocation3] sm:$0xff] %v1594
    %v1598 = vld [vmem:[#allocation2] sm:$0xff]
    %v1599 = vld [vmem:[#allocation17] sm:$0xff]
    %v1600 = vld [vmem:[#allocation17 + $0x8] sm:$0xff]
    %v1601 = vld [vmem:[#allocation17 + $0x10] sm:$0xff]
    %v1602 = vld [vmem:[#allocation17 + $0x18] sm:$0xff]
    %v1603 = vld [vmem:[#allocation17 + $0x20] sm:$0xff]
    %v1604 = vld [vmem:[#allocation17 + $0x28] sm:$0xff]
    %v1605 = vld [vmem:[#allocation17 + $0x30] sm:$0xff]
    %v1606 = vld [vmem:[#allocation17 + $0x38] sm:$0xff]
    %v1607 = vld [vmem:[#allocation17 + $0x40] sm:$0xff]
    %v1608 = vld [vmem:[#allocation17 + $0x48] sm:$0xff]
    %v1609 = vld [vmem:[#allocation17 + $0x50] sm:$0xff]
    %v1610 = vld [vmem:[#allocation17 + $0x58] sm:$0xff]
    %v1611 = vld [vmem:[#allocation17 + $0x60] sm:$0xff]
    %v1612 = vld [vmem:[#allocation17 + $0x68] sm:$0xff]
    %v1613 = vld [vmem:[#allocation17 + $0x70] sm:$0xff]
    %v1614 = vld [vmem:[#allocation17 + $0x78] sm:$0xff]
    %1615 = vmatprep.subr.mxu0 0.0
    %1616 = vmatpush1.msra.mxu0 %v1599
    %1617 = vmatprep.subr.mxu0 0.0
    %1618 = vmatpush1.msra.mxu0 %v1600
    %1619 = vmatprep.subr.mxu0 0.0
    %1620 = vmatpush1.msra.mxu0 %v1601
    %1621 = vmatprep.subr.mxu0 0.0
    %1622 = vmatpush1.msra.mxu0 %v1602
    %1623 = vmatprep.subr.mxu0 0.0
    %1624 = vmatpush1.msra.mxu0 %v1603
    %1625 = vmatprep.subr.mxu0 0.0
    %1626 = vmatpush1.msra.mxu0 %v1604
    %1627 = vmatprep.subr.mxu0 0.0
    %1628 = vmatpush1.msra.mxu0 %v1605
    %1629 = vmatprep.subr.mxu0 0.0
    %1630 = vmatpush1.msra.mxu0 %v1606
    %1631 = vmatprep.subr.mxu0 0.0
    %1632 = vmatpush1.msra.mxu0 %v1607
    %1633 = vmatprep.subr.mxu0 0.0
    %1634 = vmatpush1.msra.mxu0 %v1608
    %1635 = vmatprep.subr.mxu0 0.0
    %1636 = vmatpush1.msra.mxu0 %v1609
    %1637 = vmatprep.subr.mxu0 0.0
    %1638 = vmatpush1.msra.mxu0 %v1610
    %1639 = vmatprep.subr.mxu0 0.0
    %1640 = vmatpush1.msra.mxu0 %v1611
    %1641 = vmatprep.subr.mxu0 0.0
    %1642 = vmatpush1.msra.mxu0 %v1612
    %1643 = vmatprep.subr.mxu0 0.0
    %1644 = vmatpush1.msra.mxu0 %v1613
    %1645 = vmatprep.subr.mxu0 0.0
    %1646 = vmatpush1.msra.mxu0 %v1614
    %1647 = vmatprep.subr.mxu0 0.0
    %1648 = vmatpush1.msra.mxu0 0.0
    %1649 = vmatprep.subr.mxu0 0.0
    %1650 = vmatpush1.msra.mxu0 0.0
    %1651 = vmatprep.subr.mxu0 0.0
    %1652 = vmatpush1.msra.mxu0 0.0
    %1653 = vmatprep.subr.mxu0 0.0
    %1654 = vmatpush1.msra.mxu0 0.0
    %1655 = vmatprep.subr.mxu0 0.0
    %1656 = vmatpush1.msra.mxu0 0.0
    %1657 = vmatprep.subr.mxu0 0.0
    %1658 = vmatpush1.msra.mxu0 0.0
    %1659 = vmatprep.subr.mxu0 0.0
    %1660 = vmatpush1.msra.mxu0 0.0
    %1661 = vmatprep.subr.mxu0 0.0
    %1662 = vmatpush1.msra.mxu0 0.0
    %1663 = vmatprep.subr.mxu0 0.0
    %1664 = vmatpush1.msra.mxu0 0.0
    %1665 = vmatprep.subr.mxu0 0.0
    %1666 = vmatpush1.msra.mxu0 0.0
    %1667 = vmatprep.subr.mxu0 0.0
    %1668 = vmatpush1.msra.mxu0 0.0
    %1669 = vmatprep.subr.mxu0 0.0
    %1670 = vmatpush1.msra.mxu0 0.0
    %1671 = vmatprep.subr.mxu0 0.0
    %1672 = vmatpush1.msra.mxu0 0.0
    %1673 = vmatprep.subr.mxu0 0.0
    %1674 = vmatpush1.msra.mxu0 0.0
    %1675 = vmatprep.subr.mxu0 0.0
    %1676 = vmatpush1.msra.mxu0 0.0
    %1677 = vmatprep.subr.mxu0 0.0
    %1678 = vmatpush1.msra.mxu0 0.0
    %1679 = vmatprep.mubr.f32.mxu0 0.0
    %1680 = vmatmul.mubr.f32.gmra.mrb[0].mxu0 %v1598
    %v1681 = vpop.f32.mrb[0].mxu0
    %v1682 = vadd.f32 0.0, %v1681
    %v1683 = vpop.f32.mrb[0].mxu0
    %1684 = vdwg.mxu0
    %1685 = vst [vmem:[#allocation4] sm:$0xff] %v1682
    %v1686 = vld [vmem:[#allocation3] sm:$0xf]
    %v1687 = vld [vmem:[#allocation4] sm:$0xf]
    %v1689 = vsel %vm618, %v1687, 0
    %1691 = vmatprep.subr.mxu0 0.0
    %1692 = vmatpush1.msra.mxu0 %v1689
    %1693 = vmatprep.subr.mxu0 0.0
    %1694 = vmatpush1.msra.mxu0 0.0
    %1695 = vmatprep.subr.mxu0 0.0
    %1696 = vmatpush1.msra.mxu0 0.0
    %1697 = vmatprep.subr.mxu0 0.0
    %1698 = vmatpush1.msra.mxu0 0.0
    %1699 = vmatprep.subr.mxu0 0.0
    %1700 = vmatpush1.msra.mxu0 0.0
    %1701 = vmatprep.subr.mxu0 0.0
    %1702 = vmatpush1.msra.mxu0 0.0
    %1703 = vmatprep.subr.mxu0 0.0
    %1704 = vmatpush1.msra.mxu0 0.0
    %1705 = vmatprep.subr.mxu0 0.0
    %1706 = vmatpush1.msra.mxu0 0.0
    %1707 = vmatprep.subr.mxu0 0.0
    %1708 = vmatpush1.msra.mxu0 0.0
    %1709 = vmatprep.subr.mxu0 0.0
    %1710 = vmatpush1.msra.mxu0 0.0
    %1711 = vmatprep.subr.mxu0 0.0
    %1712 = vmatpush1.msra.mxu0 0.0
    %1713 = vmatprep.subr.mxu0 0.0
    %1714 = vmatpush1.msra.mxu0 0.0
    %1715 = vmatprep.subr.mxu0 0.0
    %1716 = vmatpush1.msra.mxu0 0.0
    %1717 = vmatprep.subr.mxu0 0.0
    %1718 = vmatpush1.msra.mxu0 0.0
    %1719 = vmatprep.subr.mxu0 0.0
    %1720 = vmatpush1.msra.mxu0 0.0
    %1721 = vmatprep.subr.mxu0 0.0
    %1722 = vmatpush1.msra.mxu0 0.0
    %1723 = vmatprep.subr.mxu0 0.0
    %1724 = vmatpush1.msra.mxu0 0.0
    %1725 = vmatprep.subr.mxu0 0.0
    %1726 = vmatpush1.msra.mxu0 0.0
    %1727 = vmatprep.subr.mxu0 0.0
    %1728 = vmatpush1.msra.mxu0 0.0
    %1729 = vmatprep.subr.mxu0 0.0
    %1730 = vmatpush1.msra.mxu0 0.0
    %1731 = vmatprep.subr.mxu0 0.0
    %1732 = vmatpush1.msra.mxu0 0.0
    %1733 = vmatprep.subr.mxu0 0.0
    %1734 = vmatpush1.msra.mxu0 0.0
    %1735 = vmatprep.subr.mxu0 0.0
    %1736 = vmatpush1.msra.mxu0 0.0
    %1737 = vmatprep.subr.mxu0 0.0
    %1738 = vmatpush1.msra.mxu0 0.0
    %1739 = vmatprep.subr.mxu0 0.0
    %1740 = vmatpush1.msra.mxu0 0.0
    %1741 = vmatprep.subr.mxu0 0.0
    %1742 = vmatpush1.msra.mxu0 0.0
    %1743 = vmatprep.subr.mxu0 0.0
    %1744 = vmatpush1.msra.mxu0 0.0
    %1745 = vmatprep.subr.mxu0 0.0
    %1746 = vmatpush1.msra.mxu0 0.0
    %1747 = vmatprep.subr.mxu0 0.0
    %1748 = vmatpush1.msra.mxu0 0.0
    %1749 = vmatprep.subr.mxu0 0.0
    %1750 = vmatpush1.msra.mxu0 0.0
    %1751 = vmatprep.subr.mxu0 0.0
    %1752 = vmatpush1.msra.mxu0 0.0
    %1753 = vmatprep.subr.mxu0 0.0
    %1754 = vmatpush1.msra.mxu0 0.0
    %1755 = vmatprep.mubr.f32.mxu0 0.0
    %1756 = vmatmul.mubr.f32.gmra.mrb[0].mxu0 %v613
    %v1757 = vpop.f32.mrb[0].mxu0
    %v1758 = vadd.f32 0.0, %v1757
    %v1759 = vpop.f32.mrb[0].mxu0
    %1760 = vmatprep.mubr.f32.mxu0 0.0
    %1761 = vmatmul.mubr.f32.gmra.mrb[0].mxu0 %v616
    %v1762 = vpop.f32.mrb[0].mxu0
    %v1763 = vadd.f32 0.0, %v1762
    %v1764 = vpop.f32.mrb[0].mxu0
    %1765 = vdwg.mxu0
    %v1767 = vsel %vm618, %v1686, 0
    %1769 = vmatprep.subr.mxu0 0.0
    %1770 = vmatpush1.msra.mxu0 %v1767
    %1771 = vmatprep.subr.mxu0 0.0
    %1772 = vmatpush1.msra.mxu0 0.0
    %1773 = vmatprep.subr.mxu0 0.0
    %1774 = vmatpush1.msra.mxu0 0.0
    %1775 = vmatprep.subr.mxu0 0.0
    %1776 = vmatpush1.msra.mxu0 0.0
    %1777 = vmatprep.subr.mxu0 0.0
    %1778 = vmatpush1.msra.mxu0 0.0
    %1779 = vmatprep.subr.mxu0 0.0
    %1780 = vmatpush1.msra.mxu0 0.0
    %1781 = vmatprep.subr.mxu0 0.0
    %1782 = vmatpush1.msra.mxu0 0.0
    %1783 = vmatprep.subr.mxu0 0.0
    %1784 = vmatpush1.msra.mxu0 0.0
    %1785 = vmatprep.subr.mxu0 0.0
    %1786 = vmatpush1.msra.mxu0 0.0
    %1787 = vmatprep.subr.mxu0 0.0
    %1788 = vmatpush1.msra.mxu0 0.0
    %1789 = vmatprep.subr.mxu0 0.0
    %1790 = vmatpush1.msra.mxu0 0.0
    %1791 = vmatprep.subr.mxu0 0.0
    %1792 = vmatpush1.msra.mxu0 0.0
    %1793 = vmatprep.subr.mxu0 0.0
    %1794 = vmatpush1.msra.mxu0 0.0
    %1795 = vmatprep.subr.mxu0 0.0
    %1796 = vmatpush1.msra.mxu0 0.0
    %1797 = vmatprep.subr.mxu0 0.0
    %1798 = vmatpush1.msra.mxu0 0.0
    %1799 = vmatprep.subr.mxu0 0.0
    %1800 = vmatpush1.msra.mxu0 0.0
    %1801 = vmatprep.subr.mxu0 0.0
    %1802 = vmatpush1.msra.mxu0 0.0
    %1803 = vmatprep.subr.mxu0 0.0
    %1804 = vmatpush1.msra.mxu0 0.0
    %1805 = vmatprep.subr.mxu0 0.0
    %1806 = vmatpush1.msra.mxu0 0.0
    %1807 = vmatprep.subr.mxu0 0.0
    %1808 = vmatpush1.msra.mxu0 0.0
    %1809 = vmatprep.subr.mxu0 0.0
    %1810 = vmatpush1.msra.mxu0 0.0
    %1811 = vmatprep.subr.mxu0 0.0
    %1812 = vmatpush1.msra.mxu0 0.0
    %1813 = vmatprep.subr.mxu0 0.0
    %1814 = vmatpush1.msra.mxu0 0.0
    %1815 = vmatprep.subr.mxu0 0.0
    %1816 = vmatpush1.msra.mxu0 0.0
    %1817 = vmatprep.subr.mxu0 0.0
    %1818 = vmatpush1.msra.mxu0 0.0
    %1819 = vmatprep.subr.mxu0 0.0
    %1820 = vmatpush1.msra.mxu0 0.0
    %1821 = vmatprep.subr.mxu0 0.0
    %1822 = vmatpush1.msra.mxu0 0.0
    %1823 = vmatprep.subr.mxu0 0.0
    %1824 = vmatpush1.msra.mxu0 0.0
    %1825 = vmatprep.subr.mxu0 0.0
    %1826 = vmatpush1.msra.mxu0 0.0
    %1827 = vmatprep.subr.mxu0 0.0
    %1828 = vmatpush1.msra.mxu0 0.0
    %1829 = vmatprep.subr.mxu0 0.0
    %1830 = vmatpush1.msra.mxu0 0.0
    %1831 = vmatprep.subr.mxu0 0.0
    %1832 = vmatpush1.msra.mxu0 0.0
    %1833 = vmatprep.mubr.f32.mxu0 0.0
    %1834 = vmatmul.mubr.f32.gmra.mrb[0].mxu0 %v698
    %v1835 = vpop.f32.mrb[0].mxu0
    %v1836 = vadd.f32 %v1758, %v1835
    %v1837 = vpop.f32.mrb[0].mxu0
    %1838 = vmatprep.mubr.f32.mxu0 0.0
    %1839 = vmatmul.mubr.f32.gmra.mrb[0].mxu0 %v701
    %v1840 = vpop.f32.mrb[0].mxu0
    %v1841 = vadd.f32 %v1763, %v1840
    %v1842 = vpop.f32.mrb[0].mxu0
    %1843 = vdwg.mxu0
    %1844 = vst [vmem:[#allocation6] sm:$0xff] %v1836
    %1845 = vst [vmem:[#allocation6 + $0x8] sm:$0xf] %v1841
    %v1846 = vld [vmem:[#allocation3 + $0x4] sm:$0xf]
    %v1847 = vld [vmem:[#allocation4 + $0x4] sm:$0xf]
    %v1849 = vsel %vm618, %v1847, 0
    %1851 = vmatprep.subr.mxu0 0.0
    %1852 = vmatpush1.msra.mxu0 %v1849
    %1853 = vmatprep.subr.mxu0 0.0
    %1854 = vmatpush1.msra.mxu0 0.0
    %1855 = vmatprep.subr.mxu0 0.0
    %1856 = vmatpush1.msra.mxu0 0.0
    %1857 = vmatprep.subr.mxu0 0.0
    %1858 = vmatpush1.msra.mxu0 0.0
    %1859 = vmatprep.subr.mxu0 0.0
    %1860 = vmatpush1.msra.mxu0 0.0
    %1861 = vmatprep.subr.mxu0 0.0
    %1862 = vmatpush1.msra.mxu0 0.0
    %1863 = vmatprep.subr.mxu0 0.0
    %1864 = vmatpush1.msra.mxu0 0.0
    %1865 = vmatprep.subr.mxu0 0.0
    %1866 = vmatpush1.msra.mxu0 0.0
    %1867 = vmatprep.subr.mxu0 0.0
    %1868 = vmatpush1.msra.mxu0 0.0
    %1869 = vmatprep.subr.mxu0 0.0
    %1870 = vmatpush1.msra.mxu0 0.0
    %1871 = vmatprep.subr.mxu0 0.0
    %1872 = vmatpush1.msra.mxu0 0.0
    %1873 = vmatprep.subr.mxu0 0.0
    %1874 = vmatpush1.msra.mxu0 0.0
    %1875 = vmatprep.subr.mxu0 0.0
    %1876 = vmatpush1.msra.mxu0 0.0
    %1877 = vmatprep.subr.mxu0 0.0
    %1878 = vmatpush1.msra.mxu0 0.0
    %1879 = vmatprep.subr.mxu0 0.0
    %1880 = vmatpush1.msra.mxu0 0.0
    %1881 = vmatprep.subr.mxu0 0.0
    %1882 = vmatpush1.msra.mxu0 0.0
    %1883 = vmatprep.subr.mxu0 0.0
    %1884 = vmatpush1.msra.mxu0 0.0
    %1885 = vmatprep.subr.mxu0 0.0
    %1886 = vmatpush1.msra.mxu0 0.0
    %1887 = vmatprep.subr.mxu0 0.0
    %1888 = vmatpush1.msra.mxu0 0.0
    %1889 = vmatprep.subr.mxu0 0.0
    %1890 = vmatpush1.msra.mxu0 0.0
    %1891 = vmatprep.subr.mxu0 0.0
    %1892 = vmatpush1.msra.mxu0 0.0
    %1893 = vmatprep.subr.mxu0 0.0
    %1894 = vmatpush1.msra.mxu0 0.0
    %1895 = vmatprep.subr.mxu0 0.0
    %1896 = vmatpush1.msra.mxu0 0.0
    %1897 = vmatprep.subr.mxu0 0.0
    %1898 = vmatpush1.msra.mxu0 0.0
    %1899 = vmatprep.subr.mxu0 0.0
    %1900 = vmatpush1.msra.mxu0 0.0
    %1901 = vmatprep.subr.mxu0 0.0
    %1902 = vmatpush1.msra.mxu0 0.0
    %1903 = vmatprep.subr.mxu0 0.0
    %1904 = vmatpush1.msra.mxu0 0.0
    %1905 = vmatprep.subr.mxu0 0.0
    %1906 = vmatpush1.msra.mxu0 0.0
    %1907 = vmatprep.subr.mxu0 0.0
    %1908 = vmatpush1.msra.mxu0 0.0
    %1909 = vmatprep.subr.mxu0 0.0
    %1910 = vmatpush1.msra.mxu0 0.0
    %1911 = vmatprep.subr.mxu0 0.0
    %1912 = vmatpush1.msra.mxu0 0.0
    %1913 = vmatprep.subr.mxu0 0.0
    %1914 = vmatpush1.msra.mxu0 0.0
    %1915 = vmatprep.mubr.f32.mxu0 0.0
    %1916 = vmatmul.mubr.f32.gmra.mrb[0].mxu0 %v613
    %v1917 = vpop.f32.mrb[0].mxu0
    %v1918 = vadd.f32 0.0, %v1917
    %v1919 = vpop.f32.mrb[0].mxu0
    %1920 = vmatprep.mubr.f32.mxu0 0.0
    %1921 = vmatmul.mubr.f32.gmra.mrb[0].mxu0 %v616
    %v1922 = vpop.f32.mrb[0].mxu0
    %v1923 = vadd.f32 0.0, %v1922
    %v1924 = vpop.f32.mrb[0].mxu0
    %1925 = vdwg.mxu0
    %v1927 = vsel %vm618, %v1846, 0
    %1929 = vmatprep.subr.mxu0 0.0
    %1930 = vmatpush1.msra.mxu0 %v1927
    %1931 = vmatprep.subr.mxu0 0.0
    %1932 = vmatpush1.msra.mxu0 0.0
    %1933 = vmatprep.subr.mxu0 0.0
    %1934 = vmatpush1.msra.mxu0 0.0
    %1935 = vmatprep.subr.mxu0 0.0
    %1936 = vmatpush1.msra.mxu0 0.0
    %1937 = vmatprep.subr.mxu0 0.0
    %1938 = vmatpush1.msra.mxu0 0.0
    %1939 = vmatprep.subr.mxu0 0.0
    %1940 = vmatpush1.msra.mxu0 0.0
    %1941 = vmatprep.subr.mxu0 0.0
    %1942 = vmatpush1.msra.mxu0 0.0
    %1943 = vmatprep.subr.mxu0 0.0
    %1944 = vmatpush1.msra.mxu0 0.0
    %1945 = vmatprep.subr.mxu0 0.0
    %1946 = vmatpush1.msra.mxu0 0.0
    %1947 = vmatprep.subr.mxu0 0.0
    %1948 = vmatpush1.msra.mxu0 0.0
    %1949 = vmatprep.subr.mxu0 0.0
    %1950 = vmatpush1.msra.mxu0 0.0
    %1951 = vmatprep.subr.mxu0 0.0
    %1952 = vmatpush1.msra.mxu0 0.0
    %1953 = vmatprep.subr.mxu0 0.0
    %1954 = vmatpush1.msra.mxu0 0.0
    %1955 = vmatprep.subr.mxu0 0.0
    %1956 = vmatpush1.msra.mxu0 0.0
    %1957 = vmatprep.subr.mxu0 0.0
    %1958 = vmatpush1.msra.mxu0 0.0
    %1959 = vmatprep.subr.mxu0 0.0
    %1960 = vmatpush1.msra.mxu0 0.0
    %1961 = vmatprep.subr.mxu0 0.0
    %1962 = vmatpush1.msra.mxu0 0.0
    %1963 = vmatprep.subr.mxu0 0.0
    %1964 = vmatpush1.msra.mxu0 0.0
    %1965 = vmatprep.subr.mxu0 0.0
    %1966 = vmatpush1.msra.mxu0 0.0
    %1967 = vmatprep.subr.mxu0 0.0
    %1968 = vmatpush1.msra.mxu0 0.0
    %1969 = vmatprep.subr.mxu0 0.0
    %1970 = vmatpush1.msra.mxu0 0.0
    %1971 = vmatprep.subr.mxu0 0.0
    %1972 = vmatpush1.msra.mxu0 0.0
    %1973 = vmatprep.subr.mxu0 0.0
    %1974 = vmatpush1.msra.mxu0 0.0
    %1975 = vmatprep.subr.mxu0 0.0
    %1976 = vmatpush1.msra.mxu0 0.0
    %1977 = vmatprep.subr.mxu0 0.0
    %1978 = vmatpush1.msra.mxu0 0.0
    %1979 = vmatprep.subr.mxu0 0.0
    %1980 = vmatpush1.msra.mxu0 0.0
    %1981 = vmatprep.subr.mxu0 0.0
    %1982 = vmatpush1.msra.mxu0 0.0
    %1983 = vmatprep.subr.mxu0 0.0
    %1984 = vmatpush1.msra.mxu0 0.0
    %1985 = vmatprep.subr.mxu0 0.0
    %1986 = vmatpush1.msra.mxu0 0.0
    %1987 = vmatprep.subr.mxu0 0.0
    %1988 = vmatpush1.msra.mxu0 0.0
    %1989 = vmatprep.subr.mxu0 0.0
    %1990 = vmatpush1.msra.mxu0 0.0
    %1991 = vmatprep.subr.mxu0 0.0
    %1992 = vmatpush1.msra.mxu0 0.0
    %1993 = vmatprep.mubr.f32.mxu0 0.0
    %1994 = vmatmul.mubr.f32.gmra.mrb[0].mxu0 %v698
    %v1995 = vpop.f32.mrb[0].mxu0
    %v1996 = vadd.f32 %v1918, %v1995
    %v1997 = vpop.f32.mrb[0].mxu0
    %1998 = vmatprep.mubr.f32.mxu0 0.0
    %1999 = vmatmul.mubr.f32.gmra.mrb[0].mxu0 %v701
    %v2000 = vpop.f32.mrb[0].mxu0
    %v2001 = vadd.f32 %v1923, %v2000
    %v2002 = vpop.f32.mrb[0].mxu0
    %2003 = vdwg.mxu0
    %2004 = vst [vmem:[#allocation6 + $0xc] sm:$0xff] %v1996
    %2005 = vst [vmem:[#allocation6 + $0x14] sm:$0xf] %v2001
    %v2006 = vld [vmem:[#allocation6] sm:$0xff]
    %v2007 = vld [vmem:[#allocation6 + $0x8] sm:$0xff]
    %v2008 = vld [vmem:[#allocation6 + $0x10] sm:$0xff]
    %v2009 = vld [vmem:[#allocation5] sm:$0xff]
    %v2010 = vld [vmem:[#allocation5 + $0x8] sm:$0xff]
    %v2011 = vld [vmem:[#allocation5 + $0x10] sm:$0xff]
    %v2012 = vld [vmem:[#allocation18] sm:$0xff]
    %v2013 = vld [vmem:[#allocation18 + $0x8] sm:$0xff]
    %v2014 = vld [vmem:[#allocation18 + $0x10] sm:$0xff]
    %v2015 = vld [vmem:[#allocation18 + $0x18] sm:$0xff]
    %v2016 = vld [vmem:[#allocation18 + $0x20] sm:$0xff]
    %v2017 = vld [vmem:[#allocation18 + $0x28] sm:$0xff]
    %v2018 = vld [vmem:[#allocation18 + $0x30] sm:$0xff]
    %v2019 = vld [vmem:[#allocation18 + $0x38] sm:$0xff]
    %v2020 = vld [vmem:[#allocation18 + $0x40] sm:$0xff]
    %v2021 = vld [vmem:[#allocation18 + $0x48] sm:$0xff]
    %v2022 = vld [vmem:[#allocation18 + $0x50] sm:$0xff]
    %v2023 = vld [vmem:[#allocation18 + $0x58] sm:$0xff]
    %v2024 = vld [vmem:[#allocation18 + $0x60] sm:$0xff]
    %v2025 = vld [vmem:[#allocation18 + $0x68] sm:$0xff]
    %v2026 = vld [vmem:[#allocation18 + $0x70] sm:$0xff]
    %v2027 = vld [vmem:[#allocation18 + $0x78] sm:$0xff]
    %2028 = vmatprep.subr.mxu0 0.0
    %2029 = vmatpush1.msra.mxu0 %v2012
    %2030 = vmatprep.subr.mxu0 0.0
    %2031 = vmatpush1.msra.mxu0 %v2013
    %2032 = vmatprep.subr.mxu0 0.0
    %2033 = vmatpush1.msra.mxu0 %v2014
    %2034 = vmatprep.subr.mxu0 0.0
    %2035 = vmatpush1.msra.mxu0 %v2015
    %2036 = vmatprep.subr.mxu0 0.0
    %2037 = vmatpush1.msra.mxu0 %v2016
    %2038 = vmatprep.subr.mxu0 0.0
    %2039 = vmatpush1.msra.mxu0 %v2017
    %2040 = vmatprep.subr.mxu0 0.0
    %2041 = vmatpush1.msra.mxu0 %v2018
    %2042 = vmatprep.subr.mxu0 0.0
    %2043 = vmatpush1.msra.mxu0 %v2019
    %2044 = vmatprep.subr.mxu0 0.0
    %2045 = vmatpush1.msra.mxu0 %v2020
    %2046 = vmatprep.subr.mxu0 0.0
    %2047 = vmatpush1.msra.mxu0 %v2021
    %2048 = vmatprep.subr.mxu0 0.0
    %2049 = vmatpush1.msra.mxu0 %v2022
    %2050 = vmatprep.subr.mxu0 0.0
    %2051 = vmatpush1.msra.mxu0 %v2023
    %2052 = vmatprep.subr.mxu0 0.0
    %2053 = vmatpush1.msra.mxu0 %v2024
    %2054 = vmatprep.subr.mxu0 0.0
    %2055 = vmatpush1.msra.mxu0 %v2025
    %2056 = vmatprep.subr.mxu0 0.0
    %2057 = vmatpush1.msra.mxu0 %v2026
    %2058 = vmatprep.subr.mxu0 0.0
    %2059 = vmatpush1.msra.mxu0 %v2027
    %2060 = vmatprep.subr.mxu0 0.0
    %2061 = vmatpush1.msra.mxu0 0.0
    %2062 = vmatprep.subr.mxu0 0.0
    %2063 = vmatpush1.msra.mxu0 0.0
    %2064 = vmatprep.subr.mxu0 0.0
    %2065 = vmatpush1.msra.mxu0 0.0
    %2066 = vmatprep.subr.mxu0 0.0
    %2067 = vmatpush1.msra.mxu0 0.0
    %2068 = vmatprep.subr.mxu0 0.0
    %2069 = vmatpush1.msra.mxu0 0.0
    %2070 = vmatprep.subr.mxu0 0.0
    %2071 = vmatpush1.msra.mxu0 0.0
    %2072 = vmatprep.subr.mxu0 0.0
    %2073 = vmatpush1.msra.mxu0 0.0
    %2074 = vmatprep.subr.mxu0 0.0
    %2075 = vmatpush1.msra.mxu0 0.0
    %2076 = vmatprep.subr.mxu0 0.0
    %2077 = vmatpush1.msra.mxu0 0.0
    %2078 = vmatprep.subr.mxu0 0.0
    %2079 = vmatpush1.msra.mxu0 0.0
    %2080 = vmatprep.subr.mxu0 0.0
    %2081 = vmatpush1.msra.mxu0 0.0
    %2082 = vmatprep.subr.mxu0 0.0
    %2083 = vmatpush1.msra.mxu0 0.0
    %2084 = vmatprep.subr.mxu0 0.0
    %2085 = vmatpush1.msra.mxu0 0.0
    %2086 = vmatprep.subr.mxu0 0.0
    %2087 = vmatpush1.msra.mxu0 0.0
    %2088 = vmatprep.subr.mxu0 0.0
    %2089 = vmatpush1.msra.mxu0 0.0
    %2090 = vmatprep.subr.mxu0 0.0
    %2091 = vmatpush1.msra.mxu0 0.0
    %2092 = vmatprep.mubr.f32.mxu0 0.0
    %2093 = vmatmul.mubr.f32.gmra.mrb[0].mxu0 %v2009
    %v2094 = vpop.f32.mrb[0].mxu0
    %v2095 = vadd.f32 0.0, %v2094
    %v2096 = vpop.f32.mrb[0].mxu0
    %2097 = vmatprep.mubr.f32.mxu0 0.0
    %2098 = vmatmul.mubr.f32.gmra.mrb[0].mxu0 %v2010
    %v2099 = vpop.f32.mrb[0].mxu0
    %v2100 = vadd.f32 0.0, %v2099
    %v2101 = vpop.f32.mrb[0].mxu0
    %2102 = vmatprep.mubr.f32.mxu0 0.0
    %2103 = vmatmul.mubr.f32.gmra.mrb[0].mxu0 %v2011
    %v2104 = vpop.f32.mrb[0].mxu0
    %v2105 = vadd.f32 0.0, %v2104
    %v2106 = vpop.f32.mrb[0].mxu0
    %2107 = vdwg.mxu0
    %v2108 = vadd.f32 %v2006, %v2095
    %v2109 = vadd.f32 %v2007, %v2100
    %v2110 = vadd.f32 %v2008, %v2105
    %v2111 = vld [vmem:[%s20] sm:$0x1]
    %v2113 = vlaneseq
    %v2114 = vshrl.u32 %v2113, 7
    %v2115 = vsub.s32 0, %v2114
    %v2116 = vrot.slane %v2111, %v2115
    %v2118 = vadd.f32 %v2108, %v2116
    %v2119 = vadd.f32 %v2109, %v2116
    %v2120 = vadd.f32 %v2110, %v2116
    %vm2121 = vcmp.gt.f32.partialorder %v2118, 0.0
    %vm2122 = vcmp.gt.f32.partialorder %v2119, 0.0
    %vm2123 = vcmp.gt.f32.partialorder %v2120, 0.0
    %v2124 = vmin.f32 %v2118, 0.0
    %v2125 = vmin.f32 %v2119, 0.0
    %v2126 = vmin.f32 %v2120, 0.0
    %v2127 = vmul.f32 %v2124, 1.442695
    %v2128 = vpow.pop %v2127
    %v2129 = vmul.f32 %v2125, 1.442695
    %v2130 = vpow.pop %v2129
    %v2131 = vmul.f32 %v2126, 1.442695
    %v2132 = vpow.pop %v2131
    %v2133 = vsub.f32 %v2128, 1.0
    %v2134 = vsub.f32 %v2130, 1.0
    %v2135 = vsub.f32 %v2132, 1.0
    %v2136 = vsel %vm2121, %v2118, %v2133
    %v2137 = vsel %vm2122, %v2119, %v2134
    %v2138 = vsel %vm2123, %v2120, %v2135
    %v2139 = vld [vmem:[#allocation20] sm:$0xff]
    %v2140 = vld [vmem:[#allocation20 + $0x8] sm:$0xff]
    %v2141 = vld [vmem:[#allocation20 + $0x10] sm:$0xff]
    %v2142 = vld [vmem:[#allocation20 + $0x18] sm:$0xff]
    %v2143 = vld [vmem:[#allocation20 + $0x20] sm:$0xff]
    %v2144 = vld [vmem:[#allocation20 + $0x28] sm:$0xff]
    %v2145 = vld [vmem:[#allocation20 + $0x30] sm:$0xff]
    %v2146 = vld [vmem:[#allocation20 + $0x38] sm:$0xff]
    %v2147 = vld [vmem:[#allocation20 + $0x40] sm:$0xff]
    %v2148 = vld [vmem:[#allocation20 + $0x48] sm:$0xff]
    %v2149 = vld [vmem:[#allocation20 + $0x50] sm:$0xff]
    %v2150 = vld [vmem:[#allocation20 + $0x58] sm:$0xff]
    %v2151 = vld [vmem:[#allocation20 + $0x60] sm:$0xff]
    %v2152 = vld [vmem:[#allocation20 + $0x68] sm:$0xff]
    %v2153 = vld [vmem:[#allocation20 + $0x70] sm:$0xff]
    %v2154 = vld [vmem:[#allocation20 + $0x78] sm:$0xff]
    %v2155 = vld [vmem:[%s22] sm:$0x1]
    %v2157 = vlaneseq
    %v2158 = vshrl.u32 %v2157, 7
    %v2159 = vsub.s32 0, %v2158
    %v2160 = vrot.slane %v2155, %v2159
    %2162 = vmatprep.subr.mxu0 0.0
    %2163 = vmatpush1.msra.mxu0 %v2139
    %2164 = vmatprep.subr.mxu0 0.0
    %2165 = vmatpush1.msra.mxu0 %v2140
    %2166 = vmatprep.subr.mxu0 0.0
    %2167 = vmatpush1.msra.mxu0 %v2141
    %2168 = vmatprep.subr.mxu0 0.0
    %2169 = vmatpush1.msra.mxu0 %v2142
    %2170 = vmatprep.subr.mxu0 0.0
    %2171 = vmatpush1.msra.mxu0 %v2143
    %2172 = vmatprep.subr.mxu0 0.0
    %2173 = vmatpush1.msra.mxu0 %v2144
    %2174 = vmatprep.subr.mxu0 0.0
    %2175 = vmatpush1.msra.mxu0 %v2145
    %2176 = vmatprep.subr.mxu0 0.0
    %2177 = vmatpush1.msra.mxu0 %v2146
    %2178 = vmatprep.subr.mxu0 0.0
    %2179 = vmatpush1.msra.mxu0 %v2147
    %2180 = vmatprep.subr.mxu0 0.0
    %2181 = vmatpush1.msra.mxu0 %v2148
    %2182 = vmatprep.subr.mxu0 0.0
    %2183 = vmatpush1.msra.mxu0 %v2149
    %2184 = vmatprep.subr.mxu0 0.0
    %2185 = vmatpush1.msra.mxu0 %v2150
    %2186 = vmatprep.subr.mxu0 0.0
    %2187 = vmatpush1.msra.mxu0 %v2151
    %2188 = vmatprep.subr.mxu0 0.0
    %2189 = vmatpush1.msra.mxu0 %v2152
    %2190 = vmatprep.subr.mxu0 0.0
    %2191 = vmatpush1.msra.mxu0 %v2153
    %2192 = vmatprep.subr.mxu0 0.0
    %2193 = vmatpush1.msra.mxu0 %v2154
    %2194 = vmatprep.subr.mxu0 0.0
    %2195 = vmatpush1.msra.mxu0 0.0
    %2196 = vmatprep.subr.mxu0 0.0
    %2197 = vmatpush1.msra.mxu0 0.0
    %2198 = vmatprep.subr.mxu0 0.0
    %2199 = vmatpush1.msra.mxu0 0.0
    %2200 = vmatprep.subr.mxu0 0.0
    %2201 = vmatpush1.msra.mxu0 0.0
    %2202 = vmatprep.subr.mxu0 0.0
    %2203 = vmatpush1.msra.mxu0 0.0
    %2204 = vmatprep.subr.mxu0 0.0
    %2205 = vmatpush1.msra.mxu0 0.0
    %2206 = vmatprep.subr.mxu0 0.0
    %2207 = vmatpush1.msra.mxu0 0.0
    %2208 = vmatprep.subr.mxu0 0.0
    %2209 = vmatpush1.msra.mxu0 0.0
    %2210 = vmatprep.subr.mxu0 0.0
    %2211 = vmatpush1.msra.mxu0 0.0
    %2212 = vmatprep.subr.mxu0 0.0
    %2213 = vmatpush1.msra.mxu0 0.0
    %2214 = vmatprep.subr.mxu0 0.0
    %2215 = vmatpush1.msra.mxu0 0.0
    %2216 = vmatprep.subr.mxu0 0.0
    %2217 = vmatpush1.msra.mxu0 0.0
    %2218 = vmatprep.subr.mxu0 0.0
    %2219 = vmatpush1.msra.mxu0 0.0
    %2220 = vmatprep.subr.mxu0 0.0
    %2221 = vmatpush1.msra.mxu0 0.0
    %2222 = vmatprep.subr.mxu0 0.0
    %2223 = vmatpush1.msra.mxu0 0.0
    %2224 = vmatprep.subr.mxu0 0.0
    %2225 = vmatpush1.msra.mxu0 0.0
    %2226 = vmatprep.mubr.f32.mxu0 0.0
    %2227 = vmatmul.mubr.f32.gmra.mrb[0].mxu0 %v2136
    %v2228 = vpop.f32.mrb[0].mxu0
    %v2229 = vadd.f32 %v2160, %v2228
    %v2230 = vpop.f32.mrb[0].mxu0
    %2231 = vmatprep.mubr.f32.mxu0 0.0
    %2232 = vmatmul.mubr.f32.gmra.mrb[0].mxu0 %v2137
    %v2233 = vpop.f32.mrb[0].mxu0
    %v2234 = vadd.f32 %v2160, %v2233
    %v2235 = vpop.f32.mrb[0].mxu0
    %2236 = vmatprep.mubr.f32.mxu0 0.0
    %2237 = vmatmul.mubr.f32.gmra.mrb[0].mxu0 %v2138
    %v2238 = vpop.f32.mrb[0].mxu0
    %v2239 = vadd.f32 %v2160, %v2238
    %v2240 = vpop.f32.mrb[0].mxu0
    %2241 = vdwg.mxu0
    %vm2242 = vcmp.gt.f32.partialorder %v2229, 0.0
    %vm2243 = vcmp.gt.f32.partialorder %v2234, 0.0
    %vm2244 = vcmp.gt.f32.partialorder %v2239, 0.0
    %v2245 = vmin.f32 %v2229, 0.0
    %v2246 = vmin.f32 %v2234, 0.0
    %v2247 = vmin.f32 %v2239, 0.0
    %v2248 = vmul.f32 %v2245, 1.442695
    %v2249 = vpow.pop %v2248
    %v2250 = vmul.f32 %v2246, 1.442695
    %v2251 = vpow.pop %v2250
    %v2252 = vmul.f32 %v2247, 1.442695
    %v2253 = vpow.pop %v2252
    %v2254 = vsub.f32 %v2249, 1.0
    %v2255 = vsub.f32 %v2251, 1.0
    %v2256 = vsub.f32 %v2253, 1.0
    %v2257 = vsel %vm2242, %v2229, %v2254
    %v2258 = vsel %vm2243, %v2234, %v2255
    %v2259 = vsel %vm2244, %v2239, %v2256
    %v2260 = vadd.f32 %v2257, %v2258
    %v2261 = vadd.f32 %v2260, %v2259
    %v2262 = vrot.slane %v2261, 4
    %v2263 = vadd.f32 %v2261, %v2262
    %v2264 = vrot.slane %v2263, 2
    %v2265 = vadd.f32 %v2263, %v2264
    %v2266 = vrot.slane %v2265, 1
    %v2267 = vadd.f32 %v2265, %v2266
    %v2268 = vmul.f32 %v2257, %v2257
    %v2269 = vmul.f32 %v2258, %v2258
    %v2270 = vmul.f32 %v2259, %v2259
    %v2271 = vadd.f32 %v2268, %v2269
    %v2272 = vadd.f32 %v2271, %v2270
    %v2273 = vrot.slane %v2272, 4
    %v2274 = vadd.f32 %v2272, %v2273
    %v2275 = vrot.slane %v2274, 2
    %v2276 = vadd.f32 %v2274, %v2275
    %v2277 = vrot.slane %v2276, 1
    %v2278 = vadd.f32 %v2276, %v2277
    %v2279 = vmul.f32 %v2267, 0.041666668
    %v2280 = vmul.f32 %v2278, 0.041666668
    %v2281 = vmul.f32 %v2279, %v2279
    %v2282 = vsub.f32 %v2280, %v2281
    %v2283 = vmax.f32 %v2282, 0.0
    %v2284 = vsub.f32 %v2257, %v2279
    %v2285 = vsub.f32 %v2258, %v2279
    %v2286 = vsub.f32 %v2259, %v2279
    %v2287 = vadd.f32 %v2283, 1e-05
    %v2288 = vrsqrt.pop %v2287
    %v2289 = vmul.f32 %v2284, %v2288
    %v2290 = vmul.f32 %v2285, %v2288
    %v2291 = vmul.f32 %v2286, %v2288
    %v2292 = vld [vmem:[#allocation21] sm:$0xff]
    %v2293 = vld [vmem:[#allocation21 + $0x8] sm:$0xff]
    %v2294 = vld [vmem:[#allocation21 + $0x10] sm:$0xff]
    %v2295 = vld [vmem:[#allocation21 + $0x18] sm:$0xff]
    %v2296 = vld [vmem:[#allocation21 + $0x20] sm:$0xff]
    %v2297 = vld [vmem:[#allocation21 + $0x28] sm:$0xff]
    %v2298 = vld [vmem:[#allocation21 + $0x30] sm:$0xff]
    %v2299 = vld [vmem:[#allocation21 + $0x38] sm:$0xff]
    %v2300 = vld [vmem:[#allocation21 + $0x40] sm:$0xff]
    %v2301 = vld [vmem:[#allocation21 + $0x48] sm:$0xff]
    %v2302 = vld [vmem:[#allocation21 + $0x50] sm:$0xff]
    %v2303 = vld [vmem:[#allocation21 + $0x58] sm:$0xff]
    %v2304 = vld [vmem:[#allocation21 + $0x60] sm:$0xff]
    %v2305 = vld [vmem:[#allocation21 + $0x68] sm:$0xff]
    %v2306 = vld [vmem:[#allocation21 + $0x70] sm:$0xff]
    %v2307 = vld [vmem:[#allocation21 + $0x78] sm:$0xff]
    %v2308 = vld [vmem:[%s24] sm:$0x1]
    %v2310 = vlaneseq
    %v2311 = vshrl.u32 %v2310, 7
    %v2312 = vsub.s32 0, %v2311
    %v2313 = vrot.slane %v2308, %v2312
    %2315 = vmatprep.subr.mxu0 0.0
    %2316 = vmatpush1.msra.mxu0 %v2292
    %2317 = vmatprep.subr.mxu0 0.0
    %2318 = vmatpush1.msra.mxu0 %v2293
    %2319 = vmatprep.subr.mxu0 0.0
    %2320 = vmatpush1.msra.mxu0 %v2294
    %2321 = vmatprep.subr.mxu0 0.0
    %2322 = vmatpush1.msra.mxu0 %v2295
    %2323 = vmatprep.subr.mxu0 0.0
    %2324 = vmatpush1.msra.mxu0 %v2296
    %2325 = vmatprep.subr.mxu0 0.0
    %2326 = vmatpush1.msra.mxu0 %v2297
    %2327 = vmatprep.subr.mxu0 0.0
    %2328 = vmatpush1.msra.mxu0 %v2298
    %2329 = vmatprep.subr.mxu0 0.0
    %2330 = vmatpush1.msra.mxu0 %v2299
    %2331 = vmatprep.subr.mxu0 0.0
    %2332 = vmatpush1.msra.mxu0 %v2300
    %2333 = vmatprep.subr.mxu0 0.0
    %2334 = vmatpush1.msra.mxu0 %v2301
    %2335 = vmatprep.subr.mxu0 0.0
    %2336 = vmatpush1.msra.mxu0 %v2302
    %2337 = vmatprep.subr.mxu0 0.0
    %2338 = vmatpush1.msra.mxu0 %v2303
    %2339 = vmatprep.subr.mxu0 0.0
    %2340 = vmatpush1.msra.mxu0 %v2304
    %2341 = vmatprep.subr.mxu0 0.0
    %2342 = vmatpush1.msra.mxu0 %v2305
    %2343 = vmatprep.subr.mxu0 0.0
    %2344 = vmatpush1.msra.mxu0 %v2306
    %2345 = vmatprep.subr.mxu0 0.0
    %2346 = vmatpush1.msra.mxu0 %v2307
    %2347 = vmatprep.subr.mxu0 0.0
    %2348 = vmatpush1.msra.mxu0 0.0
    %2349 = vmatprep.subr.mxu0 0.0
    %2350 = vmatpush1.msra.mxu0 0.0
    %2351 = vmatprep.subr.mxu0 0.0
    %2352 = vmatpush1.msra.mxu0 0.0
    %2353 = vmatprep.subr.mxu0 0.0
    %2354 = vmatpush1.msra.mxu0 0.0
    %2355 = vmatprep.subr.mxu0 0.0
    %2356 = vmatpush1.msra.mxu0 0.0
    %2357 = vmatprep.subr.mxu0 0.0
    %2358 = vmatpush1.msra.mxu0 0.0
    %2359 = vmatprep.subr.mxu0 0.0
    %2360 = vmatpush1.msra.mxu0 0.0
    %2361 = vmatprep.subr.mxu0 0.0
    %2362 = vmatpush1.msra.mxu0 0.0
    %2363 = vmatprep.subr.mxu0 0.0
    %2364 = vmatpush1.msra.mxu0 0.0
    %2365 = vmatprep.subr.mxu0 0.0
    %2366 = vmatpush1.msra.mxu0 0.0
    %2367 = vmatprep.subr.mxu0 0.0
    %2368 = vmatpush1.msra.mxu0 0.0
    %2369 = vmatprep.subr.mxu0 0.0
    %2370 = vmatpush1.msra.mxu0 0.0
    %2371 = vmatprep.subr.mxu0 0.0
    %2372 = vmatpush1.msra.mxu0 0.0
    %2373 = vmatprep.subr.mxu0 0.0
    %2374 = vmatpush1.msra.mxu0 0.0
    %2375 = vmatprep.subr.mxu0 0.0
    %2376 = vmatpush1.msra.mxu0 0.0
    %2377 = vmatprep.subr.mxu0 0.0
    %2378 = vmatpush1.msra.mxu0 0.0
    %2379 = vmatprep.mubr.f32.mxu0 0.0
    %2380 = vmatmul.mubr.f32.gmra.mrb[0].mxu0 %v2289
    %v2381 = vpop.f32.mrb[0].mxu0
    %v2382 = vadd.f32 %v2313, %v2381
    %v2383 = vpop.f32.mrb[0].mxu0
    %2384 = vmatprep.mubr.f32.mxu0 0.0
    %2385 = vmatmul.mubr.f32.gmra.mrb[0].mxu0 %v2290
    %v2386 = vpop.f32.mrb[0].mxu0
    %v2387 = vadd.f32 %v2313, %v2386
    %v2388 = vpop.f32.mrb[0].mxu0
    %2389 = vmatprep.mubr.f32.mxu0 0.0
    %2390 = vmatmul.mubr.f32.gmra.mrb[0].mxu0 %v2291
    %v2391 = vpop.f32.mrb[0].mxu0
    %v2392 = vadd.f32 %v2313, %v2391
    %v2393 = vpop.f32.mrb[0].mxu0
    %2394 = vdwg.mxu0
    %2395 = vst [vmem:[%s25] sm:$0xff] %v2382
    %2396 = vst [vmem:[%s25 + $0x8] sm:$0xff] %v2387
    %2397 = vst [vmem:[%s25 + $0x10] sm:$0xff] %v2392
    // Predicated region
    $region142: #{mlp_encoder_forward.1} parent=1 // pred_check
      _
    $region143: #{mlp_encoder_forward.1} parent=1 // pred_check_branch
      %2399 = sbr.rel (0) target = $region145
    $region144: #{mlp_encoder_forward.1} parent=1 // pred_region
      _
    $region145: #{mlp_encoder_forward.1} parent=1 // pred_fallthru
      _
    // Predicated region
    $region146: #{mlp_encoder_forward.1} parent=1 // pred_check
      _
    $region147: #{mlp_encoder_forward.1} parent=1 // pred_check_branch
      %2401 = sbr.rel (0) target = $region149
    $region148: #{mlp_encoder_forward.1} parent=1 // pred_region
      _
    $region149: #{mlp_encoder_forward.1} parent=1 // pred_fallthru
      _
    %2402 = vsyncpa [#allocation8], 1
    %2403 = vsyncpa [#allocation10], 1
    %2404 = vsyncpa [#allocation13], 1
    %2405 = vsyncpa [#allocation16], 1
    %2406 = vsyncpa [#allocation19], 1
    %2407 = vsyncpa [#allocation22], 1

</llo_original>
